<compile_context>
chip_gen: v7x
topology: tpu7x:2x2x1
jax: 0.10.0
libtpu: 0.0.40
codegen_flags: <defaults>
</compile_context>

<pallas_src>
import functools

import jax
import jax.numpy as jnp
import numpy as np
from jax.experimental import pallas as pl
from jax.experimental.pallas import tpu as pltpu

GAMMA_GELU = 1.7015043497085571  # NFNet scaled-GELU gamma (timm)
CPAD = 128                       # lane-dense channel width for all tensors


def _round_up(x, m):
    return ((x + m - 1) // m) * m


# ----------------------------------------------------------------------------
# Pallas kernel: fused implicit-GEMM 3x3 WS-conv + bias (+ gamma * GELU)
# ----------------------------------------------------------------------------
def _conv3x3_kernel(x_ref, w_ref, b_ref, o_ref, *, starts, m_rows, apply_act):
    # x_ref: (rows_pad, 128) bf16  -- flattened (sub-grid, row, col) spatial axis
    # w_ref: (9*128, 128) bf16     -- standardized weights, one 128-row slice/tap
    # b_ref: (1, 128) f32          -- zero-padded bias
    # o_ref: (m_rows, 128)         -- m_rows = Ho * Ws (extra cols sliced outside)
    acc = jnp.zeros((m_rows, CPAD), jnp.float32)
    for idx, s0 in enumerate(starts):          # 9 static taps, contiguous slabs
        acc = acc + jnp.dot(x_ref[s0:s0 + m_rows, :],
                            w_ref[idx * CPAD:(idx + 1) * CPAD, :],
                            preferred_element_type=jnp.float32)
    y = acc + b_ref[...]
    if apply_act:
        # tanh-GELU rides the EUP slot; reference uses the same approximation.
        y = jax.nn.gelu(y, approximate=True) * GAMMA_GELU
    o_ref[...] = y.astype(o_ref.dtype)


def fused_ws_conv(x_sub, w2d, bias, *, stride, Ho, Wo, apply_act, out_dtype):
    """x_sub: (B, P, Hs, Ws, 128) bf16 parity sub-grids of the padded activation.

    Returns (B, Ho*Ws, 128); columns >= Wo are wrap-around garbage that the
    caller slices off (cheaper than in-kernel window reshapes)."""
    B, P, Hs, Ws, C = x_sub.shape
    assert C == CPAD
    m_rows = Ho * Ws

    # Static flat start offset of each of the 9 taps inside the flattened
    # (P, Hs, Ws) spatial axis.
    starts = []
    for idx in range(9):
        ki, kj = idx // 3, idx % 3
        if stride == 1:
            p, dr, dc = 0, ki, kj
        else:  # stride 2: parity sub-grid + intra-grid shift
            p, dr, dc = (ki % 2) * 2 + (kj % 2), ki // 2, kj // 2
        starts.append(p * Hs * Ws + dr * Ws + dc)

    rows = P * Hs * Ws
    rows_pad = _round_up(max(rows, max(starts) + m_rows), 8)  # keep slabs in-bounds
    xf = x_sub.reshape(B, rows, C)
    if rows_pad > rows:
        xf = jnp.pad(xf, ((0, 0), (0, rows_pad - rows), (0, 0)))

    kernel = functools.partial(_conv3x3_kernel, starts=tuple(starts),
                               m_rows=m_rows, apply_act=apply_act)
    out_itemsize = jnp.dtype(out_dtype).itemsize
    cost = pl.CostEstimate(
        flops=2 * B * m_rows * 9 * CPAD * CPAD,
        transcendentals=B * m_rows * CPAD if apply_act else 0,
        bytes_accessed=(xf.size * 2 + w2d.size * 2 + bias.size * 4
                        + B * m_rows * CPAD * out_itemsize))

    return pl.pallas_call(
        kernel,
        out_shape=jax.ShapeDtypeStruct((B, m_rows, CPAD), out_dtype),
        grid_spec=pltpu.PrefetchScalarGridSpec(
            num_scalar_prefetch=0,
            grid=(B,),
            in_specs=[
                pl.BlockSpec((None, rows_pad, CPAD), lambda b: (b, 0, 0)),
                pl.BlockSpec((9 * CPAD, CPAD), lambda b: (0, 0)),
                pl.BlockSpec((1, CPAD), lambda b: (0, 0)),
            ],
            out_specs=pl.BlockSpec((None, m_rows, CPAD), lambda b: (b, 0, 0)),
        ),
        compiler_params=pltpu.CompilerParams(
            dimension_semantics=("parallel",)),   # v7x: one image per TensorCore
        cost_estimate=cost,
    )(xf, w2d, bias)


# ----------------------------------------------------------------------------
# Wrapper glue: spatial pad + parity split (cheap, 1x activation bytes)
# ----------------------------------------------------------------------------
def _prep_layer_input(x_nhwc, stride):
    """x: (B, H, W, 128) bf16 -> (B, P, Hs, Ws, 128) padded parity sub-grids."""
    xp = jnp.pad(x_nhwc, ((0, 0), (1, 1), (1, 1), (0, 0)))
    if stride == 1:
        return xp[:, None]                                       # (B,1,Hp,Wp,C)
    assert x_nhwc.shape[1] % 2 == 0 and x_nhwc.shape[2] % 2 == 0
    subs = [xp[:, pr::2, pc::2, :] for pr in (0, 1) for pc in (0, 1)]
    return jnp.stack(subs, axis=1)                               # (B,4,Hs,Ws,C)


def prepare_weight(w_hwio, gain, eps=1e-5):
    """ScaledStdConv2d weight transform (timm) over the REAL fan-in, then zero
    pad Cin/Cout to 128 and flatten to (9*128, 128) bf16.  Done once at init."""
    kh, kw, cin, cout = w_hwio.shape
    fan_in = kh * kw * cin
    mean = jnp.mean(w_hwio, axis=(0, 1, 2), keepdims=True)
    var = jnp.var(w_hwio, axis=(0, 1, 2), keepdims=True)
    scale = jax.lax.rsqrt(jnp.maximum(var * fan_in, eps))
    w_std = (w_hwio - mean) * scale * gain.reshape(1, 1, 1, cout)
    w_std = jnp.pad(w_std, ((0, 0), (0, 0), (0, CPAD - cin), (0, CPAD - cout)))
    return w_std.reshape(kh * kw * CPAD, CPAD).astype(jnp.bfloat16)


def _forward_impl(x_nchw, weights, biases, *, strides, acts, out_ch):
    x = jnp.transpose(x_nchw, (0, 2, 3, 1)).astype(jnp.bfloat16)   # NCHW -> NHWC
    B, H, W, C = x.shape
    x = jnp.pad(x, ((0, 0), (0, 0), (0, 0), (0, CPAD - C)))        # lane-dense
    n_layers = len(weights)
    for li in range(n_layers):
        s = strides[li]
        H, W = x.shape[1], x.shape[2]
        Ho = (H + 2 - 3) // s + 1
        Wo = (W + 2 - 3) // s + 1
        x_sub = _prep_layer_input(x, s)
        Ws = x_sub.shape[3]
        is_last = li == n_layers - 1
        y = fused_ws_conv(x_sub, weights[li], biases[li],
                          stride=s, Ho=Ho, Wo=Wo, apply_act=acts[li],
                          out_dtype=jnp.float32 if is_last else jnp.bfloat16)
        x = y.reshape(B, Ho, Ws, CPAD)[:, :, :Wo, :]     # drop wrap-around cols
    x = x[..., :out_ch]                                  # drop padded channels
    return jnp.transpose(x, (0, 3, 1, 2))                # back to NCHW


class PallasBackbone:
    """NFNet-style WS-conv stem; forward(x_nchw) -> un-pooled feature map NCHW."""

    # (cin, cout, stride, apply_act)
    CFG = [(3, 16, 2, True), (16, 32, 1, True), (32, 64, 2, True)]

    def __init__(self, key):
        weights, biases, strides, acts = [], [], [], []
        for (cin, cout, stride, act) in self.CFG:
            key, kw_, kg_, kb_ = jax.random.split(key, 4)
            w = jax.random.normal(kw_, (3, 3, cin, cout), jnp.float32) * 0.05
            gain = 1.0 + 0.01 * jax.random.normal(kg_, (cout,), jnp.float32)
            bias = 0.01 * jax.random.normal(kb_, (cout,), jnp.float32)
            weights.append(prepare_weight(w, gain))
            biases.append(jnp.pad(bias, (0, CPAD - cout)).reshape(1, CPAD)
                          .astype(jnp.float32))
            strides.append(stride)
            acts.append(act)
        self.weights = tuple(weights)
        self.biases = tuple(biases)
        self.strides = tuple(strides)
        self.acts = tuple(acts)
        self.out_feats = self.CFG[-1][1]   # mirrors `self.out_feats = head.fc.in_features`
        self._forward = jax.jit(functools.partial(
            _forward_impl, strides=self.strides, acts=self.acts,
            out_ch=self.out_feats))

    def __call__(self, x_nchw):
        return self._forward(x_nchw, self.weights, self.biases)


# ----------------------------------------------------------------------------
def _reference_forward(x_nchw, weights, biases, strides, acts, out_ch):
    """Pure-JAX (lax.conv) reference with identical bf16 quantization points."""
    x = jnp.transpose(x_nchw, (0, 2, 3, 1)).astype(jnp.bfloat16)
    B, H, W, C = x.shape
    x = jnp.pad(x, ((0, 0), (0, 0), (0, 0), (0, CPAD - C)))
    n_layers = len(weights)
    for li in range(n_layers):
        w_hwio = weights[li].reshape(3, 3, CPAD, CPAD)
        s = strides[li]
        y = jax.lax.conv_general_dilated(
            x, w_hwio, window_strides=(s, s), padding=((1, 1), (1, 1)),
            dimension_numbers=("NHWC", "HWIO", "NHWC"),
            preferred_element_type=jnp.float32)
        y = y + biases[li]
        if acts[li]:
            y = jax.nn.gelu(y, approximate=True) * GAMMA_GELU
        if li < n_layers - 1:
            y = y.astype(jnp.bfloat16)
        x = y
    x = x[..., :out_ch]
    return jnp.transpose(x, (0, 3, 1, 2))


if __name__ == "__main__":
    key = jax.random.PRNGKey(0)
    key, kx = jax.random.split(key)
    x = jax.random.normal(kx, (2, 3, 16, 16), jnp.float32)   # NCHW like PyTorch

    model = PallasBackbone(key)
    out = jax.block_until_ready(model(x))

    ref = jax.block_until_ready(
        _reference_forward(x, model.weights, model.biases, model.strides,
                           model.acts, model.out_feats))
    np.testing.assert_allclose(np.asarray(out), np.asarray(ref), rtol=2e-2, atol=2e-2)

    assert out.shape == (2, model.out_feats, 4, 4), out.shape
    assert out.dtype == jnp.float32
    print("KERNEL_OK")
</pallas_src>

<mosaic_0001>
module attributes {stable_mosaic.version = 11 : i64} {
  func.func @_conv3x3_kernel(%arg0: i32, %arg1: memref<1x328x128xbf16, #tpu.memory_space<vmem>>, %arg2: memref<1152x128xbf16, #tpu.memory_space<vmem>>, %arg3: memref<1x128xf32, #tpu.memory_space<vmem>>, %arg4: memref<1x72x128xbf16, #tpu.memory_space<vmem>>) attributes {dimension_semantics = [#tpu.dimension_semantics<parallel>], iteration_bounds = array<i64: 2>, scalar_prefetch = 0 : i64, scratch_operands = 0 : i64, tpu.core_type = #tpu.core_type<tc>, window_params = [{transform_indices = @transform_0, window_bounds = array<i64: 1, 328, 128>}, {pipeline_mode = #tpu.pipeline_mode<synchronous>, transform_indices = @transform_1, window_bounds = array<i64: 1152, 128>}, {pipeline_mode = #tpu.pipeline_mode<synchronous>, transform_indices = @transform_2, window_bounds = array<i64: 1, 128>}, {transform_indices = @transform_3, window_bounds = array<i64: 1, 72, 128>}]} {
    %cst = arith.constant 0.000000e+00 : f32
    %0 = vector.broadcast %cst : f32 to vector<72x128xf32>
    %c0 = arith.constant 0 : index
    %c0_0 = arith.constant 0 : index
    %c0_1 = arith.constant 0 : index
    %1 = vector.load %arg1[%c0, %c0_0, %c0_1] : memref<1x328x128xbf16, #tpu.memory_space<vmem>>, vector<1x72x128xbf16>
    %2 = vector.shape_cast %1 : vector<1x72x128xbf16> to vector<72x128xbf16>
    %c0_2 = arith.constant 0 : index
    %c0_3 = arith.constant 0 : index
    %3 = vector.load %arg2[%c0_2, %c0_3] : memref<1152x128xbf16, #tpu.memory_space<vmem>>, vector<128x128xbf16>
    %cst_4 = arith.constant dense<0.000000e+00> : vector<72x128xf32>
    %4 = tpu.matmul %2, %3, %cst_4 {dimension_numbers = #tpu.dot_dimension_numbers<[1], [0], [0], [1], [0, 0, 1, 1], [], []>} : vector<72x128xbf16>, vector<128x128xbf16>, vector<72x128xf32> -> vector<72x128xf32>
    %5 = arith.addf %0, %4 : vector<72x128xf32>
    %c0_5 = arith.constant 0 : index
    %c81 = arith.constant 81 : index
    %c0_6 = arith.constant 0 : index
    %6 = vector.load %arg1[%c0_5, %c81, %c0_6] : memref<1x328x128xbf16, #tpu.memory_space<vmem>>, vector<1x72x128xbf16>
    %7 = vector.shape_cast %6 : vector<1x72x128xbf16> to vector<72x128xbf16>
    %c128 = arith.constant 128 : index
    %c0_7 = arith.constant 0 : index
    %8 = vector.load %arg2[%c128, %c0_7] : memref<1152x128xbf16, #tpu.memory_space<vmem>>, vector<128x128xbf16>
    %cst_8 = arith.constant dense<0.000000e+00> : vector<72x128xf32>
    %9 = tpu.matmul %7, %8, %cst_8 {dimension_numbers = #tpu.dot_dimension_numbers<[1], [0], [0], [1], [0, 0, 1, 1], [], []>} : vector<72x128xbf16>, vector<128x128xbf16>, vector<72x128xf32> -> vector<72x128xf32>
    %10 = arith.addf %5, %9 : vector<72x128xf32>
    %c0_9 = arith.constant 0 : index
    %c1 = arith.constant 1 : index
    %c0_10 = arith.constant 0 : index
    %11 = vector.load %arg1[%c0_9, %c1, %c0_10] : memref<1x328x128xbf16, #tpu.memory_space<vmem>>, vector<1x72x128xbf16>
    %12 = vector.shape_cast %11 : vector<1x72x128xbf16> to vector<72x128xbf16>
    %c256 = arith.constant 256 : index
    %c0_11 = arith.constant 0 : index
    %13 = vector.load %arg2[%c256, %c0_11] : memref<1152x128xbf16, #tpu.memory_space<vmem>>, vector<128x128xbf16>
    %cst_12 = arith.constant dense<0.000000e+00> : vector<72x128xf32>
    %14 = tpu.matmul %12, %13, %cst_12 {dimension_numbers = #tpu.dot_dimension_numbers<[1], [0], [0], [1], [0, 0, 1, 1], [], []>} : vector<72x128xbf16>, vector<128x128xbf16>, vector<72x128xf32> -> vector<72x128xf32>
    %15 = arith.addf %10, %14 : vector<72x128xf32>
    %c0_13 = arith.constant 0 : index
    %c162 = arith.constant 162 : index
    %c0_14 = arith.constant 0 : index
    %16 = vector.load %arg1[%c0_13, %c162, %c0_14] : memref<1x328x128xbf16, #tpu.memory_space<vmem>>, vector<1x72x128xbf16>
    %17 = vector.shape_cast %16 : vector<1x72x128xbf16> to vector<72x128xbf16>
    %c384 = arith.constant 384 : index
    %c0_15 = arith.constant 0 : index
    %18 = vector.load %arg2[%c384, %c0_15] : memref<1152x128xbf16, #tpu.memory_space<vmem>>, vector<128x128xbf16>
    %cst_16 = arith.constant dense<0.000000e+00> : vector<72x128xf32>
    %19 = tpu.matmul %17, %18, %cst_16 {dimension_numbers = #tpu.dot_dimension_numbers<[1], [0], [0], [1], [0, 0, 1, 1], [], []>} : vector<72x128xbf16>, vector<128x128xbf16>, vector<72x128xf32> -> vector<72x128xf32>
    %20 = arith.addf %15, %19 : vector<72x128xf32>
    %c0_17 = arith.constant 0 : index
    %c243 = arith.constant 243 : index
    %c0_18 = arith.constant 0 : index
    %21 = vector.load %arg1[%c0_17, %c243, %c0_18] : memref<1x328x128xbf16, #tpu.memory_space<vmem>>, vector<1x72x128xbf16>
    %22 = vector.shape_cast %21 : vector<1x72x128xbf16> to vector<72x128xbf16>
    %c512 = arith.constant 512 : index
    %c0_19 = arith.constant 0 : index
    %23 = vector.load %arg2[%c512, %c0_19] : memref<1152x128xbf16, #tpu.memory_space<vmem>>, vector<128x128xbf16>
    %cst_20 = arith.constant dense<0.000000e+00> : vector<72x128xf32>
    %24 = tpu.matmul %22, %23, %cst_20 {dimension_numbers = #tpu.dot_dimension_numbers<[1], [0], [0], [1], [0, 0, 1, 1], [], []>} : vector<72x128xbf16>, vector<128x128xbf16>, vector<72x128xf32> -> vector<72x128xf32>
    %25 = arith.addf %20, %24 : vector<72x128xf32>
    %c0_21 = arith.constant 0 : index
    %c163 = arith.constant 163 : index
    %c0_22 = arith.constant 0 : index
    %26 = vector.load %arg1[%c0_21, %c163, %c0_22] : memref<1x328x128xbf16, #tpu.memory_space<vmem>>, vector<1x72x128xbf16>
    %27 = vector.shape_cast %26 : vector<1x72x128xbf16> to vector<72x128xbf16>
    %c640 = arith.constant 640 : index
    %c0_23 = arith.constant 0 : index
    %28 = vector.load %arg2[%c640, %c0_23] : memref<1152x128xbf16, #tpu.memory_space<vmem>>, vector<128x128xbf16>
    %cst_24 = arith.constant dense<0.000000e+00> : vector<72x128xf32>
    %29 = tpu.matmul %27, %28, %cst_24 {dimension_numbers = #tpu.dot_dimension_numbers<[1], [0], [0], [1], [0, 0, 1, 1], [], []>} : vector<72x128xbf16>, vector<128x128xbf16>, vector<72x128xf32> -> vector<72x128xf32>
    %30 = arith.addf %25, %29 : vector<72x128xf32>
    %c0_25 = arith.constant 0 : index
    %c9 = arith.constant 9 : index
    %c0_26 = arith.constant 0 : index
    %31 = vector.load %arg1[%c0_25, %c9, %c0_26] : memref<1x328x128xbf16, #tpu.memory_space<vmem>>, vector<1x72x128xbf16>
    %32 = vector.shape_cast %31 : vector<1x72x128xbf16> to vector<72x128xbf16>
    %c768 = arith.constant 768 : index
    %c0_27 = arith.constant 0 : index
    %33 = vector.load %arg2[%c768, %c0_27] : memref<1152x128xbf16, #tpu.memory_space<vmem>>, vector<128x128xbf16>
    %cst_28 = arith.constant dense<0.000000e+00> : vector<72x128xf32>
    %34 = tpu.matmul %32, %33, %cst_28 {dimension_numbers = #tpu.dot_dimension_numbers<[1], [0], [0], [1], [0, 0, 1, 1], [], []>} : vector<72x128xbf16>, vector<128x128xbf16>, vector<72x128xf32> -> vector<72x128xf32>
    %35 = arith.addf %30, %34 : vector<72x128xf32>
    %c0_29 = arith.constant 0 : index
    %c90 = arith.constant 90 : index
    %c0_30 = arith.constant 0 : index
    %36 = vector.load %arg1[%c0_29, %c90, %c0_30] : memref<1x328x128xbf16, #tpu.memory_space<vmem>>, vector<1x72x128xbf16>
    %37 = vector.shape_cast %36 : vector<1x72x128xbf16> to vector<72x128xbf16>
    %c896 = arith.constant 896 : index
    %c0_31 = arith.constant 0 : index
    %38 = vector.load %arg2[%c896, %c0_31] : memref<1152x128xbf16, #tpu.memory_space<vmem>>, vector<128x128xbf16>
    %cst_32 = arith.constant dense<0.000000e+00> : vector<72x128xf32>
    %39 = tpu.matmul %37, %38, %cst_32 {dimension_numbers = #tpu.dot_dimension_numbers<[1], [0], [0], [1], [0, 0, 1, 1], [], []>} : vector<72x128xbf16>, vector<128x128xbf16>, vector<72x128xf32> -> vector<72x128xf32>
    %40 = arith.addf %35, %39 : vector<72x128xf32>
    %c0_33 = arith.constant 0 : index
    %c10 = arith.constant 10 : index
    %c0_34 = arith.constant 0 : index
    %41 = vector.load %arg1[%c0_33, %c10, %c0_34] : memref<1x328x128xbf16, #tpu.memory_space<vmem>>, vector<1x72x128xbf16>
    %42 = vector.shape_cast %41 : vector<1x72x128xbf16> to vector<72x128xbf16>
    %c1024 = arith.constant 1024 : index
    %c0_35 = arith.constant 0 : index
    %43 = vector.load %arg2[%c1024, %c0_35] : memref<1152x128xbf16, #tpu.memory_space<vmem>>, vector<128x128xbf16>
    %cst_36 = arith.constant dense<0.000000e+00> : vector<72x128xf32>
    %44 = tpu.matmul %42, %43, %cst_36 {dimension_numbers = #tpu.dot_dimension_numbers<[1], [0], [0], [1], [0, 0, 1, 1], [], []>} : vector<72x128xbf16>, vector<128x128xbf16>, vector<72x128xf32> -> vector<72x128xf32>
    %45 = arith.addf %40, %44 : vector<72x128xf32>
    %c0_37 = arith.constant 0 : index
    %c0_38 = arith.constant 0 : index
    %46 = vector.load %arg3[%c0_37, %c0_38] : memref<1x128xf32, #tpu.memory_space<vmem>>, vector<1x128xf32>
    %47 = vector.broadcast %46 : vector<1x128xf32> to vector<72x128xf32>
    %48 = arith.addf %45, %47 : vector<72x128xf32>
    %49 = arith.mulf %48, %48 : vector<72x128xf32>
    %50 = arith.mulf %48, %49 : vector<72x128xf32>
    %cst_39 = arith.constant 4.471500e-02 : f32
    %51 = vector.broadcast %cst_39 : f32 to vector<72x128xf32>
    %52 = arith.mulf %51, %50 : vector<72x128xf32>
    %53 = arith.addf %48, %52 : vector<72x128xf32>
    %cst_40 = arith.constant 0.797884583 : f32
    %54 = vector.broadcast %cst_40 : f32 to vector<72x128xf32>
    %55 = arith.mulf %54, %53 : vector<72x128xf32>
    %56 = math.tanh %55 : vector<72x128xf32>
    %cst_41 = arith.constant 1.000000e+00 : f32
    %57 = vector.broadcast %cst_41 : f32 to vector<72x128xf32>
    %58 = arith.addf %57, %56 : vector<72x128xf32>
    %cst_42 = arith.constant 5.000000e-01 : f32
    %59 = vector.broadcast %cst_42 : f32 to vector<72x128xf32>
    %60 = arith.mulf %59, %58 : vector<72x128xf32>
    %61 = arith.mulf %48, %60 : vector<72x128xf32>
    %cst_43 = arith.constant 1.70150435 : f32
    %62 = vector.broadcast %cst_43 : f32 to vector<72x128xf32>
    %63 = arith.mulf %61, %62 : vector<72x128xf32>
    %64 = arith.truncf %63 : vector<72x128xf32> to vector<72x128xbf16>
    %c0_44 = arith.constant 0 : index
    %c0_45 = arith.constant 0 : index
    %c0_46 = arith.constant 0 : index
    %65 = vector.load %arg4[%c0_44, %c0_45, %c0_46] : memref<1x72x128xbf16, #tpu.memory_space<vmem>>, vector<1x72x128xbf16>
    %66 = vector.shape_cast %65 : vector<1x72x128xbf16> to vector<72x128xbf16>
    %67 = vector.shape_cast %64 : vector<72x128xbf16> to vector<1x72x128xbf16>
    tpu.vector_store %arg4[%c0_44, %c0_45, %c0_46], %67 {strides = array<i32>} : memref<1x72x128xbf16, #tpu.memory_space<vmem>>, vector<1x72x128xbf16>,
    return
  }
  func.func @transform_0(%arg0: i32) -> (i32, i32, i32) {
    %c0_i32 = arith.constant 0 : i32
    %c0_i32_0 = arith.constant 0 : i32
    %c0_i32_1 = arith.constant 0 : i32
    return %arg0, %c0_i32, %c0_i32_0 : i32, i32, i32
  }
  func.func @transform_1(%arg0: i32) -> (i32, i32) {
    %c0_i32 = arith.constant 0 : i32
    %c0_i32_0 = arith.constant 0 : i32
    %c0_i32_1 = arith.constant 0 : i32
    return %c0_i32, %c0_i32_0 : i32, i32
  }
  func.func @transform_2(%arg0: i32) -> (i32, i32) {
    %c0_i32 = arith.constant 0 : i32
    %c0_i32_0 = arith.constant 0 : i32
    %c0_i32_1 = arith.constant 0 : i32
    return %c0_i32, %c0_i32_0 : i32, i32
  }
  func.func @transform_3(%arg0: i32) -> (i32, i32, i32) {
    %c0_i32 = arith.constant 0 : i32
    %c0_i32_0 = arith.constant 0 : i32
    %c0_i32_1 = arith.constant 0 : i32
    return %arg0, %c0_i32, %c0_i32_0 : i32, i32, i32
  }
}

module attributes {stable_mosaic.version = 11 : i64} {
  func.func @_conv3x3_kernel(%arg0: i32, %arg1: memref<1x104x128xbf16, #tpu.memory_space<vmem>>, %arg2: memref<1152x128xbf16, #tpu.memory_space<vmem>>, %arg3: memref<1x128xf32, #tpu.memory_space<vmem>>, %arg4: memref<1x80x128xbf16, #tpu.memory_space<vmem>>) attributes {dimension_semantics = [#tpu.dimension_semantics<parallel>], iteration_bounds = array<i64: 2>, scalar_prefetch = 0 : i64, scratch_operands = 0 : i64, tpu.core_type = #tpu.core_type<tc>, window_params = [{transform_indices = @transform_0, window_bounds = array<i64: 1, 104, 128>}, {pipeline_mode = #tpu.pipeline_mode<synchronous>, transform_indices = @transform_1, window_bounds = array<i64: 1152, 128>}, {pipeline_mode = #tpu.pipeline_mode<synchronous>, transform_indices = @transform_2, window_bounds = array<i64: 1, 128>}, {transform_indices = @transform_3, window_bounds = array<i64: 1, 80, 128>}]} {
    %cst = arith.constant 0.000000e+00 : f32
    %0 = vector.broadcast %cst : f32 to vector<80x128xf32>
    %c0 = arith.constant 0 : index
    %c0_0 = arith.constant 0 : index
    %c0_1 = arith.constant 0 : index
    %1 = vector.load %arg1[%c0, %c0_0, %c0_1] : memref<1x104x128xbf16, #tpu.memory_space<vmem>>, vector<1x80x128xbf16>
    %2 = vector.shape_cast %1 : vector<1x80x128xbf16> to vector<80x128xbf16>
    %c0_2 = arith.constant 0 : index
    %c0_3 = arith.constant 0 : index
    %3 = vector.load %arg2[%c0_2, %c0_3] : memref<1152x128xbf16, #tpu.memory_space<vmem>>, vector<128x128xbf16>
    %cst_4 = arith.constant dense<0.000000e+00> : vector<80x128xf32>
    %4 = tpu.matmul %2, %3, %cst_4 {dimension_numbers = #tpu.dot_dimension_numbers<[1], [0], [0], [1], [0, 0, 1, 1], [], []>} : vector<80x128xbf16>, vector<128x128xbf16>, vector<80x128xf32> -> vector<80x128xf32>
    %5 = arith.addf %0, %4 : vector<80x128xf32>
    %c0_5 = arith.constant 0 : index
    %c1 = arith.constant 1 : index
    %c0_6 = arith.constant 0 : index
    %6 = vector.load %arg1[%c0_5, %c1, %c0_6] : memref<1x104x128xbf16, #tpu.memory_space<vmem>>, vector<1x80x128xbf16>
    %7 = vector.shape_cast %6 : vector<1x80x128xbf16> to vector<80x128xbf16>
    %c128 = arith.constant 128 : index
    %c0_7 = arith.constant 0 : index
    %8 = vector.load %arg2[%c128, %c0_7] : memref<1152x128xbf16, #tpu.memory_space<vmem>>, vector<128x128xbf16>
    %cst_8 = arith.constant dense<0.000000e+00> : vector<80x128xf32>
    %9 = tpu.matmul %7, %8, %cst_8 {dimension_numbers = #tpu.dot_dimension_numbers<[1], [0], [0], [1], [0, 0, 1, 1], [], []>} : vector<80x128xbf16>, vector<128x128xbf16>, vector<80x128xf32> -> vector<80x128xf32>
    %10 = arith.addf %5, %9 : vector<80x128xf32>
    %c0_9 = arith.constant 0 : index
    %c2 = arith.constant 2 : index
    %c0_10 = arith.constant 0 : index
    %11 = vector.load %arg1[%c0_9, %c2, %c0_10] : memref<1x104x128xbf16, #tpu.memory_space<vmem>>, vector<1x80x128xbf16>
    %12 = vector.shape_cast %11 : vector<1x80x128xbf16> to vector<80x128xbf16>
    %c256 = arith.constant 256 : index
    %c0_11 = arith.constant 0 : index
    %13 = vector.load %arg2[%c256, %c0_11] : memref<1152x128xbf16, #tpu.memory_space<vmem>>, vector<128x128xbf16>
    %cst_12 = arith.constant dense<0.000000e+00> : vector<80x128xf32>
    %14 = tpu.matmul %12, %13, %cst_12 {dimension_numbers = #tpu.dot_dimension_numbers<[1], [0], [0], [1], [0, 0, 1, 1], [], []>} : vector<80x128xbf16>, vector<128x128xbf16>, vector<80x128xf32> -> vector<80x128xf32>
    %15 = arith.addf %10, %14 : vector<80x128xf32>
    %c0_13 = arith.constant 0 : index
    %c10 = arith.constant 10 : index
    %c0_14 = arith.constant 0 : index
    %16 = vector.load %arg1[%c0_13, %c10, %c0_14] : memref<1x104x128xbf16, #tpu.memory_space<vmem>>, vector<1x80x128xbf16>
    %17 = vector.shape_cast %16 : vector<1x80x128xbf16> to vector<80x128xbf16>
    %c384 = arith.constant 384 : index
    %c0_15 = arith.constant 0 : index
    %18 = vector.load %arg2[%c384, %c0_15] : memref<1152x128xbf16, #tpu.memory_space<vmem>>, vector<128x128xbf16>
    %cst_16 = arith.constant dense<0.000000e+00> : vector<80x128xf32>
    %19 = tpu.matmul %17, %18, %cst_16 {dimension_numbers = #tpu.dot_dimension_numbers<[1], [0], [0], [1], [0, 0, 1, 1], [], []>} : vector<80x128xbf16>, vector<128x128xbf16>, vector<80x128xf32> -> vector<80x128xf32>
    %20 = arith.addf %15, %19 : vector<80x128xf32>
    %c0_17 = arith.constant 0 : index
    %c11 = arith.constant 11 : index
    %c0_18 = arith.constant 0 : index
    %21 = vector.load %arg1[%c0_17, %c11, %c0_18] : memref<1x104x128xbf16, #tpu.memory_space<vmem>>, vector<1x80x128xbf16>
    %22 = vector.shape_cast %21 : vector<1x80x128xbf16> to vector<80x128xbf16>
    %c512 = arith.constant 512 : index
    %c0_19 = arith.constant 0 : index
    %23 = vector.load %arg2[%c512, %c0_19] : memref<1152x128xbf16, #tpu.memory_space<vmem>>, vector<128x128xbf16>
    %cst_20 = arith.constant dense<0.000000e+00> : vector<80x128xf32>
    %24 = tpu.matmul %22, %23, %cst_20 {dimension_numbers = #tpu.dot_dimension_numbers<[1], [0], [0], [1], [0, 0, 1, 1], [], []>} : vector<80x128xbf16>, vector<128x128xbf16>, vector<80x128xf32> -> vector<80x128xf32>
    %25 = arith.addf %20, %24 : vector<80x128xf32>
    %c0_21 = arith.constant 0 : index
    %c12 = arith.constant 12 : index
    %c0_22 = arith.constant 0 : index
    %26 = vector.load %arg1[%c0_21, %c12, %c0_22] : memref<1x104x128xbf16, #tpu.memory_space<vmem>>, vector<1x80x128xbf16>
    %27 = vector.shape_cast %26 : vector<1x80x128xbf16> to vector<80x128xbf16>
    %c640 = arith.constant 640 : index
    %c0_23 = arith.constant 0 : index
    %28 = vector.load %arg2[%c640, %c0_23] : memref<1152x128xbf16, #tpu.memory_space<vmem>>, vector<128x128xbf16>
    %cst_24 = arith.constant dense<0.000000e+00> : vector<80x128xf32>
    %29 = tpu.matmul %27, %28, %cst_24 {dimension_numbers = #tpu.dot_dimension_numbers<[1], [0], [0], [1], [0, 0, 1, 1], [], []>} : vector<80x128xbf16>, vector<128x128xbf16>, vector<80x128xf32> -> vector<80x128xf32>
    %30 = arith.addf %25, %29 : vector<80x128xf32>
    %c0_25 = arith.constant 0 : index
    %c20 = arith.constant 20 : index
    %c0_26 = arith.constant 0 : index
    %31 = vector.load %arg1[%c0_25, %c20, %c0_26] : memref<1x104x128xbf16, #tpu.memory_space<vmem>>, vector<1x80x128xbf16>
    %32 = vector.shape_cast %31 : vector<1x80x128xbf16> to vector<80x128xbf16>
    %c768 = arith.constant 768 : index
    %c0_27 = arith.constant 0 : index
    %33 = vector.load %arg2[%c768, %c0_27] : memref<1152x128xbf16, #tpu.memory_space<vmem>>, vector<128x128xbf16>
    %cst_28 = arith.constant dense<0.000000e+00> : vector<80x128xf32>
    %34 = tpu.matmul %32, %33, %cst_28 {dimension_numbers = #tpu.dot_dimension_numbers<[1], [0], [0], [1], [0, 0, 1, 1], [], []>} : vector<80x128xbf16>, vector<128x128xbf16>, vector<80x128xf32> -> vector<80x128xf32>
    %35 = arith.addf %30, %34 : vector<80x128xf32>
    %c0_29 = arith.constant 0 : index
    %c21 = arith.constant 21 : index
    %c0_30 = arith.constant 0 : index
    %36 = vector.load %arg1[%c0_29, %c21, %c0_30] : memref<1x104x128xbf16, #tpu.memory_space<vmem>>, vector<1x80x128xbf16>
    %37 = vector.shape_cast %36 : vector<1x80x128xbf16> to vector<80x128xbf16>
    %c896 = arith.constant 896 : index
    %c0_31 = arith.constant 0 : index
    %38 = vector.load %arg2[%c896, %c0_31] : memref<1152x128xbf16, #tpu.memory_space<vmem>>, vector<128x128xbf16>
    %cst_32 = arith.constant dense<0.000000e+00> : vector<80x128xf32>
    %39 = tpu.matmul %37, %38, %cst_32 {dimension_numbers = #tpu.dot_dimension_numbers<[1], [0], [0], [1], [0, 0, 1, 1], [], []>} : vector<80x128xbf16>, vector<128x128xbf16>, vector<80x128xf32> -> vector<80x128xf32>
    %40 = arith.addf %35, %39 : vector<80x128xf32>
    %c0_33 = arith.constant 0 : index
    %c22 = arith.constant 22 : index
    %c0_34 = arith.constant 0 : index
    %41 = vector.load %arg1[%c0_33, %c22, %c0_34] : memref<1x104x128xbf16, #tpu.memory_space<vmem>>, vector<1x80x128xbf16>
    %42 = vector.shape_cast %41 : vector<1x80x128xbf16> to vector<80x128xbf16>
    %c1024 = arith.constant 1024 : index
    %c0_35 = arith.constant 0 : index
    %43 = vector.load %arg2[%c1024, %c0_35] : memref<1152x128xbf16, #tpu.memory_space<vmem>>, vector<128x128xbf16>
    %cst_36 = arith.constant dense<0.000000e+00> : vector<80x128xf32>
    %44 = tpu.matmul %42, %43, %cst_36 {dimension_numbers = #tpu.dot_dimension_numbers<[1], [0], [0], [1], [0, 0, 1, 1], [], []>} : vector<80x128xbf16>, vector<128x128xbf16>, vector<80x128xf32> -> vector<80x128xf32>
    %45 = arith.addf %40, %44 : vector<80x128xf32>
    %c0_37 = arith.constant 0 : index
    %c0_38 = arith.constant 0 : index
    %46 = vector.load %arg3[%c0_37, %c0_38] : memref<1x128xf32, #tpu.memory_space<vmem>>, vector<1x128xf32>
    %47 = vector.broadcast %46 : vector<1x128xf32> to vector<80x128xf32>
    %48 = arith.addf %45, %47 : vector<80x128xf32>
    %49 = arith.mulf %48, %48 : vector<80x128xf32>
    %50 = arith.mulf %48, %49 : vector<80x128xf32>
    %cst_39 = arith.constant 4.471500e-02 : f32
    %51 = vector.broadcast %cst_39 : f32 to vector<80x128xf32>
    %52 = arith.mulf %51, %50 : vector<80x128xf32>
    %53 = arith.addf %48, %52 : vector<80x128xf32>
    %cst_40 = arith.constant 0.797884583 : f32
    %54 = vector.broadcast %cst_40 : f32 to vector<80x128xf32>
    %55 = arith.mulf %54, %53 : vector<80x128xf32>
    %56 = math.tanh %55 : vector<80x128xf32>
    %cst_41 = arith.constant 1.000000e+00 : f32
    %57 = vector.broadcast %cst_41 : f32 to vector<80x128xf32>
    %58 = arith.addf %57, %56 : vector<80x128xf32>
    %cst_42 = arith.constant 5.000000e-01 : f32
    %59 = vector.broadcast %cst_42 : f32 to vector<80x128xf32>
    %60 = arith.mulf %59, %58 : vector<80x128xf32>
    %61 = arith.mulf %48, %60 : vector<80x128xf32>
    %cst_43 = arith.constant 1.70150435 : f32
    %62 = vector.broadcast %cst_43 : f32 to vector<80x128xf32>
    %63 = arith.mulf %61, %62 : vector<80x128xf32>
    %64 = arith.truncf %63 : vector<80x128xf32> to vector<80x128xbf16>
    %c0_44 = arith.constant 0 : index
    %c0_45 = arith.constant 0 : index
    %c0_46 = arith.constant 0 : index
    %65 = vector.load %arg4[%c0_44, %c0_45, %c0_46] : memref<1x80x128xbf16, #tpu.memory_space<vmem>>, vector<1x80x128xbf16>
    %66 = vector.shape_cast %65 : vector<1x80x128xbf16> to vector<80x128xbf16>
    %67 = vector.shape_cast %64 : vector<80x128xbf16> to vector<1x80x128xbf16>
    tpu.vector_store %arg4[%c0_44, %c0_45, %c0_46], %67 {strides = array<i32>} : memref<1x80x128xbf16, #tpu.memory_space<vmem>>, vector<1x80x128xbf16>,
    return
  }
  func.func @transform_0(%arg0: i32) -> (i32, i32, i32) {
    %c0_i32 = arith.constant 0 : i32
    %c0_i32_0 = arith.constant 0 : i32
    %c0_i32_1 = arith.constant 0 : i32
    return %arg0, %c0_i32, %c0_i32_0 : i32, i32, i32
  }
  func.func @transform_1(%arg0: i32) -> (i32, i32) {
    %c0_i32 = arith.constant 0 : i32
    %c0_i32_0 = arith.constant 0 : i32
    %c0_i32_1 = arith.constant 0 : i32
    return %c0_i32, %c0_i32_0 : i32, i32
  }
  func.func @transform_2(%arg0: i32) -> (i32, i32) {
    %c0_i32 = arith.constant 0 : i32
    %c0_i32_0 = arith.constant 0 : i32
    %c0_i32_1 = arith.constant 0 : i32
    return %c0_i32, %c0_i32_0 : i32, i32
  }
  func.func @transform_3(%arg0: i32) -> (i32, i32, i32) {
    %c0_i32 = arith.constant 0 : i32
    %c0_i32_0 = arith.constant 0 : i32
    %c0_i32_1 = arith.constant 0 : i32
    return %arg0, %c0_i32, %c0_i32_0 : i32, i32, i32
  }
}

module attributes {stable_mosaic.version = 11 : i64} {
  func.func @_conv3x3_kernel(%arg0: i32, %arg1: memref<1x104x128xbf16, #tpu.memory_space<vmem>>, %arg2: memref<1152x128xbf16, #tpu.memory_space<vmem>>, %arg3: memref<1x128xf32, #tpu.memory_space<vmem>>, %arg4: memref<1x20x128xf32, #tpu.memory_space<vmem>>) attributes {dimension_semantics = [#tpu.dimension_semantics<parallel>], iteration_bounds = array<i64: 2>, scalar_prefetch = 0 : i64, scratch_operands = 0 : i64, tpu.core_type = #tpu.core_type<tc>, window_params = [{transform_indices = @transform_0, window_bounds = array<i64: 1, 104, 128>}, {pipeline_mode = #tpu.pipeline_mode<synchronous>, transform_indices = @transform_1, window_bounds = array<i64: 1152, 128>}, {pipeline_mode = #tpu.pipeline_mode<synchronous>, transform_indices = @transform_2, window_bounds = array<i64: 1, 128>}, {transform_indices = @transform_3, window_bounds = array<i64: 1, 20, 128>}]} {
    %cst = arith.constant 0.000000e+00 : f32
    %0 = vector.broadcast %cst : f32 to vector<20x128xf32>
    %c0 = arith.constant 0 : index
    %c0_0 = arith.constant 0 : index
    %c0_1 = arith.constant 0 : index
    %1 = vector.load %arg1[%c0, %c0_0, %c0_1] : memref<1x104x128xbf16, #tpu.memory_space<vmem>>, vector<1x20x128xbf16>
    %2 = vector.shape_cast %1 : vector<1x20x128xbf16> to vector<20x128xbf16>
    %c0_2 = arith.constant 0 : index
    %c0_3 = arith.constant 0 : index
    %3 = vector.load %arg2[%c0_2, %c0_3] : memref<1152x128xbf16, #tpu.memory_space<vmem>>, vector<128x128xbf16>
    %cst_4 = arith.constant dense<0.000000e+00> : vector<20x128xf32>
    %4 = tpu.matmul %2, %3, %cst_4 {dimension_numbers = #tpu.dot_dimension_numbers<[1], [0], [0], [1], [0, 0, 1, 1], [], []>} : vector<20x128xbf16>, vector<128x128xbf16>, vector<20x128xf32> -> vector<20x128xf32>
    %5 = arith.addf %0, %4 : vector<20x128xf32>
    %c0_5 = arith.constant 0 : index
    %c25 = arith.constant 25 : index
    %c0_6 = arith.constant 0 : index
    %6 = vector.load %arg1[%c0_5, %c25, %c0_6] : memref<1x104x128xbf16, #tpu.memory_space<vmem>>, vector<1x20x128xbf16>
    %7 = vector.shape_cast %6 : vector<1x20x128xbf16> to vector<20x128xbf16>
    %c128 = arith.constant 128 : index
    %c0_7 = arith.constant 0 : index
    %8 = vector.load %arg2[%c128, %c0_7] : memref<1152x128xbf16, #tpu.memory_space<vmem>>, vector<128x128xbf16>
    %cst_8 = arith.constant dense<0.000000e+00> : vector<20x128xf32>
    %9 = tpu.matmul %7, %8, %cst_8 {dimension_numbers = #tpu.dot_dimension_numbers<[1], [0], [0], [1], [0, 0, 1, 1], [], []>} : vector<20x128xbf16>, vector<128x128xbf16>, vector<20x128xf32> -> vector<20x128xf32>
    %10 = arith.addf %5, %9 : vector<20x128xf32>
    %c0_9 = arith.constant 0 : index
    %c1 = arith.constant 1 : index
    %c0_10 = arith.constant 0 : index
    %11 = vector.load %arg1[%c0_9, %c1, %c0_10] : memref<1x104x128xbf16, #tpu.memory_space<vmem>>, vector<1x20x128xbf16>
    %12 = vector.shape_cast %11 : vector<1x20x128xbf16> to vector<20x128xbf16>
    %c256 = arith.constant 256 : index
    %c0_11 = arith.constant 0 : index
    %13 = vector.load %arg2[%c256, %c0_11] : memref<1152x128xbf16, #tpu.memory_space<vmem>>, vector<128x128xbf16>
    %cst_12 = arith.constant dense<0.000000e+00> : vector<20x128xf32>
    %14 = tpu.matmul %12, %13, %cst_12 {dimension_numbers = #tpu.dot_dimension_numbers<[1], [0], [0], [1], [0, 0, 1, 1], [], []>} : vector<20x128xbf16>, vector<128x128xbf16>, vector<20x128xf32> -> vector<20x128xf32>
    %15 = arith.addf %10, %14 : vector<20x128xf32>
    %c0_13 = arith.constant 0 : index
    %c50 = arith.constant 50 : index
    %c0_14 = arith.constant 0 : index
    %16 = vector.load %arg1[%c0_13, %c50, %c0_14] : memref<1x104x128xbf16, #tpu.memory_space<vmem>>, vector<1x20x128xbf16>
    %17 = vector.shape_cast %16 : vector<1x20x128xbf16> to vector<20x128xbf16>
    %c384 = arith.constant 384 : index
    %c0_15 = arith.constant 0 : index
    %18 = vector.load %arg2[%c384, %c0_15] : memref<1152x128xbf16, #tpu.memory_space<vmem>>, vector<128x128xbf16>
    %cst_16 = arith.constant dense<0.000000e+00> : vector<20x128xf32>
    %19 = tpu.matmul %17, %18, %cst_16 {dimension_numbers = #tpu.dot_dimension_numbers<[1], [0], [0], [1], [0, 0, 1, 1], [], []>} : vector<20x128xbf16>, vector<128x128xbf16>, vector<20x128xf32> -> vector<20x128xf32>
    %20 = arith.addf %15, %19 : vector<20x128xf32>
    %c0_17 = arith.constant 0 : index
    %c75 = arith.constant 75 : index
    %c0_18 = arith.constant 0 : index
    %21 = vector.load %arg1[%c0_17, %c75, %c0_18] : memref<1x104x128xbf16, #tpu.memory_space<vmem>>, vector<1x20x128xbf16>
    %22 = vector.shape_cast %21 : vector<1x20x128xbf16> to vector<20x128xbf16>
    %c512 = arith.constant 512 : index
    %c0_19 = arith.constant 0 : index
    %23 = vector.load %arg2[%c512, %c0_19] : memref<1152x128xbf16, #tpu.memory_space<vmem>>, vector<128x128xbf16>
    %cst_20 = arith.constant dense<0.000000e+00> : vector<20x128xf32>
    %24 = tpu.matmul %22, %23, %cst_20 {dimension_numbers = #tpu.dot_dimension_numbers<[1], [0], [0], [1], [0, 0, 1, 1], [], []>} : vector<20x128xbf16>, vector<128x128xbf16>, vector<20x128xf32> -> vector<20x128xf32>
    %25 = arith.addf %20, %24 : vector<20x128xf32>
    %c0_21 = arith.constant 0 : index
    %c51 = arith.constant 51 : index
    %c0_22 = arith.constant 0 : index
    %26 = vector.load %arg1[%c0_21, %c51, %c0_22] : memref<1x104x128xbf16, #tpu.memory_space<vmem>>, vector<1x20x128xbf16>
    %27 = vector.shape_cast %26 : vector<1x20x128xbf16> to vector<20x128xbf16>
    %c640 = arith.constant 640 : index
    %c0_23 = arith.constant 0 : index
    %28 = vector.load %arg2[%c640, %c0_23] : memref<1152x128xbf16, #tpu.memory_space<vmem>>, vector<128x128xbf16>
    %cst_24 = arith.constant dense<0.000000e+00> : vector<20x128xf32>
    %29 = tpu.matmul %27, %28, %cst_24 {dimension_numbers = #tpu.dot_dimension_numbers<[1], [0], [0], [1], [0, 0, 1, 1], [], []>} : vector<20x128xbf16>, vector<128x128xbf16>, vector<20x128xf32> -> vector<20x128xf32>
    %30 = arith.addf %25, %29 : vector<20x128xf32>
    %c0_25 = arith.constant 0 : index
    %c5 = arith.constant 5 : index
    %c0_26 = arith.constant 0 : index
    %31 = vector.load %arg1[%c0_25, %c5, %c0_26] : memref<1x104x128xbf16, #tpu.memory_space<vmem>>, vector<1x20x128xbf16>
    %32 = vector.shape_cast %31 : vector<1x20x128xbf16> to vector<20x128xbf16>
    %c768 = arith.constant 768 : index
    %c0_27 = arith.constant 0 : index
    %33 = vector.load %arg2[%c768, %c0_27] : memref<1152x128xbf16, #tpu.memory_space<vmem>>, vector<128x128xbf16>
    %cst_28 = arith.constant dense<0.000000e+00> : vector<20x128xf32>
    %34 = tpu.matmul %32, %33, %cst_28 {dimension_numbers = #tpu.dot_dimension_numbers<[1], [0], [0], [1], [0, 0, 1, 1], [], []>} : vector<20x128xbf16>, vector<128x128xbf16>, vector<20x128xf32> -> vector<20x128xf32>
    %35 = arith.addf %30, %34 : vector<20x128xf32>
    %c0_29 = arith.constant 0 : index
    %c30 = arith.constant 30 : index
    %c0_30 = arith.constant 0 : index
    %36 = vector.load %arg1[%c0_29, %c30, %c0_30] : memref<1x104x128xbf16, #tpu.memory_space<vmem>>, vector<1x20x128xbf16>
    %37 = vector.shape_cast %36 : vector<1x20x128xbf16> to vector<20x128xbf16>
    %c896 = arith.constant 896 : index
    %c0_31 = arith.constant 0 : index
    %38 = vector.load %arg2[%c896, %c0_31] : memref<1152x128xbf16, #tpu.memory_space<vmem>>, vector<128x128xbf16>
    %cst_32 = arith.constant dense<0.000000e+00> : vector<20x128xf32>
    %39 = tpu.matmul %37, %38, %cst_32 {dimension_numbers = #tpu.dot_dimension_numbers<[1], [0], [0], [1], [0, 0, 1, 1], [], []>} : vector<20x128xbf16>, vector<128x128xbf16>, vector<20x128xf32> -> vector<20x128xf32>
    %40 = arith.addf %35, %39 : vector<20x128xf32>
    %c0_33 = arith.constant 0 : index
    %c6 = arith.constant 6 : index
    %c0_34 = arith.constant 0 : index
    %41 = vector.load %arg1[%c0_33, %c6, %c0_34] : memref<1x104x128xbf16, #tpu.memory_space<vmem>>, vector<1x20x128xbf16>
    %42 = vector.shape_cast %41 : vector<1x20x128xbf16> to vector<20x128xbf16>
    %c1024 = arith.constant 1024 : index
    %c0_35 = arith.constant 0 : index
    %43 = vector.load %arg2[%c1024, %c0_35] : memref<1152x128xbf16, #tpu.memory_space<vmem>>, vector<128x128xbf16>
    %cst_36 = arith.constant dense<0.000000e+00> : vector<20x128xf32>
    %44 = tpu.matmul %42, %43, %cst_36 {dimension_numbers = #tpu.dot_dimension_numbers<[1], [0], [0], [1], [0, 0, 1, 1], [], []>} : vector<20x128xbf16>, vector<128x128xbf16>, vector<20x128xf32> -> vector<20x128xf32>
    %45 = arith.addf %40, %44 : vector<20x128xf32>
    %c0_37 = arith.constant 0 : index
    %c0_38 = arith.constant 0 : index
    %46 = vector.load %arg3[%c0_37, %c0_38] : memref<1x128xf32, #tpu.memory_space<vmem>>, vector<1x128xf32>
    %47 = vector.broadcast %46 : vector<1x128xf32> to vector<20x128xf32>
    %48 = arith.addf %45, %47 : vector<20x128xf32>
    %49 = arith.mulf %48, %48 : vector<20x128xf32>
    %50 = arith.mulf %48, %49 : vector<20x128xf32>
    %cst_39 = arith.constant 4.471500e-02 : f32
    %51 = vector.broadcast %cst_39 : f32 to vector<20x128xf32>
    %52 = arith.mulf %51, %50 : vector<20x128xf32>
    %53 = arith.addf %48, %52 : vector<20x128xf32>
    %cst_40 = arith.constant 0.797884583 : f32
    %54 = vector.broadcast %cst_40 : f32 to vector<20x128xf32>
    %55 = arith.mulf %54, %53 : vector<20x128xf32>
    %56 = math.tanh %55 : vector<20x128xf32>
    %cst_41 = arith.constant 1.000000e+00 : f32
    %57 = vector.broadcast %cst_41 : f32 to vector<20x128xf32>
    %58 = arith.addf %57, %56 : vector<20x128xf32>
    %cst_42 = arith.constant 5.000000e-01 : f32
    %59 = vector.broadcast %cst_42 : f32 to vector<20x128xf32>
    %60 = arith.mulf %59, %58 : vector<20x128xf32>
    %61 = arith.mulf %48, %60 : vector<20x128xf32>
    %cst_43 = arith.constant 1.70150435 : f32
    %62 = vector.broadcast %cst_43 : f32 to vector<20x128xf32>
    %63 = arith.mulf %61, %62 : vector<20x128xf32>
    %c0_44 = arith.constant 0 : index
    %c0_45 = arith.constant 0 : index
    %c0_46 = arith.constant 0 : index
    %64 = vector.load %arg4[%c0_44, %c0_45, %c0_46] : memref<1x20x128xf32, #tpu.memory_space<vmem>>, vector<1x20x128xf32>
    %65 = vector.shape_cast %64 : vector<1x20x128xf32> to vector<20x128xf32>
    %66 = vector.shape_cast %63 : vector<20x128xf32> to vector<1x20x128xf32>
    tpu.vector_store %arg4[%c0_44, %c0_45, %c0_46], %66 {strides = array<i32>} : memref<1x20x128xf32, #tpu.memory_space<vmem>>, vector<1x20x128xf32>,
    return
  }
  func.func @transform_0(%arg0: i32) -> (i32, i32, i32) {
    %c0_i32 = arith.constant 0 : i32
    %c0_i32_0 = arith.constant 0 : i32
    %c0_i32_1 = arith.constant 0 : i32
    return %arg0, %c0_i32, %c0_i32_0 : i32, i32, i32
  }
  func.func @transform_1(%arg0: i32) -> (i32, i32) {
    %c0_i32 = arith.constant 0 : i32
    %c0_i32_0 = arith.constant 0 : i32
    %c0_i32_1 = arith.constant 0 : i32
    return %c0_i32, %c0_i32_0 : i32, i32
  }
  func.func @transform_2(%arg0: i32) -> (i32, i32) {
    %c0_i32 = arith.constant 0 : i32
    %c0_i32_0 = arith.constant 0 : i32
    %c0_i32_1 = arith.constant 0 : i32
    return %c0_i32, %c0_i32_0 : i32, i32
  }
  func.func @transform_3(%arg0: i32) -> (i32, i32, i32) {
    %c0_i32 = arith.constant 0 : i32
    %c0_i32_0 = arith.constant 0 : i32
    %c0_i32_1 = arith.constant 0 : i32
    return %arg0, %c0_i32, %c0_i32_0 : i32, i32, i32
  }
}

</mosaic_0001>

<llo_original>
// kernel: _forward_impl.3
$region0: #{_forward_impl.3}
  #allocation0 [shape = 'u32[]', space=smem, size = 0x4, offset = 0x4, fixed_abs, tag = 'smem constant byte address 0x4 - core index']
  #allocation1 [shape = 'u32[144,128]{1,0:T(1,128)}', space=vmem, size = 0x12000, scoped, tag = 'internal scratch']
  %s0 = inlined_call_operand.vmem [shape: bf16[2,328,128], index: 0, kind: input, shape index: {}]
  %s1 = inlined_call_operand.vmem [shape: bf16[1152,128], index: 1, kind: input, shape index: {}]
  %s2 = inlined_call_operand.vmem [shape: f32[1,128], index: 2, kind: input, shape index: {}]
  %s3 = inlined_call_operand.vmem [shape: bf16[2,72,128], index: 3, kind: output, shape index: {}]
  %s4 = sld [smem:[#allocation0]]
  $region45: #{_forward_impl.3} parent=0
    _
  %s6 = ssub.s32 1, %s4
  %s7 = scalar_select 0, %s6, %s4
  loop: start=0, step=1, limit=4
  $region2: #{_forward_impl.3} parent=0 // loop_pre_header
    _
  $region3: #{_forward_impl.3} parent=0 // loop_header
    %s9 = sphi 0, %s13
    %p10 = scmp.ge.s32.totalorder %s9, 4
    %s19 = sphi 0, %s21
    %s22 = sphi 0, %s19
    %s23 = sphi 0, %s22
    %s39 = sphi 0, %s23
    %s43 = sphi 0, %s43
    %s45 = sphi 0, %s43
    %s46 = sphi 0, %s45
    %s60 = sphi 0, %s46
    %s64 = sphi 0, %s64
    %s66 = sphi 0, %s64
    %s67 = sphi 0, %s66
    %s81 = sphi 0, %s67
    %s87 = sphi 0, %s89
    %s90 = sphi 0, %s87
    %s91 = sphi 0, %s90
    %s107 = sphi 0, %s91
  $region4: #{_forward_impl.3} parent=0 // loop_header_branch
    %12 = sbr.rel (%p10) target = $region8
  $region5: #{_forward_impl.3} parent=0 // loop_body
    %s14 = ssub.s32 %s9, 1
    %s15 = ssub.s32 %s9, 2
    %s16 = sadd.s32 %s9, 1
    %s17 = ssub.s32 %s9, %s16
    %p18 = scmp.eq.s32.totalorder %s17, 0
    %s20 = sadd.s32 %s19, 1
    %s21 = scalar_select %p18, %s19, %s20
    %p24 = pneg %p18
    %p25 = scmp.eq.s32.totalorder %s9, 1
    %p26 = por %p24, %p25
    %p27 = scmp.ne.s32.totalorder %s19, %s22
    %p28 = scmp.eq.s32.totalorder %s9, 0
    %p29 = por %p27, %p28
    %p30 = scmp.ne.s32.totalorder %s19, %s22
    %p31 = scmp.eq.s32.totalorder %s14, 1
    %p32 = por %p30, %p31
    %p33 = scmp.ne.s32.totalorder %s22, %s23
    %p34 = scmp.eq.s32.totalorder %s14, 0
    %p35 = por %p33, %p34
    %p36 = scmp.ne.s32.totalorder %s22, %s23
    %p37 = scmp.eq.s32.totalorder %s15, 1
    %p38 = por %p36, %p37
    %p40 = scmp.ne.s32.totalorder %s23, %s39
    %p41 = scmp.eq.s32.totalorder %s15, 0
    %p42 = por %p40, %p41
    %s44 = sadd.s32 %s43, 1
    %p47 = scmp.eq.s32.totalorder %s9, 1
    %p48 = scmp.ne.s32.totalorder %s43, %s45
    %p49 = scmp.eq.s32.totalorder %s9, 0
    %p50 = por %p48, %p49
    %p51 = scmp.ne.s32.totalorder %s43, %s45
    %p52 = scmp.eq.s32.totalorder %s14, 1
    %p53 = por %p51, %p52
    %p54 = scmp.ne.s32.totalorder %s45, %s46
    %p55 = scmp.eq.s32.totalorder %s14, 0
    %p56 = por %p54, %p55
    %p57 = scmp.ne.s32.totalorder %s45, %s46
    %p58 = scmp.eq.s32.totalorder %s15, 1
    %p59 = por %p57, %p58
    %p61 = scmp.ne.s32.totalorder %s46, %s60
    %p62 = scmp.eq.s32.totalorder %s15, 0
    %p63 = por %p61, %p62
    %s65 = sadd.s32 %s64, 1
    %p68 = scmp.eq.s32.totalorder %s9, 1
    %p69 = scmp.ne.s32.totalorder %s64, %s66
    %p70 = scmp.eq.s32.totalorder %s9, 0
    %p71 = por %p69, %p70
    %p72 = scmp.ne.s32.totalorder %s64, %s66
    %p73 = scmp.eq.s32.totalorder %s14, 1
    %p74 = por %p72, %p73
    %p75 = scmp.ne.s32.totalorder %s66, %s67
    %p76 = scmp.eq.s32.totalorder %s14, 0
    %p77 = por %p75, %p76
    %p78 = scmp.ne.s32.totalorder %s66, %s67
    %p79 = scmp.eq.s32.totalorder %s15, 1
    %p80 = por %p78, %p79
    %p82 = scmp.ne.s32.totalorder %s67, %s81
    %p83 = scmp.eq.s32.totalorder %s15, 0
    %p84 = por %p82, %p83
    %s85 = ssub.s32 %s9, %s16
    %p86 = scmp.eq.s32.totalorder %s85, 0
    %s88 = sadd.s32 %s87, 1
    %s89 = scalar_select %p86, %s87, %s88
    %p92 = pneg %p86
    %p93 = scmp.eq.s32.totalorder %s9, 1
    %p94 = por %p92, %p93
    %p95 = scmp.ne.s32.totalorder %s87, %s90
    %p96 = scmp.eq.s32.totalorder %s9, 0
    %p97 = por %p95, %p96
    %p98 = scmp.ne.s32.totalorder %s87, %s90
    %p99 = scmp.eq.s32.totalorder %s14, 1
    %p100 = por %p98, %p99
    %p101 = scmp.ne.s32.totalorder %s90, %s91
    %p102 = scmp.eq.s32.totalorder %s14, 0
    %p103 = por %p101, %p102
    %p104 = scmp.ne.s32.totalorder %s90, %s91
    %p105 = scmp.eq.s32.totalorder %s15, 1
    %p106 = por %p104, %p105
    %p108 = scmp.ne.s32.totalorder %s91, %s107
    %p109 = scmp.eq.s32.totalorder %s15, 0
    %p110 = por %p108, %p109
    %p111 = scmp.le.s32.totalorder 1, %s9
    %p112 = scmp.lt.s32.totalorder %s9, 3
    %p113 = pnand %p111, %p112
    %p114 = pneg %p113
    // Predicated region
    $region9: #{_forward_impl.3} parent=5 // pred_check
      _
    $region10: #{_forward_impl.3} parent=5 // pred_check_branch
      %116 = sbr.rel (%p113) target = $region12
    $region11: #{_forward_impl.3} parent=5 // pred_region
      %s117 = ssub.s32 %s9, 1
      // Predicated region
      $region13: #{_forward_impl.3} parent=11 // pred_check
        %p118 = pneg %p56
      $region14: #{_forward_impl.3} parent=11 // pred_check_branch
        %120 = sbr.rel (%p118) target = $region16
      $region15: #{_forward_impl.3} parent=11 // pred_region
        _
      $region16: #{_forward_impl.3} parent=11 // pred_fallthru
        _
      // Predicated region
      $region17: #{_forward_impl.3} parent=11 // pred_check
        %p121 = pneg %p77
      $region18: #{_forward_impl.3} parent=11 // pred_check_branch
        %123 = sbr.rel (%p121) target = $region20
      $region19: #{_forward_impl.3} parent=11 // pred_region
        _
      $region20: #{_forward_impl.3} parent=11 // pred_fallthru
        _
    $region12: #{_forward_impl.3} parent=5 // pred_fallthru
      _
    %p124 = scmp.lt.s32.totalorder %s9, 2
    // Predicated region
    $region21: #{_forward_impl.3} parent=5 // pred_check
      %p125 = pneg %p124
    $region22: #{_forward_impl.3} parent=5 // pred_check_branch
      %127 = sbr.rel (%p125) target = $region24
    $region23: #{_forward_impl.3} parent=5 // pred_region
      // Predicated region
      $region25: #{_forward_impl.3} parent=23 // pred_check
        %p128 = pneg %p29
      $region26: #{_forward_impl.3} parent=23 // pred_check_branch
        %130 = sbr.rel (%p128) target = $region28
      $region27: #{_forward_impl.3} parent=23 // pred_region
        %p131 = scmp.lt.s32.totalorder %s9, 1
        %s132 = scalar_select %p131, %s9, 1
        %s133 = smul.addr %s132, 41
        %s134 = smul.addr %s133, 4
        %s135 = scalar_lea.vmem %s0, %s134
      $region28: #{_forward_impl.3} parent=23 // pred_fallthru
        _
    $region24: #{_forward_impl.3} parent=5 // pred_fallthru
      _
    %p136 = scmp.le.s32.totalorder 1, %s9
    %p137 = scmp.lt.s32.totalorder %s9, 3
    %p138 = pnand %p136, %p137
    %p139 = pneg %p138
    // Predicated region
    $region29: #{_forward_impl.3} parent=5 // pred_check
      _
    $region30: #{_forward_impl.3} parent=5 // pred_check_branch
      %141 = sbr.rel (%p138) target = $region32
    $region31: #{_forward_impl.3} parent=5 // pred_region
      %s142 = ssub.s32 %s9, 1
      %p143 = scmp.lt.s32.totalorder %s14, 1
      %s144 = scalar_select %p143, %s14, 1
      %s145 = smul.addr %s144, 41
      %s146 = smul.addr %s145, 4
      %s147 = scalar_lea.vmem %s0, %s146
      %p148 = pneg %p35
      %p149 = pneg %p32
      %p150 = pneg %p56
      %p151 = pneg %p53
      %p152 = pneg %p77
      %p153 = pneg %p74
      %p154 = pneg %p103
      %p155 = pneg %p100
      %p156 = scmp.lt.s32.totalorder %s14, 1
      %s157 = scalar_select %p156, %s14, 1
      %s158 = smul.addr %s157, 9
      %s159 = smul.addr %s158, 4
      %s160 = scalar_lea.vmem %s3, %s159
      %p161 = scmp.lt.s32.totalorder %s14, 1
      %s162 = scalar_select %p161, %s14, 1
      %s163 = smul.addr %s162, 41
      %s164 = smul.addr %s163, 4
      %s165 = scalar_lea.vmem %s0, %s164
      %p166 = scmp.lt.s32.totalorder %s14, 1
      %s167 = scalar_select %p166, %s14, 1
      %s168 = smul.addr %s167, 9
      %s169 = smul.addr %s168, 4
      %s170 = scalar_lea.vmem %s3, %s169
      %v172 = vld [vmem:[%s165] sm:$0xf]
      %v173 = vld [vmem:[%s165 + $0x4] sm:$0xf]
      %v174 = vld [vmem:[%s165 + $0x8] sm:$0xf]
      %v175 = vld [vmem:[%s165 + $0xc] sm:$0xf]
      %v176 = vld [vmem:[%s165 + $0x10] sm:$0xf]
      %v177 = vld [vmem:[%s165 + $0x14] sm:$0xf]
      %v178 = vld [vmem:[%s165 + $0x18] sm:$0xf]
      %v179 = vld [vmem:[%s165 + $0x1c] sm:$0xf]
      %v180 = vld [vmem:[%s165 + $0x20] sm:$0xf]
      %v181 = vld [vmem:[%s1] sm:$0xf]
      %v182 = vld [vmem:[%s1 + $0x4] sm:$0xf]
      %v183 = vld [vmem:[%s1 + $0x8] sm:$0xf]
      %v184 = vld [vmem:[%s1 + $0xc] sm:$0xf]
      %v185 = vld [vmem:[%s1 + $0x10] sm:$0xf]
      %v186 = vld [vmem:[%s1 + $0x14] sm:$0xf]
      %v187 = vld [vmem:[%s1 + $0x18] sm:$0xf]
      %v188 = vld [vmem:[%s1 + $0x1c] sm:$0xf]
      %v189 = vld [vmem:[%s1 + $0x20] sm:$0xf]
      %v190 = vld [vmem:[%s1 + $0x24] sm:$0xf]
      %v191 = vld [vmem:[%s1 + $0x28] sm:$0xf]
      %v192 = vld [vmem:[%s1 + $0x2c] sm:$0xf]
      %v193 = vld [vmem:[%s1 + $0x30] sm:$0xf]
      %v194 = vld [vmem:[%s1 + $0x34] sm:$0xf]
      %v195 = vld [vmem:[%s1 + $0x38] sm:$0xf]
      %v196 = vld [vmem:[%s1 + $0x3c] sm:$0xf]
      %v197 = vld [vmem:[%s165 + $0x28] sm:$0xf]
      %v198 = vld [vmem:[%s165 + $0x2c] sm:$0xf]
      %v199 = vld [vmem:[%s165 + $0x30] sm:$0xf]
      %v200 = vld [vmem:[%s165 + $0x34] sm:$0xf]
      %v201 = vld [vmem:[%s165 + $0x38] sm:$0xf]
      %v202 = vld [vmem:[%s165 + $0x3c] sm:$0xf]
      %v203 = vld [vmem:[%s165 + $0x40] sm:$0xf]
      %v204 = vld [vmem:[%s165 + $0x44] sm:$0xf]
      %v205 = vld [vmem:[%s165 + $0x48] sm:$0xf]
      %v206 = vld [vmem:[%s165 + $0x4c] sm:$0x1]
      %v207 = vld [vmem:[%s1 + $0x40] sm:$0xf]
      %v208 = vld [vmem:[%s1 + $0x44] sm:$0xf]
      %v209 = vld [vmem:[%s1 + $0x48] sm:$0xf]
      %v210 = vld [vmem:[%s1 + $0x4c] sm:$0xf]
      %v211 = vld [vmem:[%s1 + $0x50] sm:$0xf]
      %v212 = vld [vmem:[%s1 + $0x54] sm:$0xf]
      %v213 = vld [vmem:[%s1 + $0x58] sm:$0xf]
      %v214 = vld [vmem:[%s1 + $0x5c] sm:$0xf]
      %v215 = vld [vmem:[%s1 + $0x60] sm:$0xf]
      %v216 = vld [vmem:[%s1 + $0x64] sm:$0xf]
      %v217 = vld [vmem:[%s1 + $0x68] sm:$0xf]
      %v218 = vld [vmem:[%s1 + $0x6c] sm:$0xf]
      %v219 = vld [vmem:[%s1 + $0x70] sm:$0xf]
      %v220 = vld [vmem:[%s1 + $0x74] sm:$0xf]
      %v221 = vld [vmem:[%s1 + $0x78] sm:$0xf]
      %v222 = vld [vmem:[%s1 + $0x7c] sm:$0xf]
      %v233 = vunpack.c.l.b16 %v197
      %v234 = vunpack.c.l.b16 %v198
      %v235 = vunpack.c.l.b16 %v199
      %v236 = vunpack.c.l.b16 %v200
      %v237 = vunpack.c.l.b16 %v201
      %v238 = vunpack.c.l.b16 %v202
      %v239 = vunpack.c.l.b16 %v203
      %v240 = vunpack.c.l.b16 %v204
      %v241 = vunpack.c.l.b16 %v205
      %v242 = vunpack.c.l.b16 %v206
      %v243 = vpack.c.b16 %v234, %v233
      %v244 = vpack.c.b16 %v236, %v235
      %v245 = vpack.c.b16 %v238, %v237
      %v246 = vpack.c.b16 %v240, %v239
      %v247 = vpack.c.b16 %v242, %v241
      %vm248 = vsmask.f32 7424
      %v250 = vshrl.u32 %v243, 16
      %v252 = vshll.u32 %v243, 16
      %v254 = vrot.slane %v252, 1
      %v255 = vor.u32 %v250, %v254
      %v257 = vshll.u32 %v244, 16
      %v259 = vrot.slane %v257, 1
      %v260 = vsel %vm248, %v255, %v259
      %v261 = vshrl.u32 %v244, 16
      %v263 = vor.u32 %v261, %v259
      %v265 = vshll.u32 %v245, 16
      %v267 = vrot.slane %v265, 1
      %v268 = vsel %vm248, %v263, %v267
      %v269 = vshrl.u32 %v245, 16
      %v271 = vor.u32 %v269, %v267
      %v273 = vshll.u32 %v246, 16
      %v275 = vrot.slane %v273, 1
      %v276 = vsel %vm248, %v271, %v275
      %v277 = vshrl.u32 %v246, 16
      %v279 = vor.u32 %v277, %v275
      %v281 = vshll.u32 %v247, 16
      %v283 = vrot.slane %v281, 1
      %v284 = vsel %vm248, %v279, %v283
      %v285 = vshrl.u32 %v247, 16
      %v287 = vor.u32 %v285, %v283
      %v309 = vunpack.c.l.b16 %v207
      %v310 = vunpack.c.l.b16 %v208
      %v311 = vunpack.c.l.b16 %v209
      %v312 = vunpack.c.l.b16 %v210
      %v313 = vunpack.c.l.b16 %v211
      %v314 = vunpack.c.l.b16 %v212
      %v315 = vunpack.c.l.b16 %v213
      %v316 = vunpack.c.l.b16 %v214
      %v317 = vunpack.c.l.b16 %v215
      %v318 = vunpack.c.l.b16 %v216
      %v319 = vunpack.c.l.b16 %v217
      %v320 = vunpack.c.l.b16 %v218
      %v321 = vunpack.c.l.b16 %v219
      %v322 = vunpack.c.l.b16 %v220
      %v323 = vunpack.c.l.b16 %v221
      %v324 = vunpack.c.l.b16 %v222
      %v325 = vpack.c.b16 %v310, %v309
      %v326 = vpack.c.b16 %v312, %v311
      %v327 = vpack.c.b16 %v314, %v313
      %v328 = vpack.c.b16 %v316, %v315
      %v329 = vpack.c.b16 %v318, %v317
      %v330 = vpack.c.b16 %v320, %v319
      %v331 = vpack.c.b16 %v322, %v321
      %v332 = vpack.c.b16 %v324, %v323
      %341 = vmatprep.subr.bf16.mxu0 0
      %342 = vmatpush1.bf16.msra.mxu0 %v325
      %343 = vmatprep.subr.bf16.mxu0 0
      %344 = vmatpush1.bf16.msra.mxu0 %v326
      %345 = vmatprep.subr.bf16.mxu0 0
      %346 = vmatpush1.bf16.msra.mxu0 %v327
      %347 = vmatprep.subr.bf16.mxu0 0
      %348 = vmatpush1.bf16.msra.mxu0 %v328
      %349 = vmatprep.subr.bf16.mxu0 0
      %350 = vmatpush1.bf16.msra.mxu0 %v329
      %351 = vmatprep.subr.bf16.mxu0 0
      %352 = vmatpush1.bf16.msra.mxu0 %v330
      %353 = vmatprep.subr.bf16.mxu0 0
      %354 = vmatpush1.bf16.msra.mxu0 %v331
      %355 = vmatprep.subr.bf16.mxu0 0
      %356 = vmatpush1.bf16.msra.mxu0 %v332
      %357 = vmatprep.subr.bf16.mxu0 0
      %358 = vmatpush1.bf16.msra.mxu0 0
      %359 = vmatprep.subr.bf16.mxu0 0
      %360 = vmatpush1.bf16.msra.mxu0 0
      %361 = vmatprep.subr.bf16.mxu0 0
      %362 = vmatpush1.bf16.msra.mxu0 0
      %363 = vmatprep.subr.bf16.mxu0 0
      %364 = vmatpush1.bf16.msra.mxu0 0
      %365 = vmatprep.subr.bf16.mxu0 0
      %366 = vmatpush1.bf16.msra.mxu0 0
      %367 = vmatprep.subr.bf16.mxu0 0
      %368 = vmatpush1.bf16.msra.mxu0 0
      %369 = vmatprep.subr.bf16.mxu0 0
      %370 = vmatpush1.bf16.msra.mxu0 0
      %371 = vmatprep.subr.bf16.mxu0 0
      %372 = vmatpush1.bf16.msra.mxu0 0
      %373 = vmatprep.mubr.bf16.mxu0 0
      %374 = vmatmul.mubr.bf16.gmra.mrb[0].mxu0 %v260
      %v375 = vpop.f32.mrb[0].mxu0
      %v376 = vadd.f32 0.0, %v375
      %v377 = vpop.f32.mrb[0].mxu0
      %v378 = vpop.f32.mrb[0].mxu0
      %v379 = vadd.f32 0.0, %v378
      %v380 = vpop.f32.mrb[0].mxu0
      %381 = vmatprep.mubr.bf16.mxu0 0
      %382 = vmatmul.mubr.bf16.gmra.mrb[0].mxu0 %v268
      %v383 = vpop.f32.mrb[0].mxu0
      %v384 = vadd.f32 0.0, %v383
      %v385 = vpop.f32.mrb[0].mxu0
      %v386 = vpop.f32.mrb[0].mxu0
      %v387 = vadd.f32 0.0, %v386
      %v388 = vpop.f32.mrb[0].mxu0
      %389 = vmatprep.mubr.bf16.mxu0 0
      %390 = vmatmul.mubr.bf16.gmra.mrb[0].mxu0 %v276
      %v391 = vpop.f32.mrb[0].mxu0
      %v392 = vadd.f32 0.0, %v391
      %v393 = vpop.f32.mrb[0].mxu0
      %v394 = vpop.f32.mrb[0].mxu0
      %v395 = vadd.f32 0.0, %v394
      %v396 = vpop.f32.mrb[0].mxu0
      %397 = vmatprep.mubr.bf16.mxu0 0
      %398 = vmatmul.mubr.bf16.gmra.mrb[0].mxu0 %v284
      %v399 = vpop.f32.mrb[0].mxu0
      %v400 = vadd.f32 0.0, %v399
      %v401 = vpop.f32.mrb[0].mxu0
      %v402 = vpop.f32.mrb[0].mxu0
      %v403 = vadd.f32 0.0, %v402
      %v404 = vpop.f32.mrb[0].mxu0
      %405 = vmatprep.mubr.bf16.mxu0 0
      %406 = vmatmul.mubr.bf16.gmra.mrb[0].mxu0 %v287
      %v407 = vpop.f32.mrb[0].mxu0
      %v408 = vadd.f32 0.0, %v407
      %v409 = vpop.f32.mrb[0].mxu0
      %v410 = vpop.f32.mrb[0].mxu0
      %v411 = vpop.f32.mrb[0].mxu0
      %412 = vdwg.mxu0
      %v422 = vunpack.c.l.b16 %v172
      %v423 = vunpack.c.l.b16 %v173
      %v424 = vunpack.c.l.b16 %v174
      %v425 = vunpack.c.l.b16 %v175
      %v426 = vunpack.c.l.b16 %v176
      %v427 = vunpack.c.l.b16 %v177
      %v428 = vunpack.c.l.b16 %v178
      %v429 = vunpack.c.l.b16 %v179
      %v430 = vunpack.c.l.b16 %v180
      %v431 = vpack.c.b16 %v423, %v422
      %v432 = vpack.c.b16 %v425, %v424
      %v433 = vpack.c.b16 %v427, %v426
      %v434 = vpack.c.b16 %v429, %v428
      %v435 = vpack.c.b16 %v430, %v430
      %v457 = vunpack.c.l.b16 %v181
      %v458 = vunpack.c.l.b16 %v182
      %v459 = vunpack.c.l.b16 %v183
      %v460 = vunpack.c.l.b16 %v184
      %v461 = vunpack.c.l.b16 %v185
      %v462 = vunpack.c.l.b16 %v186
      %v463 = vunpack.c.l.b16 %v187
      %v464 = vunpack.c.l.b16 %v188
      %v465 = vunpack.c.l.b16 %v189
      %v466 = vunpack.c.l.b16 %v190
      %v467 = vunpack.c.l.b16 %v191
      %v468 = vunpack.c.l.b16 %v192
      %v469 = vunpack.c.l.b16 %v193
      %v470 = vunpack.c.l.b16 %v194
      %v471 = vunpack.c.l.b16 %v195
      %v472 = vunpack.c.l.b16 %v196
      %v473 = vpack.c.b16 %v458, %v457
      %v474 = vpack.c.b16 %v460, %v459
      %v475 = vpack.c.b16 %v462, %v461
      %v476 = vpack.c.b16 %v464, %v463
      %v477 = vpack.c.b16 %v466, %v465
      %v478 = vpack.c.b16 %v468, %v467
      %v479 = vpack.c.b16 %v470, %v469
      %v480 = vpack.c.b16 %v472, %v471
      %489 = vmatprep.subr.bf16.mxu0 0
      %490 = vmatpush1.bf16.msra.mxu0 %v473
      %491 = vmatprep.subr.bf16.mxu0 0
      %492 = vmatpush1.bf16.msra.mxu0 %v474
      %493 = vmatprep.subr.bf16.mxu0 0
      %494 = vmatpush1.bf16.msra.mxu0 %v475
      %495 = vmatprep.subr.bf16.mxu0 0
      %496 = vmatpush1.bf16.msra.mxu0 %v476
      %497 = vmatprep.subr.bf16.mxu0 0
      %498 = vmatpush1.bf16.msra.mxu0 %v477
      %499 = vmatprep.subr.bf16.mxu0 0
      %500 = vmatpush1.bf16.msra.mxu0 %v478
      %501 = vmatprep.subr.bf16.mxu0 0
      %502 = vmatpush1.bf16.msra.mxu0 %v479
      %503 = vmatprep.subr.bf16.mxu0 0
      %504 = vmatpush1.bf16.msra.mxu0 %v480
      %505 = vmatprep.subr.bf16.mxu0 0
      %506 = vmatpush1.bf16.msra.mxu0 0
      %507 = vmatprep.subr.bf16.mxu0 0
      %508 = vmatpush1.bf16.msra.mxu0 0
      %509 = vmatprep.subr.bf16.mxu0 0
      %510 = vmatpush1.bf16.msra.mxu0 0
      %511 = vmatprep.subr.bf16.mxu0 0
      %512 = vmatpush1.bf16.msra.mxu0 0
      %513 = vmatprep.subr.bf16.mxu0 0
      %514 = vmatpush1.bf16.msra.mxu0 0
      %515 = vmatprep.subr.bf16.mxu0 0
      %516 = vmatpush1.bf16.msra.mxu0 0
      %517 = vmatprep.subr.bf16.mxu0 0
      %518 = vmatpush1.bf16.msra.mxu0 0
      %519 = vmatprep.subr.bf16.mxu0 0
      %520 = vmatpush1.bf16.msra.mxu0 0
      %521 = vmatprep.mubr.bf16.mxu0 0
      %522 = vmatmul.mubr.bf16.gmra.mrb[0].mxu0 %v431
      %v523 = vpop.f32.mrb[0].mxu0
      %v524 = vadd.f32 %v376, %v523
      %v525 = vpop.f32.mrb[0].mxu0
      %v526 = vpop.f32.mrb[0].mxu0
      %v527 = vadd.f32 %v379, %v526
      %v528 = vpop.f32.mrb[0].mxu0
      %529 = vmatprep.mubr.bf16.mxu0 0
      %530 = vmatmul.mubr.bf16.gmra.mrb[0].mxu0 %v432
      %v531 = vpop.f32.mrb[0].mxu0
      %v532 = vadd.f32 %v384, %v531
      %v533 = vpop.f32.mrb[0].mxu0
      %v534 = vpop.f32.mrb[0].mxu0
      %v535 = vadd.f32 %v387, %v534
      %v536 = vpop.f32.mrb[0].mxu0
      %537 = vmatprep.mubr.bf16.mxu0 0
      %538 = vmatmul.mubr.bf16.gmra.mrb[0].mxu0 %v433
      %v539 = vpop.f32.mrb[0].mxu0
      %v540 = vadd.f32 %v392, %v539
      %v541 = vpop.f32.mrb[0].mxu0
      %v542 = vpop.f32.mrb[0].mxu0
      %v543 = vadd.f32 %v395, %v542
      %v544 = vpop.f32.mrb[0].mxu0
      %545 = vmatprep.mubr.bf16.mxu0 0
      %546 = vmatmul.mubr.bf16.gmra.mrb[0].mxu0 %v434
      %v547 = vpop.f32.mrb[0].mxu0
      %v548 = vadd.f32 %v400, %v547
      %v549 = vpop.f32.mrb[0].mxu0
      %v550 = vpop.f32.mrb[0].mxu0
      %v551 = vadd.f32 %v403, %v550
      %v552 = vpop.f32.mrb[0].mxu0
      %553 = vmatprep.mubr.bf16.mxu0 0
      %554 = vmatmul.mubr.bf16.gmra.mrb[0].mxu0 %v435
      %v555 = vpop.f32.mrb[0].mxu0
      %v556 = vadd.f32 %v408, %v555
      %v557 = vpop.f32.mrb[0].mxu0
      %v558 = vpop.f32.mrb[0].mxu0
      %v559 = vpop.f32.mrb[0].mxu0
      %560 = vdwg.mxu0
      %v561 = vld [vmem:[%s165] sm:$0xf]
      %v562 = vld [vmem:[%s165 + $0x4] sm:$0xf]
      %v563 = vld [vmem:[%s165 + $0x8] sm:$0xf]
      %v564 = vld [vmem:[%s165 + $0xc] sm:$0xf]
      %v565 = vld [vmem:[%s165 + $0x10] sm:$0xf]
      %v566 = vld [vmem:[%s165 + $0x14] sm:$0xf]
      %v567 = vld [vmem:[%s165 + $0x18] sm:$0xf]
      %v568 = vld [vmem:[%s165 + $0x1c] sm:$0xf]
      %v569 = vld [vmem:[%s165 + $0x20] sm:$0xf]
      %v570 = vld [vmem:[%s165 + $0x24] sm:$0x1]
      %v571 = vld [vmem:[%s1 + $0x80] sm:$0xf]
      %v572 = vld [vmem:[%s1 + $0x84] sm:$0xf]
      %v573 = vld [vmem:[%s1 + $0x88] sm:$0xf]
      %v574 = vld [vmem:[%s1 + $0x8c] sm:$0xf]
      %v575 = vld [vmem:[%s1 + $0x90] sm:$0xf]
      %v576 = vld [vmem:[%s1 + $0x94] sm:$0xf]
      %v577 = vld [vmem:[%s1 + $0x98] sm:$0xf]
      %v578 = vld [vmem:[%s1 + $0x9c] sm:$0xf]
      %v579 = vld [vmem:[%s1 + $0xa0] sm:$0xf]
      %v580 = vld [vmem:[%s1 + $0xa4] sm:$0xf]
      %v581 = vld [vmem:[%s1 + $0xa8] sm:$0xf]
      %v582 = vld [vmem:[%s1 + $0xac] sm:$0xf]
      %v583 = vld [vmem:[%s1 + $0xb0] sm:$0xf]
      %v584 = vld [vmem:[%s1 + $0xb4] sm:$0xf]
      %v585 = vld [vmem:[%s1 + $0xb8] sm:$0xf]
      %v586 = vld [vmem:[%s1 + $0xbc] sm:$0xf]
      %v597 = vunpack.c.l.b16 %v561
      %v598 = vunpack.c.l.b16 %v562
      %v599 = vunpack.c.l.b16 %v563
      %v600 = vunpack.c.l.b16 %v564
      %v601 = vunpack.c.l.b16 %v565
      %v602 = vunpack.c.l.b16 %v566
      %v603 = vunpack.c.l.b16 %v567
      %v604 = vunpack.c.l.b16 %v568
      %v605 = vunpack.c.l.b16 %v569
      %v606 = vunpack.c.l.b16 %v570
      %v607 = vpack.c.b16 %v598, %v597
      %v608 = vpack.c.b16 %v600, %v599
      %v609 = vpack.c.b16 %v602, %v601
      %v610 = vpack.c.b16 %v604, %v603
      %v611 = vpack.c.b16 %v606, %v605
      %v613 = vshrl.u32 %v607, 16
      %v615 = vshll.u32 %v607, 16
      %v617 = vrot.slane %v615, 1
      %v618 = vor.u32 %v613, %v617
      %v620 = vshll.u32 %v608, 16
      %v622 = vrot.slane %v620, 1
      %v623 = vsel %vm248, %v618, %v622
      %v624 = vshrl.u32 %v608, 16
      %v626 = vor.u32 %v624, %v622
      %v628 = vshll.u32 %v609, 16
      %v630 = vrot.slane %v628, 1
      %v631 = vsel %vm248, %v626, %v630
      %v632 = vshrl.u32 %v609, 16
      %v634 = vor.u32 %v632, %v630
      %v636 = vshll.u32 %v610, 16
      %v638 = vrot.slane %v636, 1
      %v639 = vsel %vm248, %v634, %v638
      %v640 = vshrl.u32 %v610, 16
      %v642 = vor.u32 %v640, %v638
      %v644 = vshll.u32 %v611, 16
      %v646 = vrot.slane %v644, 1
      %v647 = vsel %vm248, %v642, %v646
      %v648 = vshrl.u32 %v611, 16
      %v650 = vor.u32 %v648, %v646
      %v672 = vunpack.c.l.b16 %v571
      %v673 = vunpack.c.l.b16 %v572
      %v674 = vunpack.c.l.b16 %v573
      %v675 = vunpack.c.l.b16 %v574
      %v676 = vunpack.c.l.b16 %v575
      %v677 = vunpack.c.l.b16 %v576
      %v678 = vunpack.c.l.b16 %v577
      %v679 = vunpack.c.l.b16 %v578
      %v680 = vunpack.c.l.b16 %v579
      %v681 = vunpack.c.l.b16 %v580
      %v682 = vunpack.c.l.b16 %v581
      %v683 = vunpack.c.l.b16 %v582
      %v684 = vunpack.c.l.b16 %v583
      %v685 = vunpack.c.l.b16 %v584
      %v686 = vunpack.c.l.b16 %v585
      %v687 = vunpack.c.l.b16 %v586
      %v688 = vpack.c.b16 %v673, %v672
      %v689 = vpack.c.b16 %v675, %v674
      %v690 = vpack.c.b16 %v677, %v676
      %v691 = vpack.c.b16 %v679, %v678
      %v692 = vpack.c.b16 %v681, %v680
      %v693 = vpack.c.b16 %v683, %v682
      %v694 = vpack.c.b16 %v685, %v684
      %v695 = vpack.c.b16 %v687, %v686
      %704 = vmatprep.subr.bf16.mxu0 0
      %705 = vmatpush1.bf16.msra.mxu0 %v688
      %706 = vmatprep.subr.bf16.mxu0 0
      %707 = vmatpush1.bf16.msra.mxu0 %v689
      %708 = vmatprep.subr.bf16.mxu0 0
      %709 = vmatpush1.bf16.msra.mxu0 %v690
      %710 = vmatprep.subr.bf16.mxu0 0
      %711 = vmatpush1.bf16.msra.mxu0 %v691
      %712 = vmatprep.subr.bf16.mxu0 0
      %713 = vmatpush1.bf16.msra.mxu0 %v692
      %714 = vmatprep.subr.bf16.mxu0 0
      %715 = vmatpush1.bf16.msra.mxu0 %v693
      %716 = vmatprep.subr.bf16.mxu0 0
      %717 = vmatpush1.bf16.msra.mxu0 %v694
      %718 = vmatprep.subr.bf16.mxu0 0
      %719 = vmatpush1.bf16.msra.mxu0 %v695
      %720 = vmatprep.subr.bf16.mxu0 0
      %721 = vmatpush1.bf16.msra.mxu0 0
      %722 = vmatprep.subr.bf16.mxu0 0
      %723 = vmatpush1.bf16.msra.mxu0 0
      %724 = vmatprep.subr.bf16.mxu0 0
      %725 = vmatpush1.bf16.msra.mxu0 0
      %726 = vmatprep.subr.bf16.mxu0 0
      %727 = vmatpush1.bf16.msra.mxu0 0
      %728 = vmatprep.subr.bf16.mxu0 0
      %729 = vmatpush1.bf16.msra.mxu0 0
      %730 = vmatprep.subr.bf16.mxu0 0
      %731 = vmatpush1.bf16.msra.mxu0 0
      %732 = vmatprep.subr.bf16.mxu0 0
      %733 = vmatpush1.bf16.msra.mxu0 0
      %734 = vmatprep.subr.bf16.mxu0 0
      %735 = vmatpush1.bf16.msra.mxu0 0
      %736 = vmatprep.mubr.bf16.mxu0 0
      %737 = vmatmul.mubr.bf16.gmra.mrb[0].mxu0 %v623
      %v738 = vpop.f32.mrb[0].mxu0
      %v739 = vadd.f32 0.0, %v738
      %v740 = vpop.f32.mrb[0].mxu0
      %v741 = vpop.f32.mrb[0].mxu0
      %v742 = vadd.f32 0.0, %v741
      %v743 = vpop.f32.mrb[0].mxu0
      %744 = vmatprep.mubr.bf16.mxu0 0
      %745 = vmatmul.mubr.bf16.gmra.mrb[0].mxu0 %v631
      %v746 = vpop.f32.mrb[0].mxu0
      %v747 = vadd.f32 0.0, %v746
      %v748 = vpop.f32.mrb[0].mxu0
      %v749 = vpop.f32.mrb[0].mxu0
      %v750 = vadd.f32 0.0, %v749
      %v751 = vpop.f32.mrb[0].mxu0
      %752 = vmatprep.mubr.bf16.mxu0 0
      %753 = vmatmul.mubr.bf16.gmra.mrb[0].mxu0 %v639
      %v754 = vpop.f32.mrb[0].mxu0
      %v755 = vadd.f32 0.0, %v754
      %v756 = vpop.f32.mrb[0].mxu0
      %v757 = vpop.f32.mrb[0].mxu0
      %v758 = vadd.f32 0.0, %v757
      %v759 = vpop.f32.mrb[0].mxu0
      %760 = vmatprep.mubr.bf16.mxu0 0
      %761 = vmatmul.mubr.bf16.gmra.mrb[0].mxu0 %v647
      %v762 = vpop.f32.mrb[0].mxu0
      %v763 = vadd.f32 0.0, %v762
      %v764 = vpop.f32.mrb[0].mxu0
      %v765 = vpop.f32.mrb[0].mxu0
      %v766 = vadd.f32 0.0, %v765
      %v767 = vpop.f32.mrb[0].mxu0
      %768 = vmatprep.mubr.bf16.mxu0 0
      %769 = vmatmul.mubr.bf16.gmra.mrb[0].mxu0 %v650
      %v770 = vpop.f32.mrb[0].mxu0
      %v771 = vadd.f32 0.0, %v770
      %v772 = vpop.f32.mrb[0].mxu0
      %v773 = vpop.f32.mrb[0].mxu0
      %v774 = vpop.f32.mrb[0].mxu0
      %775 = vdwg.mxu0
      %v776 = vadd.f32 %v524, %v739
      %v777 = vadd.f32 %v527, %v742
      %v778 = vadd.f32 %v532, %v747
      %v779 = vadd.f32 %v535, %v750
      %v780 = vadd.f32 %v540, %v755
      %v781 = vadd.f32 %v543, %v758
      %v782 = vadd.f32 %v548, %v763
      %v783 = vadd.f32 %v551, %v766
      %v784 = vadd.f32 %v556, %v771
      %v785 = vld [vmem:[%s165 + $0x50] sm:$0xe]
      %v786 = vld [vmem:[%s165 + $0x54] sm:$0xf]
      %v787 = vld [vmem:[%s165 + $0x58] sm:$0xf]
      %v788 = vld [vmem:[%s165 + $0x5c] sm:$0xf]
      %v789 = vld [vmem:[%s165 + $0x60] sm:$0xf]
      %v790 = vld [vmem:[%s165 + $0x64] sm:$0xf]
      %v791 = vld [vmem:[%s165 + $0x68] sm:$0xf]
      %v792 = vld [vmem:[%s165 + $0x6c] sm:$0xf]
      %v793 = vld [vmem:[%s165 + $0x70] sm:$0xf]
      %v794 = vld [vmem:[%s165 + $0x74] sm:$0x1]
      %v795 = vld [vmem:[%s1 + $0xc0] sm:$0xf]
      %v796 = vld [vmem:[%s1 + $0xc4] sm:$0xf]
      %v797 = vld [vmem:[%s1 + $0xc8] sm:$0xf]
      %v798 = vld [vmem:[%s1 + $0xcc] sm:$0xf]
      %v799 = vld [vmem:[%s1 + $0xd0] sm:$0xf]
      %v800 = vld [vmem:[%s1 + $0xd4] sm:$0xf]
      %v801 = vld [vmem:[%s1 + $0xd8] sm:$0xf]
      %v802 = vld [vmem:[%s1 + $0xdc] sm:$0xf]
      %v803 = vld [vmem:[%s1 + $0xe0] sm:$0xf]
      %v804 = vld [vmem:[%s1 + $0xe4] sm:$0xf]
      %v805 = vld [vmem:[%s1 + $0xe8] sm:$0xf]
      %v806 = vld [vmem:[%s1 + $0xec] sm:$0xf]
      %v807 = vld [vmem:[%s1 + $0xf0] sm:$0xf]
      %v808 = vld [vmem:[%s1 + $0xf4] sm:$0xf]
      %v809 = vld [vmem:[%s1 + $0xf8] sm:$0xf]
      %v810 = vld [vmem:[%s1 + $0xfc] sm:$0xf]
      %v821 = vunpack.c.l.b16 %v785
      %v822 = vunpack.c.l.b16 %v786
      %v823 = vunpack.c.l.b16 %v787
      %v824 = vunpack.c.l.b16 %v788
      %v825 = vunpack.c.l.b16 %v789
      %v826 = vunpack.c.l.b16 %v790
      %v827 = vunpack.c.l.b16 %v791
      %v828 = vunpack.c.l.b16 %v792
      %v829 = vunpack.c.l.b16 %v793
      %v830 = vunpack.c.l.b16 %v794
      %v831 = vpack.c.b16 %v822, %v821
      %v832 = vpack.c.b16 %v824, %v823
      %v833 = vpack.c.b16 %v826, %v825
      %v834 = vpack.c.b16 %v828, %v827
      %v835 = vpack.c.b16 %v830, %v829
      %vm836 = vcmask 1046528
      %v837 = vrot.slane %v831, 1
      %v838 = vrot.slane %v832, 1
      %v839 = vsel %vm836, %v837, %v838
      %v840 = vrot.slane %v833, 1
      %v841 = vsel %vm836, %v838, %v840
      %v842 = vrot.slane %v834, 1
      %v843 = vsel %vm836, %v840, %v842
      %v844 = vrot.slane %v835, 1
      %v845 = vsel %vm836, %v842, %v844
      %v867 = vunpack.c.l.b16 %v795
      %v868 = vunpack.c.l.b16 %v796
      %v869 = vunpack.c.l.b16 %v797
      %v870 = vunpack.c.l.b16 %v798
      %v871 = vunpack.c.l.b16 %v799
      %v872 = vunpack.c.l.b16 %v800
      %v873 = vunpack.c.l.b16 %v801
      %v874 = vunpack.c.l.b16 %v802
      %v875 = vunpack.c.l.b16 %v803
      %v876 = vunpack.c.l.b16 %v804
      %v877 = vunpack.c.l.b16 %v805
      %v878 = vunpack.c.l.b16 %v806
      %v879 = vunpack.c.l.b16 %v807
      %v880 = vunpack.c.l.b16 %v808
      %v881 = vunpack.c.l.b16 %v809
      %v882 = vunpack.c.l.b16 %v810
      %v883 = vpack.c.b16 %v868, %v867
      %v884 = vpack.c.b16 %v870, %v869
      %v885 = vpack.c.b16 %v872, %v871
      %v886 = vpack.c.b16 %v874, %v873
      %v887 = vpack.c.b16 %v876, %v875
      %v888 = vpack.c.b16 %v878, %v877
      %v889 = vpack.c.b16 %v880, %v879
      %v890 = vpack.c.b16 %v882, %v881
      %899 = vmatprep.subr.bf16.mxu0 0
      %900 = vmatpush1.bf16.msra.mxu0 %v883
      %901 = vmatprep.subr.bf16.mxu0 0
      %902 = vmatpush1.bf16.msra.mxu0 %v884
      %903 = vmatprep.subr.bf16.mxu0 0
      %904 = vmatpush1.bf16.msra.mxu0 %v885
      %905 = vmatprep.subr.bf16.mxu0 0
      %906 = vmatpush1.bf16.msra.mxu0 %v886
      %907 = vmatprep.subr.bf16.mxu0 0
      %908 = vmatpush1.bf16.msra.mxu0 %v887
      %909 = vmatprep.subr.bf16.mxu0 0
      %910 = vmatpush1.bf16.msra.mxu0 %v888
      %911 = vmatprep.subr.bf16.mxu0 0
      %912 = vmatpush1.bf16.msra.mxu0 %v889
      %913 = vmatprep.subr.bf16.mxu0 0
      %914 = vmatpush1.bf16.msra.mxu0 %v890
      %915 = vmatprep.subr.bf16.mxu0 0
      %916 = vmatpush1.bf16.msra.mxu0 0
      %917 = vmatprep.subr.bf16.mxu0 0
      %918 = vmatpush1.bf16.msra.mxu0 0
      %919 = vmatprep.subr.bf16.mxu0 0
      %920 = vmatpush1.bf16.msra.mxu0 0
      %921 = vmatprep.subr.bf16.mxu0 0
      %922 = vmatpush1.bf16.msra.mxu0 0
      %923 = vmatprep.subr.bf16.mxu0 0
      %924 = vmatpush1.bf16.msra.mxu0 0
      %925 = vmatprep.subr.bf16.mxu0 0
      %926 = vmatpush1.bf16.msra.mxu0 0
      %927 = vmatprep.subr.bf16.mxu0 0
      %928 = vmatpush1.bf16.msra.mxu0 0
      %929 = vmatprep.subr.bf16.mxu0 0
      %930 = vmatpush1.bf16.msra.mxu0 0
      %931 = vmatprep.mubr.bf16.mxu0 0
      %932 = vmatmul.mubr.bf16.gmra.mrb[0].mxu0 %v839
      %v933 = vpop.f32.mrb[0].mxu0
      %v934 = vadd.f32 0.0, %v933
      %v935 = vpop.f32.mrb[0].mxu0
      %v936 = vpop.f32.mrb[0].mxu0
      %v937 = vadd.f32 0.0, %v936
      %v938 = vpop.f32.mrb[0].mxu0
      %939 = vmatprep.mubr.bf16.mxu0 0
      %940 = vmatmul.mubr.bf16.gmra.mrb[0].mxu0 %v841
      %v941 = vpop.f32.mrb[0].mxu0
      %v942 = vadd.f32 0.0, %v941
      %v943 = vpop.f32.mrb[0].mxu0
      %v944 = vpop.f32.mrb[0].mxu0
      %v945 = vadd.f32 0.0, %v944
      %v946 = vpop.f32.mrb[0].mxu0
      %947 = vmatprep.mubr.bf16.mxu0 0
      %948 = vmatmul.mubr.bf16.gmra.mrb[0].mxu0 %v843
      %v949 = vpop.f32.mrb[0].mxu0
      %v950 = vadd.f32 0.0, %v949
      %v951 = vpop.f32.mrb[0].mxu0
      %v952 = vpop.f32.mrb[0].mxu0
      %v953 = vadd.f32 0.0, %v952
      %v954 = vpop.f32.mrb[0].mxu0
      %955 = vmatprep.mubr.bf16.mxu0 0
      %956 = vmatmul.mubr.bf16.gmra.mrb[0].mxu0 %v845
      %v957 = vpop.f32.mrb[0].mxu0
      %v958 = vadd.f32 0.0, %v957
      %v959 = vpop.f32.mrb[0].mxu0
      %v960 = vpop.f32.mrb[0].mxu0
      %v961 = vadd.f32 0.0, %v960
      %v962 = vpop.f32.mrb[0].mxu0
      %963 = vmatprep.mubr.bf16.mxu0 0
      %964 = vmatmul.mubr.bf16.gmra.mrb[0].mxu0 %v844
      %v965 = vpop.f32.mrb[0].mxu0
      %v966 = vadd.f32 0.0, %v965
      %v967 = vpop.f32.mrb[0].mxu0
      %v968 = vpop.f32.mrb[0].mxu0
      %v969 = vpop.f32.mrb[0].mxu0
      %970 = vdwg.mxu0
      %v971 = vadd.f32 %v776, %v934
      %v972 = vadd.f32 %v777, %v937
      %v973 = vadd.f32 %v778, %v942
      %v974 = vadd.f32 %v779, %v945
      %v975 = vadd.f32 %v780, %v950
      %v976 = vadd.f32 %v781, %v953
      %v977 = vadd.f32 %v782, %v958
      %v978 = vadd.f32 %v783, %v961
      %v979 = vadd.f32 %v784, %v966
      %v980 = vld [vmem:[%s165 + $0x78] sm:$0xe]
      %v981 = vld [vmem:[%s165 + $0x7c] sm:$0xf]
      %v982 = vld [vmem:[%s165 + $0x80] sm:$0xf]
      %v983 = vld [vmem:[%s165 + $0x84] sm:$0xf]
      %v984 = vld [vmem:[%s165 + $0x88] sm:$0xf]
      %v985 = vld [vmem:[%s165 + $0x8c] sm:$0xf]
      %v986 = vld [vmem:[%s165 + $0x90] sm:$0xf]
      %v987 = vld [vmem:[%s165 + $0x94] sm:$0xf]
      %v988 = vld [vmem:[%s165 + $0x98] sm:$0xf]
      %v989 = vld [vmem:[%s165 + $0x9c] sm:$0x3]
      %v990 = vld [vmem:[%s1 + $0x100] sm:$0xf]
      %v991 = vld [vmem:[%s1 + $0x104] sm:$0xf]
      %v992 = vld [vmem:[%s1 + $0x108] sm:$0xf]
      %v993 = vld [vmem:[%s1 + $0x10c] sm:$0xf]
      %v994 = vld [vmem:[%s1 + $0x110] sm:$0xf]
      %v995 = vld [vmem:[%s1 + $0x114] sm:$0xf]
      %v996 = vld [vmem:[%s1 + $0x118] sm:$0xf]
      %v997 = vld [vmem:[%s1 + $0x11c] sm:$0xf]
      %v998 = vld [vmem:[%s1 + $0x120] sm:$0xf]
      %v999 = vld [vmem:[%s1 + $0x124] sm:$0xf]
      %v1000 = vld [vmem:[%s1 + $0x128] sm:$0xf]
      %v1001 = vld [vmem:[%s1 + $0x12c] sm:$0xf]
      %v1002 = vld [vmem:[%s1 + $0x130] sm:$0xf]
      %v1003 = vld [vmem:[%s1 + $0x134] sm:$0xf]
      %v1004 = vld [vmem:[%s1 + $0x138] sm:$0xf]
      %v1005 = vld [vmem:[%s1 + $0x13c] sm:$0xf]
      %v1016 = vunpack.c.l.b16 %v980
      %v1017 = vunpack.c.l.b16 %v981
      %v1018 = vunpack.c.l.b16 %v982
      %v1019 = vunpack.c.l.b16 %v983
      %v1020 = vunpack.c.l.b16 %v984
      %v1021 = vunpack.c.l.b16 %v985
      %v1022 = vunpack.c.l.b16 %v986
      %v1023 = vunpack.c.l.b16 %v987
      %v1024 = vunpack.c.l.b16 %v988
      %v1025 = vunpack.c.l.b16 %v989
      %v1026 = vpack.c.b16 %v1017, %v1016
      %v1027 = vpack.c.b16 %v1019, %v1018
      %v1028 = vpack.c.b16 %v1021, %v1020
      %v1029 = vpack.c.b16 %v1023, %v1022
      %v1030 = vpack.c.b16 %v1025, %v1024
      %vm1031 = vsmask.f32 6400
      %v1033 = vshrl.u32 %v1026, 16
      %v1035 = vrot.slane %v1033, 1
      %v1036 = vshll.u32 %v1026, 16
      %v1038 = vrot.slane %v1036, 2
      %v1039 = vor.u32 %v1035, %v1038
      %v1041 = vshrl.u32 %v1027, 16
      %v1043 = vrot.slane %v1041, 1
      %v1044 = vshll.u32 %v1027, 16
      %v1046 = vrot.slane %v1044, 2
      %v1047 = vor.u32 %v1043, %v1046
      %v1048 = vsel %vm1031, %v1039, %v1047
      %v1050 = vshrl.u32 %v1028, 16
      %v1052 = vrot.slane %v1050, 1
      %v1053 = vshll.u32 %v1028, 16
      %v1055 = vrot.slane %v1053, 2
      %v1056 = vor.u32 %v1052, %v1055
      %v1057 = vsel %vm1031, %v1047, %v1056
      %v1059 = vshrl.u32 %v1029, 16
      %v1061 = vrot.slane %v1059, 1
      %v1062 = vshll.u32 %v1029, 16
      %v1064 = vrot.slane %v1062, 2
      %v1065 = vor.u32 %v1061, %v1064
      %v1066 = vsel %vm1031, %v1056, %v1065
      %v1068 = vshrl.u32 %v1030, 16
      %v1070 = vrot.slane %v1068, 1
      %v1071 = vshll.u32 %v1030, 16
      %v1073 = vrot.slane %v1071, 2
      %v1074 = vor.u32 %v1070, %v1073
      %v1075 = vsel %vm1031, %v1065, %v1074
      %v1097 = vunpack.c.l.b16 %v990
      %v1098 = vunpack.c.l.b16 %v991
      %v1099 = vunpack.c.l.b16 %v992
      %v1100 = vunpack.c.l.b16 %v993
      %v1101 = vunpack.c.l.b16 %v994
      %v1102 = vunpack.c.l.b16 %v995
      %v1103 = vunpack.c.l.b16 %v996
      %v1104 = vunpack.c.l.b16 %v997
      %v1105 = vunpack.c.l.b16 %v998
      %v1106 = vunpack.c.l.b16 %v999
      %v1107 = vunpack.c.l.b16 %v1000
      %v1108 = vunpack.c.l.b16 %v1001
      %v1109 = vunpack.c.l.b16 %v1002
      %v1110 = vunpack.c.l.b16 %v1003
      %v1111 = vunpack.c.l.b16 %v1004
      %v1112 = vunpack.c.l.b16 %v1005
      %v1113 = vpack.c.b16 %v1098, %v1097
      %v1114 = vpack.c.b16 %v1100, %v1099
      %v1115 = vpack.c.b16 %v1102, %v1101
      %v1116 = vpack.c.b16 %v1104, %v1103
      %v1117 = vpack.c.b16 %v1106, %v1105
      %v1118 = vpack.c.b16 %v1108, %v1107
      %v1119 = vpack.c.b16 %v1110, %v1109
      %v1120 = vpack.c.b16 %v1112, %v1111
      %1129 = vmatprep.subr.bf16.mxu0 0
      %1130 = vmatpush1.bf16.msra.mxu0 %v1113
      %1131 = vmatprep.subr.bf16.mxu0 0
      %1132 = vmatpush1.bf16.msra.mxu0 %v1114
      %1133 = vmatprep.subr.bf16.mxu0 0
      %1134 = vmatpush1.bf16.msra.mxu0 %v1115
      %1135 = vmatprep.subr.bf16.mxu0 0
      %1136 = vmatpush1.bf16.msra.mxu0 %v1116
      %1137 = vmatprep.subr.bf16.mxu0 0
      %1138 = vmatpush1.bf16.msra.mxu0 %v1117
      %1139 = vmatprep.subr.bf16.mxu0 0
      %1140 = vmatpush1.bf16.msra.mxu0 %v1118
      %1141 = vmatprep.subr.bf16.mxu0 0
      %1142 = vmatpush1.bf16.msra.mxu0 %v1119
      %1143 = vmatprep.subr.bf16.mxu0 0
      %1144 = vmatpush1.bf16.msra.mxu0 %v1120
      %1145 = vmatprep.subr.bf16.mxu0 0
      %1146 = vmatpush1.bf16.msra.mxu0 0
      %1147 = vmatprep.subr.bf16.mxu0 0
      %1148 = vmatpush1.bf16.msra.mxu0 0
      %1149 = vmatprep.subr.bf16.mxu0 0
      %1150 = vmatpush1.bf16.msra.mxu0 0
      %1151 = vmatprep.subr.bf16.mxu0 0
      %1152 = vmatpush1.bf16.msra.mxu0 0
      %1153 = vmatprep.subr.bf16.mxu0 0
      %1154 = vmatpush1.bf16.msra.mxu0 0
      %1155 = vmatprep.subr.bf16.mxu0 0
      %1156 = vmatpush1.bf16.msra.mxu0 0
      %1157 = vmatprep.subr.bf16.mxu0 0
      %1158 = vmatpush1.bf16.msra.mxu0 0
      %1159 = vmatprep.subr.bf16.mxu0 0
      %1160 = vmatpush1.bf16.msra.mxu0 0
      %1161 = vmatprep.mubr.bf16.mxu0 0
      %1162 = vmatmul.mubr.bf16.gmra.mrb[0].mxu0 %v1048
      %v1163 = vpop.f32.mrb[0].mxu0
      %v1164 = vadd.f32 0.0, %v1163
      %v1165 = vpop.f32.mrb[0].mxu0
      %v1166 = vpop.f32.mrb[0].mxu0
      %v1167 = vadd.f32 0.0, %v1166
      %v1168 = vpop.f32.mrb[0].mxu0
      %1169 = vmatprep.mubr.bf16.mxu0 0
      %1170 = vmatmul.mubr.bf16.gmra.mrb[0].mxu0 %v1057
      %v1171 = vpop.f32.mrb[0].mxu0
      %v1172 = vadd.f32 0.0, %v1171
      %v1173 = vpop.f32.mrb[0].mxu0
      %v1174 = vpop.f32.mrb[0].mxu0
      %v1175 = vadd.f32 0.0, %v1174
      %v1176 = vpop.f32.mrb[0].mxu0
      %1177 = vmatprep.mubr.bf16.mxu0 0
      %1178 = vmatmul.mubr.bf16.gmra.mrb[0].mxu0 %v1066
      %v1179 = vpop.f32.mrb[0].mxu0
      %v1180 = vadd.f32 0.0, %v1179
      %v1181 = vpop.f32.mrb[0].mxu0
      %v1182 = vpop.f32.mrb[0].mxu0
      %v1183 = vadd.f32 0.0, %v1182
      %v1184 = vpop.f32.mrb[0].mxu0
      %1185 = vmatprep.mubr.bf16.mxu0 0
      %1186 = vmatmul.mubr.bf16.gmra.mrb[0].mxu0 %v1075
      %v1187 = vpop.f32.mrb[0].mxu0
      %v1188 = vadd.f32 0.0, %v1187
      %v1189 = vpop.f32.mrb[0].mxu0
      %v1190 = vpop.f32.mrb[0].mxu0
      %v1191 = vadd.f32 0.0, %v1190
      %v1192 = vpop.f32.mrb[0].mxu0
      %1193 = vmatprep.mubr.bf16.mxu0 0
      %1194 = vmatmul.mubr.bf16.gmra.mrb[0].mxu0 %v1074
      %v1195 = vpop.f32.mrb[0].mxu0
      %v1196 = vadd.f32 0.0, %v1195
      %v1197 = vpop.f32.mrb[0].mxu0
      %v1198 = vpop.f32.mrb[0].mxu0
      %v1199 = vpop.f32.mrb[0].mxu0
      %1200 = vdwg.mxu0
      %v1201 = vadd.f32 %v971, %v1164
      %v1202 = vadd.f32 %v972, %v1167
      %v1203 = vadd.f32 %v973, %v1172
      %v1204 = vadd.f32 %v974, %v1175
      %v1205 = vadd.f32 %v975, %v1180
      %v1206 = vadd.f32 %v976, %v1183
      %v1207 = vadd.f32 %v977, %v1188
      %v1208 = vadd.f32 %v978, %v1191
      %v1209 = vadd.f32 %v979, %v1196
      %v1210 = vld [vmem:[%s165 + $0x74] sm:$0x3]
      %v1211 = vld [vmem:[%s1 + $0x140] sm:$0xf]
      %v1212 = vld [vmem:[%s1 + $0x144] sm:$0xf]
      %v1213 = vld [vmem:[%s1 + $0x148] sm:$0xf]
      %v1214 = vld [vmem:[%s1 + $0x14c] sm:$0xf]
      %v1215 = vld [vmem:[%s1 + $0x150] sm:$0xf]
      %v1216 = vld [vmem:[%s1 + $0x154] sm:$0xf]
      %v1217 = vld [vmem:[%s1 + $0x158] sm:$0xf]
      %v1218 = vld [vmem:[%s1 + $0x15c] sm:$0xf]
      %v1219 = vld [vmem:[%s1 + $0x160] sm:$0xf]
      %v1220 = vld [vmem:[%s1 + $0x164] sm:$0xf]
      %v1221 = vld [vmem:[%s1 + $0x168] sm:$0xf]
      %v1222 = vld [vmem:[%s1 + $0x16c] sm:$0xf]
      %v1223 = vld [vmem:[%s1 + $0x170] sm:$0xf]
      %v1224 = vld [vmem:[%s1 + $0x174] sm:$0xf]
      %v1225 = vld [vmem:[%s1 + $0x178] sm:$0xf]
      %v1226 = vld [vmem:[%s1 + $0x17c] sm:$0xf]
      %v1228 = vunpack.c.l.b16 %v1210
      %v1229 = vpack.c.b16 %v1228, %v829
      %v1231 = vshrl.u32 %v831, 16
      %v1233 = vrot.slane %v1231, 1
      %v1234 = vshll.u32 %v831, 16
      %v1236 = vrot.slane %v1234, 2
      %v1237 = vor.u32 %v1233, %v1236
      %v1239 = vshrl.u32 %v832, 16
      %v1241 = vrot.slane %v1239, 1
      %v1242 = vshll.u32 %v832, 16
      %v1244 = vrot.slane %v1242, 2
      %v1245 = vor.u32 %v1241, %v1244
      %v1246 = vsel %vm1031, %v1237, %v1245
      %v1248 = vshrl.u32 %v833, 16
      %v1250 = vrot.slane %v1248, 1
      %v1251 = vshll.u32 %v833, 16
      %v1253 = vrot.slane %v1251, 2
      %v1254 = vor.u32 %v1250, %v1253
      %v1255 = vsel %vm1031, %v1245, %v1254
      %v1257 = vshrl.u32 %v834, 16
      %v1259 = vrot.slane %v1257, 1
      %v1260 = vshll.u32 %v834, 16
      %v1262 = vrot.slane %v1260, 2
      %v1263 = vor.u32 %v1259, %v1262
      %v1264 = vsel %vm1031, %v1254, %v1263
      %v1266 = vshrl.u32 %v1229, 16
      %v1268 = vrot.slane %v1266, 1
      %v1269 = vshll.u32 %v1229, 16
      %v1271 = vrot.slane %v1269, 2
      %v1272 = vor.u32 %v1268, %v1271
      %v1273 = vsel %vm1031, %v1263, %v1272
      %v1295 = vunpack.c.l.b16 %v1211
      %v1296 = vunpack.c.l.b16 %v1212
      %v1297 = vunpack.c.l.b16 %v1213
      %v1298 = vunpack.c.l.b16 %v1214
      %v1299 = vunpack.c.l.b16 %v1215
      %v1300 = vunpack.c.l.b16 %v1216
      %v1301 = vunpack.c.l.b16 %v1217
      %v1302 = vunpack.c.l.b16 %v1218
      %v1303 = vunpack.c.l.b16 %v1219
      %v1304 = vunpack.c.l.b16 %v1220
      %v1305 = vunpack.c.l.b16 %v1221
      %v1306 = vunpack.c.l.b16 %v1222
      %v1307 = vunpack.c.l.b16 %v1223
      %v1308 = vunpack.c.l.b16 %v1224
      %v1309 = vunpack.c.l.b16 %v1225
      %v1310 = vunpack.c.l.b16 %v1226
      %v1311 = vpack.c.b16 %v1296, %v1295
      %v1312 = vpack.c.b16 %v1298, %v1297
      %v1313 = vpack.c.b16 %v1300, %v1299
      %v1314 = vpack.c.b16 %v1302, %v1301
      %v1315 = vpack.c.b16 %v1304, %v1303
      %v1316 = vpack.c.b16 %v1306, %v1305
      %v1317 = vpack.c.b16 %v1308, %v1307
      %v1318 = vpack.c.b16 %v1310, %v1309
      %1327 = vmatprep.subr.bf16.mxu0 0
      %1328 = vmatpush1.bf16.msra.mxu0 %v1311
      %1329 = vmatprep.subr.bf16.mxu0 0
      %1330 = vmatpush1.bf16.msra.mxu0 %v1312
      %1331 = vmatprep.subr.bf16.mxu0 0
      %1332 = vmatpush1.bf16.msra.mxu0 %v1313
      %1333 = vmatprep.subr.bf16.mxu0 0
      %1334 = vmatpush1.bf16.msra.mxu0 %v1314
      %1335 = vmatprep.subr.bf16.mxu0 0
      %1336 = vmatpush1.bf16.msra.mxu0 %v1315
      %1337 = vmatprep.subr.bf16.mxu0 0
      %1338 = vmatpush1.bf16.msra.mxu0 %v1316
      %1339 = vmatprep.subr.bf16.mxu0 0
      %1340 = vmatpush1.bf16.msra.mxu0 %v1317
      %1341 = vmatprep.subr.bf16.mxu0 0
      %1342 = vmatpush1.bf16.msra.mxu0 %v1318
      %1343 = vmatprep.subr.bf16.mxu0 0
      %1344 = vmatpush1.bf16.msra.mxu0 0
      %1345 = vmatprep.subr.bf16.mxu0 0
      %1346 = vmatpush1.bf16.msra.mxu0 0
      %1347 = vmatprep.subr.bf16.mxu0 0
      %1348 = vmatpush1.bf16.msra.mxu0 0
      %1349 = vmatprep.subr.bf16.mxu0 0
      %1350 = vmatpush1.bf16.msra.mxu0 0
      %1351 = vmatprep.subr.bf16.mxu0 0
      %1352 = vmatpush1.bf16.msra.mxu0 0
      %1353 = vmatprep.subr.bf16.mxu0 0
      %1354 = vmatpush1.bf16.msra.mxu0 0
      %1355 = vmatprep.subr.bf16.mxu0 0
      %1356 = vmatpush1.bf16.msra.mxu0 0
      %1357 = vmatprep.subr.bf16.mxu0 0
      %1358 = vmatpush1.bf16.msra.mxu0 0
      %1359 = vmatprep.mubr.bf16.mxu0 0
      %1360 = vmatmul.mubr.bf16.gmra.mrb[0].mxu0 %v1246
      %v1361 = vpop.f32.mrb[0].mxu0
      %v1362 = vadd.f32 0.0, %v1361
      %v1363 = vpop.f32.mrb[0].mxu0
      %v1364 = vpop.f32.mrb[0].mxu0
      %v1365 = vadd.f32 0.0, %v1364
      %v1366 = vpop.f32.mrb[0].mxu0
      %1367 = vmatprep.mubr.bf16.mxu0 0
      %1368 = vmatmul.mubr.bf16.gmra.mrb[0].mxu0 %v1255
      %v1369 = vpop.f32.mrb[0].mxu0
      %v1370 = vadd.f32 0.0, %v1369
      %v1371 = vpop.f32.mrb[0].mxu0
      %v1372 = vpop.f32.mrb[0].mxu0
      %v1373 = vadd.f32 0.0, %v1372
      %v1374 = vpop.f32.mrb[0].mxu0
      %1375 = vmatprep.mubr.bf16.mxu0 0
      %1376 = vmatmul.mubr.bf16.gmra.mrb[0].mxu0 %v1264
      %v1377 = vpop.f32.mrb[0].mxu0
      %v1378 = vadd.f32 0.0, %v1377
      %v1379 = vpop.f32.mrb[0].mxu0
      %v1380 = vpop.f32.mrb[0].mxu0
      %v1381 = vadd.f32 0.0, %v1380
      %v1382 = vpop.f32.mrb[0].mxu0
      %1383 = vmatprep.mubr.bf16.mxu0 0
      %1384 = vmatmul.mubr.bf16.gmra.mrb[0].mxu0 %v1273
      %v1385 = vpop.f32.mrb[0].mxu0
      %v1386 = vadd.f32 0.0, %v1385
      %v1387 = vpop.f32.mrb[0].mxu0
      %v1388 = vpop.f32.mrb[0].mxu0
      %v1389 = vadd.f32 0.0, %v1388
      %v1390 = vpop.f32.mrb[0].mxu0
      %1391 = vmatprep.mubr.bf16.mxu0 0
      %1392 = vmatmul.mubr.bf16.gmra.mrb[0].mxu0 %v1272
      %v1393 = vpop.f32.mrb[0].mxu0
      %v1394 = vadd.f32 0.0, %v1393
      %v1395 = vpop.f32.mrb[0].mxu0
      %v1396 = vpop.f32.mrb[0].mxu0
      %v1397 = vpop.f32.mrb[0].mxu0
      %1398 = vdwg.mxu0
      %v1399 = vadd.f32 %v1201, %v1362
      %v1400 = vadd.f32 %v1202, %v1365
      %v1401 = vadd.f32 %v1203, %v1370
      %v1402 = vadd.f32 %v1204, %v1373
      %v1403 = vadd.f32 %v1205, %v1378
      %v1404 = vadd.f32 %v1206, %v1381
      %v1405 = vadd.f32 %v1207, %v1386
      %v1406 = vadd.f32 %v1208, %v1389
      %v1407 = vadd.f32 %v1209, %v1394
      %v1408 = vld [vmem:[%s165 + $0x4] sm:$0xf]
      %v1409 = vld [vmem:[%s165 + $0x8] sm:$0xf]
      %v1410 = vld [vmem:[%s165 + $0xc] sm:$0xf]
      %v1411 = vld [vmem:[%s165 + $0x10] sm:$0xf]
      %v1412 = vld [vmem:[%s165 + $0x14] sm:$0xf]
      %v1413 = vld [vmem:[%s165 + $0x18] sm:$0xf]
      %v1414 = vld [vmem:[%s165 + $0x1c] sm:$0xf]
      %v1415 = vld [vmem:[%s165 + $0x20] sm:$0xf]
      %v1416 = vld [vmem:[%s165 + $0x24] sm:$0xf]
      %v1417 = vld [vmem:[%s165 + $0x28] sm:$0x1]
      %v1418 = vld [vmem:[%s1 + $0x180] sm:$0xf]
      %v1419 = vld [vmem:[%s1 + $0x184] sm:$0xf]
      %v1420 = vld [vmem:[%s1 + $0x188] sm:$0xf]
      %v1421 = vld [vmem:[%s1 + $0x18c] sm:$0xf]
      %v1422 = vld [vmem:[%s1 + $0x190] sm:$0xf]
      %v1423 = vld [vmem:[%s1 + $0x194] sm:$0xf]
      %v1424 = vld [vmem:[%s1 + $0x198] sm:$0xf]
      %v1425 = vld [vmem:[%s1 + $0x19c] sm:$0xf]
      %v1426 = vld [vmem:[%s1 + $0x1a0] sm:$0xf]
      %v1427 = vld [vmem:[%s1 + $0x1a4] sm:$0xf]
      %v1428 = vld [vmem:[%s1 + $0x1a8] sm:$0xf]
      %v1429 = vld [vmem:[%s1 + $0x1ac] sm:$0xf]
      %v1430 = vld [vmem:[%s1 + $0x1b0] sm:$0xf]
      %v1431 = vld [vmem:[%s1 + $0x1b4] sm:$0xf]
      %v1432 = vld [vmem:[%s1 + $0x1b8] sm:$0xf]
      %v1433 = vld [vmem:[%s1 + $0x1bc] sm:$0xf]
      %v1444 = vunpack.c.l.b16 %v1408
      %v1445 = vunpack.c.l.b16 %v1409
      %v1446 = vunpack.c.l.b16 %v1410
      %v1447 = vunpack.c.l.b16 %v1411
      %v1448 = vunpack.c.l.b16 %v1412
      %v1449 = vunpack.c.l.b16 %v1413
      %v1450 = vunpack.c.l.b16 %v1414
      %v1451 = vunpack.c.l.b16 %v1415
      %v1452 = vunpack.c.l.b16 %v1416
      %v1453 = vunpack.c.l.b16 %v1417
      %v1454 = vpack.c.b16 %v1445, %v1444
      %v1455 = vpack.c.b16 %v1447, %v1446
      %v1456 = vpack.c.b16 %v1449, %v1448
      %v1457 = vpack.c.b16 %v1451, %v1450
      %v1458 = vpack.c.b16 %v1453, %v1452
      %v1460 = vshrl.u32 %v1454, 16
      %v1462 = vshll.u32 %v1454, 16
      %v1464 = vrot.slane %v1462, 1
      %v1465 = vor.u32 %v1460, %v1464
      %v1467 = vshll.u32 %v1455, 16
      %v1469 = vrot.slane %v1467, 1
      %v1470 = vsel %vm248, %v1465, %v1469
      %v1471 = vshrl.u32 %v1455, 16
      %v1473 = vor.u32 %v1471, %v1469
      %v1475 = vshll.u32 %v1456, 16
      %v1477 = vrot.slane %v1475, 1
      %v1478 = vsel %vm248, %v1473, %v1477
      %v1479 = vshrl.u32 %v1456, 16
      %v1481 = vor.u32 %v1479, %v1477
      %v1483 = vshll.u32 %v1457, 16
      %v1485 = vrot.slane %v1483, 1
      %v1486 = vsel %vm248, %v1481, %v1485
      %v1487 = vshrl.u32 %v1457, 16
      %v1489 = vor.u32 %v1487, %v1485
      %v1491 = vshll.u32 %v1458, 16
      %v1493 = vrot.slane %v1491, 1
      %v1494 = vsel %vm248, %v1489, %v1493
      %v1495 = vshrl.u32 %v1458, 16
      %v1497 = vor.u32 %v1495, %v1493
      %v1519 = vunpack.c.l.b16 %v1418
      %v1520 = vunpack.c.l.b16 %v1419
      %v1521 = vunpack.c.l.b16 %v1420
      %v1522 = vunpack.c.l.b16 %v1421
      %v1523 = vunpack.c.l.b16 %v1422
      %v1524 = vunpack.c.l.b16 %v1423
      %v1525 = vunpack.c.l.b16 %v1424
      %v1526 = vunpack.c.l.b16 %v1425
      %v1527 = vunpack.c.l.b16 %v1426
      %v1528 = vunpack.c.l.b16 %v1427
      %v1529 = vunpack.c.l.b16 %v1428
      %v1530 = vunpack.c.l.b16 %v1429
      %v1531 = vunpack.c.l.b16 %v1430
      %v1532 = vunpack.c.l.b16 %v1431
      %v1533 = vunpack.c.l.b16 %v1432
      %v1534 = vunpack.c.l.b16 %v1433
      %v1535 = vpack.c.b16 %v1520, %v1519
      %v1536 = vpack.c.b16 %v1522, %v1521
      %v1537 = vpack.c.b16 %v1524, %v1523
      %v1538 = vpack.c.b16 %v1526, %v1525
      %v1539 = vpack.c.b16 %v1528, %v1527
      %v1540 = vpack.c.b16 %v1530, %v1529
      %v1541 = vpack.c.b16 %v1532, %v1531
      %v1542 = vpack.c.b16 %v1534, %v1533
      %1551 = vmatprep.subr.bf16.mxu0 0
      %1552 = vmatpush1.bf16.msra.mxu0 %v1535
      %1553 = vmatprep.subr.bf16.mxu0 0
      %1554 = vmatpush1.bf16.msra.mxu0 %v1536
      %1555 = vmatprep.subr.bf16.mxu0 0
      %1556 = vmatpush1.bf16.msra.mxu0 %v1537
      %1557 = vmatprep.subr.bf16.mxu0 0
      %1558 = vmatpush1.bf16.msra.mxu0 %v1538
      %1559 = vmatprep.subr.bf16.mxu0 0
      %1560 = vmatpush1.bf16.msra.mxu0 %v1539
      %1561 = vmatprep.subr.bf16.mxu0 0
      %1562 = vmatpush1.bf16.msra.mxu0 %v1540
      %1563 = vmatprep.subr.bf16.mxu0 0
      %1564 = vmatpush1.bf16.msra.mxu0 %v1541
      %1565 = vmatprep.subr.bf16.mxu0 0
      %1566 = vmatpush1.bf16.msra.mxu0 %v1542
      %1567 = vmatprep.subr.bf16.mxu0 0
      %1568 = vmatpush1.bf16.msra.mxu0 0
      %1569 = vmatprep.subr.bf16.mxu0 0
      %1570 = vmatpush1.bf16.msra.mxu0 0
      %1571 = vmatprep.subr.bf16.mxu0 0
      %1572 = vmatpush1.bf16.msra.mxu0 0
      %1573 = vmatprep.subr.bf16.mxu0 0
      %1574 = vmatpush1.bf16.msra.mxu0 0
      %1575 = vmatprep.subr.bf16.mxu0 0
      %1576 = vmatpush1.bf16.msra.mxu0 0
      %1577 = vmatprep.subr.bf16.mxu0 0
      %1578 = vmatpush1.bf16.msra.mxu0 0
      %1579 = vmatprep.subr.bf16.mxu0 0
      %1580 = vmatpush1.bf16.msra.mxu0 0
      %1581 = vmatprep.subr.bf16.mxu0 0
      %1582 = vmatpush1.bf16.msra.mxu0 0
      %1583 = vmatprep.mubr.bf16.mxu0 0
      %1584 = vmatmul.mubr.bf16.gmra.mrb[0].mxu0 %v1470
      %v1585 = vpop.f32.mrb[0].mxu0
      %v1586 = vadd.f32 0.0, %v1585
      %v1587 = vpop.f32.mrb[0].mxu0
      %v1588 = vpop.f32.mrb[0].mxu0
      %v1589 = vadd.f32 0.0, %v1588
      %v1590 = vpop.f32.mrb[0].mxu0
      %1591 = vmatprep.mubr.bf16.mxu0 0
      %1592 = vmatmul.mubr.bf16.gmra.mrb[0].mxu0 %v1478
      %v1593 = vpop.f32.mrb[0].mxu0
      %v1594 = vadd.f32 0.0, %v1593
      %v1595 = vpop.f32.mrb[0].mxu0
      %v1596 = vpop.f32.mrb[0].mxu0
      %v1597 = vadd.f32 0.0, %v1596
      %v1598 = vpop.f32.mrb[0].mxu0
      %1599 = vmatprep.mubr.bf16.mxu0 0
      %1600 = vmatmul.mubr.bf16.gmra.mrb[0].mxu0 %v1486
      %v1601 = vpop.f32.mrb[0].mxu0
      %v1602 = vadd.f32 0.0, %v1601
      %v1603 = vpop.f32.mrb[0].mxu0
      %v1604 = vpop.f32.mrb[0].mxu0
      %v1605 = vadd.f32 0.0, %v1604
      %v1606 = vpop.f32.mrb[0].mxu0
      %1607 = vmatprep.mubr.bf16.mxu0 0
      %1608 = vmatmul.mubr.bf16.gmra.mrb[0].mxu0 %v1494
      %v1609 = vpop.f32.mrb[0].mxu0
      %v1610 = vadd.f32 0.0, %v1609
      %v1611 = vpop.f32.mrb[0].mxu0
      %v1612 = vpop.f32.mrb[0].mxu0
      %v1613 = vadd.f32 0.0, %v1612
      %v1614 = vpop.f32.mrb[0].mxu0
      %1615 = vmatprep.mubr.bf16.mxu0 0
      %1616 = vmatmul.mubr.bf16.gmra.mrb[0].mxu0 %v1497
      %v1617 = vpop.f32.mrb[0].mxu0
      %v1618 = vadd.f32 0.0, %v1617
      %v1619 = vpop.f32.mrb[0].mxu0
      %v1620 = vpop.f32.mrb[0].mxu0
      %v1621 = vpop.f32.mrb[0].mxu0
      %1622 = vdwg.mxu0
      %v1623 = vadd.f32 %v1399, %v1586
      %v1624 = vadd.f32 %v1400, %v1589
      %v1625 = vadd.f32 %v1401, %v1594
      %v1626 = vadd.f32 %v1402, %v1597
      %v1627 = vadd.f32 %v1403, %v1602
      %v1628 = vadd.f32 %v1404, %v1605
      %v1629 = vadd.f32 %v1405, %v1610
      %v1630 = vadd.f32 %v1406, %v1613
      %v1631 = vadd.f32 %v1407, %v1618
      %v1632 = vld [vmem:[%s165 + $0x2c] sm:$0xe]
      %v1633 = vld [vmem:[%s165 + $0x30] sm:$0xf]
      %v1634 = vld [vmem:[%s165 + $0x34] sm:$0xf]
      %v1635 = vld [vmem:[%s165 + $0x38] sm:$0xf]
      %v1636 = vld [vmem:[%s165 + $0x3c] sm:$0xf]
      %v1637 = vld [vmem:[%s165 + $0x40] sm:$0xf]
      %v1638 = vld [vmem:[%s165 + $0x44] sm:$0xf]
      %v1639 = vld [vmem:[%s165 + $0x48] sm:$0xf]
      %v1640 = vld [vmem:[%s165 + $0x4c] sm:$0xf]
      %v1641 = vld [vmem:[%s165 + $0x50] sm:$0x1]
      %v1642 = vld [vmem:[%s1 + $0x1c0] sm:$0xf]
      %v1643 = vld [vmem:[%s1 + $0x1c4] sm:$0xf]
      %v1644 = vld [vmem:[%s1 + $0x1c8] sm:$0xf]
      %v1645 = vld [vmem:[%s1 + $0x1cc] sm:$0xf]
      %v1646 = vld [vmem:[%s1 + $0x1d0] sm:$0xf]
      %v1647 = vld [vmem:[%s1 + $0x1d4] sm:$0xf]
      %v1648 = vld [vmem:[%s1 + $0x1d8] sm:$0xf]
      %v1649 = vld [vmem:[%s1 + $0x1dc] sm:$0xf]
      %v1650 = vld [vmem:[%s1 + $0x1e0] sm:$0xf]
      %v1651 = vld [vmem:[%s1 + $0x1e4] sm:$0xf]
      %v1652 = vld [vmem:[%s1 + $0x1e8] sm:$0xf]
      %v1653 = vld [vmem:[%s1 + $0x1ec] sm:$0xf]
      %v1654 = vld [vmem:[%s1 + $0x1f0] sm:$0xf]
      %v1655 = vld [vmem:[%s1 + $0x1f4] sm:$0xf]
      %v1656 = vld [vmem:[%s1 + $0x1f8] sm:$0xf]
      %v1657 = vld [vmem:[%s1 + $0x1fc] sm:$0xf]
      %v1668 = vunpack.c.l.b16 %v1632
      %v1669 = vunpack.c.l.b16 %v1633
      %v1670 = vunpack.c.l.b16 %v1634
      %v1671 = vunpack.c.l.b16 %v1635
      %v1672 = vunpack.c.l.b16 %v1636
      %v1673 = vunpack.c.l.b16 %v1637
      %v1674 = vunpack.c.l.b16 %v1638
      %v1675 = vunpack.c.l.b16 %v1639
      %v1676 = vunpack.c.l.b16 %v1640
      %v1677 = vunpack.c.l.b16 %v1641
      %v1678 = vpack.c.b16 %v1669, %v1668
      %v1679 = vpack.c.b16 %v1671, %v1670
      %v1680 = vpack.c.b16 %v1673, %v1672
      %v1681 = vpack.c.b16 %v1675, %v1674
      %v1682 = vpack.c.b16 %v1677, %v1676
      %v1683 = vrot.slane %v1678, 1
      %v1684 = vrot.slane %v1679, 1
      %v1685 = vsel %vm836, %v1683, %v1684
      %v1686 = vrot.slane %v1680, 1
      %v1687 = vsel %vm836, %v1684, %v1686
      %v1688 = vrot.slane %v1681, 1
      %v1689 = vsel %vm836, %v1686, %v1688
      %v1690 = vrot.slane %v1682, 1
      %v1691 = vsel %vm836, %v1688, %v1690
      %v1713 = vunpack.c.l.b16 %v1642
      %v1714 = vunpack.c.l.b16 %v1643
      %v1715 = vunpack.c.l.b16 %v1644
      %v1716 = vunpack.c.l.b16 %v1645
      %v1717 = vunpack.c.l.b16 %v1646
      %v1718 = vunpack.c.l.b16 %v1647
      %v1719 = vunpack.c.l.b16 %v1648
      %v1720 = vunpack.c.l.b16 %v1649
      %v1721 = vunpack.c.l.b16 %v1650
      %v1722 = vunpack.c.l.b16 %v1651
      %v1723 = vunpack.c.l.b16 %v1652
      %v1724 = vunpack.c.l.b16 %v1653
      %v1725 = vunpack.c.l.b16 %v1654
      %v1726 = vunpack.c.l.b16 %v1655
      %v1727 = vunpack.c.l.b16 %v1656
      %v1728 = vunpack.c.l.b16 %v1657
      %v1729 = vpack.c.b16 %v1714, %v1713
      %v1730 = vpack.c.b16 %v1716, %v1715
      %v1731 = vpack.c.b16 %v1718, %v1717
      %v1732 = vpack.c.b16 %v1720, %v1719
      %v1733 = vpack.c.b16 %v1722, %v1721
      %v1734 = vpack.c.b16 %v1724, %v1723
      %v1735 = vpack.c.b16 %v1726, %v1725
      %v1736 = vpack.c.b16 %v1728, %v1727
      %1745 = vmatprep.subr.bf16.mxu0 0
      %1746 = vmatpush1.bf16.msra.mxu0 %v1729
      %1747 = vmatprep.subr.bf16.mxu0 0
      %1748 = vmatpush1.bf16.msra.mxu0 %v1730
      %1749 = vmatprep.subr.bf16.mxu0 0
      %1750 = vmatpush1.bf16.msra.mxu0 %v1731
      %1751 = vmatprep.subr.bf16.mxu0 0
      %1752 = vmatpush1.bf16.msra.mxu0 %v1732
      %1753 = vmatprep.subr.bf16.mxu0 0
      %1754 = vmatpush1.bf16.msra.mxu0 %v1733
      %1755 = vmatprep.subr.bf16.mxu0 0
      %1756 = vmatpush1.bf16.msra.mxu0 %v1734
      %1757 = vmatprep.subr.bf16.mxu0 0
      %1758 = vmatpush1.bf16.msra.mxu0 %v1735
      %1759 = vmatprep.subr.bf16.mxu0 0
      %1760 = vmatpush1.bf16.msra.mxu0 %v1736
      %1761 = vmatprep.subr.bf16.mxu0 0
      %1762 = vmatpush1.bf16.msra.mxu0 0
      %1763 = vmatprep.subr.bf16.mxu0 0
      %1764 = vmatpush1.bf16.msra.mxu0 0
      %1765 = vmatprep.subr.bf16.mxu0 0
      %1766 = vmatpush1.bf16.msra.mxu0 0
      %1767 = vmatprep.subr.bf16.mxu0 0
      %1768 = vmatpush1.bf16.msra.mxu0 0
      %1769 = vmatprep.subr.bf16.mxu0 0
      %1770 = vmatpush1.bf16.msra.mxu0 0
      %1771 = vmatprep.subr.bf16.mxu0 0
      %1772 = vmatpush1.bf16.msra.mxu0 0
      %1773 = vmatprep.subr.bf16.mxu0 0
      %1774 = vmatpush1.bf16.msra.mxu0 0
      %1775 = vmatprep.subr.bf16.mxu0 0
      %1776 = vmatpush1.bf16.msra.mxu0 0
      %1777 = vmatprep.mubr.bf16.mxu0 0
      %1778 = vmatmul.mubr.bf16.gmra.mrb[0].mxu0 %v1685
      %v1779 = vpop.f32.mrb[0].mxu0
      %v1780 = vadd.f32 0.0, %v1779
      %v1781 = vpop.f32.mrb[0].mxu0
      %v1782 = vpop.f32.mrb[0].mxu0
      %v1783 = vadd.f32 0.0, %v1782
      %v1784 = vpop.f32.mrb[0].mxu0
      %1785 = vmatprep.mubr.bf16.mxu0 0
      %1786 = vmatmul.mubr.bf16.gmra.mrb[0].mxu0 %v1687
      %v1787 = vpop.f32.mrb[0].mxu0
      %v1788 = vadd.f32 0.0, %v1787
      %v1789 = vpop.f32.mrb[0].mxu0
      %v1790 = vpop.f32.mrb[0].mxu0
      %v1791 = vadd.f32 0.0, %v1790
      %v1792 = vpop.f32.mrb[0].mxu0
      %1793 = vmatprep.mubr.bf16.mxu0 0
      %1794 = vmatmul.mubr.bf16.gmra.mrb[0].mxu0 %v1689
      %v1795 = vpop.f32.mrb[0].mxu0
      %v1796 = vadd.f32 0.0, %v1795
      %v1797 = vpop.f32.mrb[0].mxu0
      %v1798 = vpop.f32.mrb[0].mxu0
      %v1799 = vadd.f32 0.0, %v1798
      %v1800 = vpop.f32.mrb[0].mxu0
      %1801 = vmatprep.mubr.bf16.mxu0 0
      %1802 = vmatmul.mubr.bf16.gmra.mrb[0].mxu0 %v1691
      %v1803 = vpop.f32.mrb[0].mxu0
      %v1804 = vadd.f32 0.0, %v1803
      %v1805 = vpop.f32.mrb[0].mxu0
      %v1806 = vpop.f32.mrb[0].mxu0
      %v1807 = vadd.f32 0.0, %v1806
      %v1808 = vpop.f32.mrb[0].mxu0
      %1809 = vmatprep.mubr.bf16.mxu0 0
      %1810 = vmatmul.mubr.bf16.gmra.mrb[0].mxu0 %v1690
      %v1811 = vpop.f32.mrb[0].mxu0
      %v1812 = vadd.f32 0.0, %v1811
      %v1813 = vpop.f32.mrb[0].mxu0
      %v1814 = vpop.f32.mrb[0].mxu0
      %v1815 = vpop.f32.mrb[0].mxu0
      %1816 = vdwg.mxu0
      %v1817 = vadd.f32 %v1623, %v1780
      %v1818 = vadd.f32 %v1624, %v1783
      %v1819 = vadd.f32 %v1625, %v1788
      %v1820 = vadd.f32 %v1626, %v1791
      %v1821 = vadd.f32 %v1627, %v1796
      %v1822 = vadd.f32 %v1628, %v1799
      %v1823 = vadd.f32 %v1629, %v1804
      %v1824 = vadd.f32 %v1630, %v1807
      %v1825 = vadd.f32 %v1631, %v1812
      %v1826 = vld [vmem:[%s165 + $0x4] sm:$0xe]
      %v1827 = vld [vmem:[%s1 + $0x200] sm:$0xf]
      %v1828 = vld [vmem:[%s1 + $0x204] sm:$0xf]
      %v1829 = vld [vmem:[%s1 + $0x208] sm:$0xf]
      %v1830 = vld [vmem:[%s1 + $0x20c] sm:$0xf]
      %v1831 = vld [vmem:[%s1 + $0x210] sm:$0xf]
      %v1832 = vld [vmem:[%s1 + $0x214] sm:$0xf]
      %v1833 = vld [vmem:[%s1 + $0x218] sm:$0xf]
      %v1834 = vld [vmem:[%s1 + $0x21c] sm:$0xf]
      %v1835 = vld [vmem:[%s1 + $0x220] sm:$0xf]
      %v1836 = vld [vmem:[%s1 + $0x224] sm:$0xf]
      %v1837 = vld [vmem:[%s1 + $0x228] sm:$0xf]
      %v1838 = vld [vmem:[%s1 + $0x22c] sm:$0xf]
      %v1839 = vld [vmem:[%s1 + $0x230] sm:$0xf]
      %v1840 = vld [vmem:[%s1 + $0x234] sm:$0xf]
      %v1841 = vld [vmem:[%s1 + $0x238] sm:$0xf]
      %v1842 = vld [vmem:[%s1 + $0x23c] sm:$0xf]
      %v1844 = vunpack.c.l.b16 %v1826
      %v1845 = vpack.c.b16 %v1445, %v1844
      %v1846 = vrot.slane %v1845, 1
      %v1847 = vrot.slane %v1455, 1
      %v1848 = vsel %vm836, %v1846, %v1847
      %v1849 = vrot.slane %v1456, 1
      %v1850 = vsel %vm836, %v1847, %v1849
      %v1851 = vrot.slane %v1457, 1
      %v1852 = vsel %vm836, %v1849, %v1851
      %v1853 = vrot.slane %v1458, 1
      %v1854 = vsel %vm836, %v1851, %v1853
      %v1876 = vunpack.c.l.b16 %v1827
      %v1877 = vunpack.c.l.b16 %v1828
      %v1878 = vunpack.c.l.b16 %v1829
      %v1879 = vunpack.c.l.b16 %v1830
      %v1880 = vunpack.c.l.b16 %v1831
      %v1881 = vunpack.c.l.b16 %v1832
      %v1882 = vunpack.c.l.b16 %v1833
      %v1883 = vunpack.c.l.b16 %v1834
      %v1884 = vunpack.c.l.b16 %v1835
      %v1885 = vunpack.c.l.b16 %v1836
      %v1886 = vunpack.c.l.b16 %v1837
      %v1887 = vunpack.c.l.b16 %v1838
      %v1888 = vunpack.c.l.b16 %v1839
      %v1889 = vunpack.c.l.b16 %v1840
      %v1890 = vunpack.c.l.b16 %v1841
      %v1891 = vunpack.c.l.b16 %v1842
      %v1892 = vpack.c.b16 %v1877, %v1876
      %v1893 = vpack.c.b16 %v1879, %v1878
      %v1894 = vpack.c.b16 %v1881, %v1880
      %v1895 = vpack.c.b16 %v1883, %v1882
      %v1896 = vpack.c.b16 %v1885, %v1884
      %v1897 = vpack.c.b16 %v1887, %v1886
      %v1898 = vpack.c.b16 %v1889, %v1888
      %v1899 = vpack.c.b16 %v1891, %v1890
      %1908 = vmatprep.subr.bf16.mxu0 0
      %1909 = vmatpush1.bf16.msra.mxu0 %v1892
      %1910 = vmatprep.subr.bf16.mxu0 0
      %1911 = vmatpush1.bf16.msra.mxu0 %v1893
      %1912 = vmatprep.subr.bf16.mxu0 0
      %1913 = vmatpush1.bf16.msra.mxu0 %v1894
      %1914 = vmatprep.subr.bf16.mxu0 0
      %1915 = vmatpush1.bf16.msra.mxu0 %v1895
      %1916 = vmatprep.subr.bf16.mxu0 0
      %1917 = vmatpush1.bf16.msra.mxu0 %v1896
      %1918 = vmatprep.subr.bf16.mxu0 0
      %1919 = vmatpush1.bf16.msra.mxu0 %v1897
      %1920 = vmatprep.subr.bf16.mxu0 0
      %1921 = vmatpush1.bf16.msra.mxu0 %v1898
      %1922 = vmatprep.subr.bf16.mxu0 0
      %1923 = vmatpush1.bf16.msra.mxu0 %v1899
      %1924 = vmatprep.subr.bf16.mxu0 0
      %1925 = vmatpush1.bf16.msra.mxu0 0
      %1926 = vmatprep.subr.bf16.mxu0 0
      %1927 = vmatpush1.bf16.msra.mxu0 0
      %1928 = vmatprep.subr.bf16.mxu0 0
      %1929 = vmatpush1.bf16.msra.mxu0 0
      %1930 = vmatprep.subr.bf16.mxu0 0
      %1931 = vmatpush1.bf16.msra.mxu0 0
      %1932 = vmatprep.subr.bf16.mxu0 0
      %1933 = vmatpush1.bf16.msra.mxu0 0
      %1934 = vmatprep.subr.bf16.mxu0 0
      %1935 = vmatpush1.bf16.msra.mxu0 0
      %1936 = vmatprep.subr.bf16.mxu0 0
      %1937 = vmatpush1.bf16.msra.mxu0 0
      %1938 = vmatprep.subr.bf16.mxu0 0
      %1939 = vmatpush1.bf16.msra.mxu0 0
      %1940 = vmatprep.mubr.bf16.mxu0 0
      %1941 = vmatmul.mubr.bf16.gmra.mrb[0].mxu0 %v1848
      %v1942 = vpop.f32.mrb[0].mxu0
      %v1943 = vadd.f32 0.0, %v1942
      %v1944 = vpop.f32.mrb[0].mxu0
      %v1945 = vpop.f32.mrb[0].mxu0
      %v1946 = vadd.f32 0.0, %v1945
      %v1947 = vpop.f32.mrb[0].mxu0
      %1948 = vmatprep.mubr.bf16.mxu0 0
      %1949 = vmatmul.mubr.bf16.gmra.mrb[0].mxu0 %v1850
      %v1950 = vpop.f32.mrb[0].mxu0
      %v1951 = vadd.f32 0.0, %v1950
      %v1952 = vpop.f32.mrb[0].mxu0
      %v1953 = vpop.f32.mrb[0].mxu0
      %v1954 = vadd.f32 0.0, %v1953
      %v1955 = vpop.f32.mrb[0].mxu0
      %1956 = vmatprep.mubr.bf16.mxu0 0
      %1957 = vmatmul.mubr.bf16.gmra.mrb[0].mxu0 %v1852
      %v1958 = vpop.f32.mrb[0].mxu0
      %v1959 = vadd.f32 0.0, %v1958
      %v1960 = vpop.f32.mrb[0].mxu0
      %v1961 = vpop.f32.mrb[0].mxu0
      %v1962 = vadd.f32 0.0, %v1961
      %v1963 = vpop.f32.mrb[0].mxu0
      %1964 = vmatprep.mubr.bf16.mxu0 0
      %1965 = vmatmul.mubr.bf16.gmra.mrb[0].mxu0 %v1854
      %v1966 = vpop.f32.mrb[0].mxu0
      %v1967 = vadd.f32 0.0, %v1966
      %v1968 = vpop.f32.mrb[0].mxu0
      %v1969 = vpop.f32.mrb[0].mxu0
      %v1970 = vadd.f32 0.0, %v1969
      %v1971 = vpop.f32.mrb[0].mxu0
      %1972 = vmatprep.mubr.bf16.mxu0 0
      %1973 = vmatmul.mubr.bf16.gmra.mrb[0].mxu0 %v1853
      %v1974 = vpop.f32.mrb[0].mxu0
      %v1975 = vadd.f32 0.0, %v1974
      %v1976 = vpop.f32.mrb[0].mxu0
      %v1977 = vpop.f32.mrb[0].mxu0
      %v1978 = vpop.f32.mrb[0].mxu0
      %1979 = vdwg.mxu0
      %v1980 = vadd.f32 %v1817, %v1943
      %v1981 = vadd.f32 %v1818, %v1946
      %v1982 = vadd.f32 %v1819, %v1951
      %v1983 = vadd.f32 %v1820, %v1954
      %v1984 = vadd.f32 %v1821, %v1959
      %v1985 = vadd.f32 %v1822, %v1962
      %v1986 = vadd.f32 %v1823, %v1967
      %v1987 = vadd.f32 %v1824, %v1970
      %v1988 = vadd.f32 %v1825, %v1975
      %v1989 = vld [vmem:[%s2] sm:$0x1]
      %v1991 = vlaneseq
      %v1992 = vshrl.u32 %v1991, 7
      %v1993 = vsub.s32 0, %v1992
      %v1994 = vrot.slane %v1989, %v1993
      %v1996 = vadd.f32 %v1980, %v1994
      %v1997 = vadd.f32 %v1981, %v1994
      %v1998 = vadd.f32 %v1982, %v1994
      %v1999 = vadd.f32 %v1983, %v1994
      %v2000 = vadd.f32 %v1984, %v1994
      %v2001 = vadd.f32 %v1985, %v1994
      %v2002 = vadd.f32 %v1986, %v1994
      %v2003 = vadd.f32 %v1987, %v1994
      %v2004 = vadd.f32 %v1988, %v1994
      %v2005 = vmul.f32 %v1996, %v1996
      %v2006 = vmul.f32 %v1997, %v1997
      %v2007 = vmul.f32 %v1998, %v1998
      %v2008 = vmul.f32 %v1999, %v1999
      %v2009 = vmul.f32 %v2000, %v2000
      %v2010 = vmul.f32 %v2001, %v2001
      %v2011 = vmul.f32 %v2002, %v2002
      %v2012 = vmul.f32 %v2003, %v2003
      %v2013 = vmul.f32 %v2004, %v2004
      %v2014 = vmul.f32 %v1996, %v2005
      %v2015 = vmul.f32 %v1997, %v2006
      %v2016 = vmul.f32 %v1998, %v2007
      %v2017 = vmul.f32 %v1999, %v2008
      %v2018 = vmul.f32 %v2000, %v2009
      %v2019 = vmul.f32 %v2001, %v2010
      %v2020 = vmul.f32 %v2002, %v2011
      %v2021 = vmul.f32 %v2003, %v2012
      %v2022 = vmul.f32 %v2004, %v2013
      %v2023 = vmul.f32 %v2014, 0.044715
      %v2024 = vmul.f32 %v2015, 0.044715
      %v2025 = vmul.f32 %v2016, 0.044715
      %v2026 = vmul.f32 %v2017, 0.044715
      %v2027 = vmul.f32 %v2018, 0.044715
      %v2028 = vmul.f32 %v2019, 0.044715
      %v2029 = vmul.f32 %v2020, 0.044715
      %v2030 = vmul.f32 %v2021, 0.044715
      %v2031 = vmul.f32 %v2022, 0.044715
      %v2032 = vadd.f32 %v1996, %v2023
      %v2033 = vadd.f32 %v1997, %v2024
      %v2034 = vadd.f32 %v1998, %v2025
      %v2035 = vadd.f32 %v1999, %v2026
      %v2036 = vadd.f32 %v2000, %v2027
      %v2037 = vadd.f32 %v2001, %v2028
      %v2038 = vadd.f32 %v2002, %v2029
      %v2039 = vadd.f32 %v2003, %v2030
      %v2040 = vadd.f32 %v2004, %v2031
      %v2041 = vmul.f32 %v2032, 0.7978846
      %v2042 = vmul.f32 %v2033, 0.7978846
      %v2043 = vmul.f32 %v2034, 0.7978846
      %v2044 = vmul.f32 %v2035, 0.7978846
      %v2045 = vmul.f32 %v2036, 0.7978846
      %v2046 = vmul.f32 %v2037, 0.7978846
      %v2047 = vmul.f32 %v2038, 0.7978846
      %v2048 = vmul.f32 %v2039, 0.7978846
      %v2049 = vmul.f32 %v2040, 0.7978846
      %v2050 = vtanh.pop %v2041
      %v2051 = vtanh.pop %v2042
      %v2052 = vtanh.pop %v2043
      %v2053 = vtanh.pop %v2044
      %v2054 = vtanh.pop %v2045
      %v2055 = vtanh.pop %v2046
      %v2056 = vtanh.pop %v2047
      %v2057 = vtanh.pop %v2048
      %v2058 = vtanh.pop %v2049
      %v2059 = vadd.f32 %v2050, 1.0
      %v2060 = vadd.f32 %v2051, 1.0
      %v2061 = vadd.f32 %v2052, 1.0
      %v2062 = vadd.f32 %v2053, 1.0
      %v2063 = vadd.f32 %v2054, 1.0
      %v2064 = vadd.f32 %v2055, 1.0
      %v2065 = vadd.f32 %v2056, 1.0
      %v2066 = vadd.f32 %v2057, 1.0
      %v2067 = vadd.f32 %v2058, 1.0
      %v2068 = vmul.f32 %v2059, 0.5
      %v2069 = vmul.f32 %v2060, 0.5
      %v2070 = vmul.f32 %v2061, 0.5
      %v2071 = vmul.f32 %v2062, 0.5
      %v2072 = vmul.f32 %v2063, 0.5
      %v2073 = vmul.f32 %v2064, 0.5
      %v2074 = vmul.f32 %v2065, 0.5
      %v2075 = vmul.f32 %v2066, 0.5
      %v2076 = vmul.f32 %v2067, 0.5
      %v2077 = vmul.f32 %v1996, %v2068
      %v2078 = vmul.f32 %v1997, %v2069
      %v2079 = vmul.f32 %v1998, %v2070
      %v2080 = vmul.f32 %v1999, %v2071
      %v2081 = vmul.f32 %v2000, %v2072
      %v2082 = vmul.f32 %v2001, %v2073
      %v2083 = vmul.f32 %v2002, %v2074
      %v2084 = vmul.f32 %v2003, %v2075
      %v2085 = vmul.f32 %v2004, %v2076
      %v2086 = vmul.f32 %v2077, 1.7015043
      %v2087 = vmul.f32 %v2078, 1.7015043
      %v2088 = vmul.f32 %v2079, 1.7015043
      %v2089 = vmul.f32 %v2080, 1.7015043
      %v2090 = vmul.f32 %v2081, 1.7015043
      %v2091 = vmul.f32 %v2082, 1.7015043
      %v2092 = vmul.f32 %v2083, 1.7015043
      %v2093 = vmul.f32 %v2084, 1.7015043
      %v2094 = vmul.f32 %v2085, 1.7015043
      %v2095 = vpack.c.bf16 %v2087, %v2086
      %v2096 = vpack.c.bf16 %v2089, %v2088
      %v2097 = vpack.c.bf16 %v2091, %v2090
      %v2098 = vpack.c.bf16 %v2093, %v2092
      %v2099 = vpack.c.bf16 %v2094, %v2094
      %v2105 = vunpack.c.l.b16 %v2095
      %v2106 = vunpack.c.h.b16 %v2095
      %v2107 = vunpack.c.l.b16 %v2096
      %v2108 = vunpack.c.h.b16 %v2096
      %v2109 = vunpack.c.l.b16 %v2097
      %v2110 = vunpack.c.h.b16 %v2097
      %v2111 = vunpack.c.l.b16 %v2098
      %v2112 = vunpack.c.h.b16 %v2098
      %v2113 = vunpack.c.l.b16 %v2099
      %v2114 = vpack.c.b16 %v2105, %v2105
      %v2115 = vpack.c.b16 %v2106, %v2106
      %v2116 = vpack.c.b16 %v2107, %v2107
      %v2117 = vpack.c.b16 %v2108, %v2108
      %v2118 = vpack.c.b16 %v2109, %v2109
      %v2119 = vpack.c.b16 %v2110, %v2110
      %v2120 = vpack.c.b16 %v2111, %v2111
      %v2121 = vpack.c.b16 %v2112, %v2112
      %v2122 = vpack.c.b16 %v2113, %v2113
      %2132 = vst [vmem:[%s170] sm:$0xf] %v2114
      %2133 = vst [vmem:[%s170 + $0x4] sm:$0xf] %v2115
      %2134 = vst [vmem:[%s170 + $0x8] sm:$0xf] %v2116
      %2135 = vst [vmem:[%s170 + $0xc] sm:$0xf] %v2117
      %2136 = vst [vmem:[%s170 + $0x10] sm:$0xf] %v2118
      %2137 = vst [vmem:[%s170 + $0x14] sm:$0xf] %v2119
      %2138 = vst [vmem:[%s170 + $0x18] sm:$0xf] %v2120
      %2139 = vst [vmem:[%s170 + $0x1c] sm:$0xf] %v2121
      %2140 = vst [vmem:[%s170 + $0x20] sm:$0xf] %v2122
      %p2141 = scmp.lt.s32.totalorder %s14, 1
      %s2142 = scalar_select %p2141, %s14, 1
      %s2143 = smul.addr %s2142, 9
      %s2144 = smul.addr %s2143, 4
      %s2145 = scalar_lea.vmem %s3, %s2144
      // Predicated region
      $region33: #{_forward_impl.3} parent=31 // pred_check
        %p2146 = pneg %p100
      $region34: #{_forward_impl.3} parent=31 // pred_check_branch
        %2148 = sbr.rel (%p2146) target = $region36
      $region35: #{_forward_impl.3} parent=31 // pred_region
        _
      $region36: #{_forward_impl.3} parent=31 // pred_fallthru
        _
    $region32: #{_forward_impl.3} parent=5 // pred_fallthru
      _
    %p2149 = scmp.le.s32.totalorder 2, %s9
    // Predicated region
    $region37: #{_forward_impl.3} parent=5 // pred_check
      %p2150 = pneg %p2149
    $region38: #{_forward_impl.3} parent=5 // pred_check_branch
      %2152 = sbr.rel (%p2150) target = $region40
    $region39: #{_forward_impl.3} parent=5 // pred_region
      %s2153 = ssub.s32 %s9, 2
      // Predicated region
      $region41: #{_forward_impl.3} parent=39 // pred_check
        %p2154 = pneg %p106
      $region42: #{_forward_impl.3} parent=39 // pred_check_branch
        %2156 = sbr.rel (%p2154) target = $region44
      $region43: #{_forward_impl.3} parent=39 // pred_region
        %p2157 = scmp.lt.s32.totalorder %s15, 1
        %s2158 = scalar_select %p2157, %s15, 1
        %s2159 = smul.addr %s2158, 9
        %s2160 = smul.addr %s2159, 4
        %s2161 = scalar_lea.vmem %s3, %s2160
      $region44: #{_forward_impl.3} parent=39 // pred_fallthru
        _
    $region40: #{_forward_impl.3} parent=5 // pred_fallthru
      _
  $region6: #{_forward_impl.3} parent=0 // loop_footer
    %s13 = sadd.s32 1, %s9
  $region7: #{_forward_impl.3} parent=0 // loop_footer_branch
    %8 = sbr.rel target = $region3
  $region8: #{_forward_impl.3} parent=0 // loop_exit
    _

// kernel: _forward_impl.4
$region0: #{_forward_impl.4}
  #allocation0 [shape = 'u32[]', space=smem, size = 0x4, offset = 0x4, fixed_abs, tag = 'smem constant byte address 0x4 - core index']
  #allocation1 [shape = 'u32[144,128]{1,0:T(1,128)}', space=vmem, size = 0x12000, scoped, tag = 'internal scratch']
  %s0 = inlined_call_operand.vmem [shape: bf16[2,104,128], index: 0, kind: input, shape index: {}]
  %s1 = inlined_call_operand.vmem [shape: bf16[1152,128], index: 1, kind: input, shape index: {}]
  %s2 = inlined_call_operand.vmem [shape: f32[1,128], index: 2, kind: input, shape index: {}]
  %s3 = inlined_call_operand.vmem [shape: bf16[2,80,128], index: 3, kind: output, shape index: {}]
  %s4 = sld [smem:[#allocation0]]
  $region45: #{_forward_impl.4} parent=0
    _
  %s6 = ssub.s32 1, %s4
  %s7 = scalar_select 0, %s6, %s4
  loop: start=0, step=1, limit=4
  $region2: #{_forward_impl.4} parent=0 // loop_pre_header
    _
  $region3: #{_forward_impl.4} parent=0 // loop_header
    %s9 = sphi 0, %s13
    %p10 = scmp.ge.s32.totalorder %s9, 4
    %s19 = sphi 0, %s21
    %s22 = sphi 0, %s19
    %s23 = sphi 0, %s22
    %s39 = sphi 0, %s23
    %s43 = sphi 0, %s43
    %s45 = sphi 0, %s43
    %s46 = sphi 0, %s45
    %s60 = sphi 0, %s46
    %s64 = sphi 0, %s64
    %s66 = sphi 0, %s64
    %s67 = sphi 0, %s66
    %s81 = sphi 0, %s67
    %s87 = sphi 0, %s89
    %s90 = sphi 0, %s87
    %s91 = sphi 0, %s90
    %s107 = sphi 0, %s91
  $region4: #{_forward_impl.4} parent=0 // loop_header_branch
    %12 = sbr.rel (%p10) target = $region8
  $region5: #{_forward_impl.4} parent=0 // loop_body
    %s14 = ssub.s32 %s9, 1
    %s15 = ssub.s32 %s9, 2
    %s16 = sadd.s32 %s9, 1
    %s17 = ssub.s32 %s9, %s16
    %p18 = scmp.eq.s32.totalorder %s17, 0
    %s20 = sadd.s32 %s19, 1
    %s21 = scalar_select %p18, %s19, %s20
    %p24 = pneg %p18
    %p25 = scmp.eq.s32.totalorder %s9, 1
    %p26 = por %p24, %p25
    %p27 = scmp.ne.s32.totalorder %s19, %s22
    %p28 = scmp.eq.s32.totalorder %s9, 0
    %p29 = por %p27, %p28
    %p30 = scmp.ne.s32.totalorder %s19, %s22
    %p31 = scmp.eq.s32.totalorder %s14, 1
    %p32 = por %p30, %p31
    %p33 = scmp.ne.s32.totalorder %s22, %s23
    %p34 = scmp.eq.s32.totalorder %s14, 0
    %p35 = por %p33, %p34
    %p36 = scmp.ne.s32.totalorder %s22, %s23
    %p37 = scmp.eq.s32.totalorder %s15, 1
    %p38 = por %p36, %p37
    %p40 = scmp.ne.s32.totalorder %s23, %s39
    %p41 = scmp.eq.s32.totalorder %s15, 0
    %p42 = por %p40, %p41
    %s44 = sadd.s32 %s43, 1
    %p47 = scmp.eq.s32.totalorder %s9, 1
    %p48 = scmp.ne.s32.totalorder %s43, %s45
    %p49 = scmp.eq.s32.totalorder %s9, 0
    %p50 = por %p48, %p49
    %p51 = scmp.ne.s32.totalorder %s43, %s45
    %p52 = scmp.eq.s32.totalorder %s14, 1
    %p53 = por %p51, %p52
    %p54 = scmp.ne.s32.totalorder %s45, %s46
    %p55 = scmp.eq.s32.totalorder %s14, 0
    %p56 = por %p54, %p55
    %p57 = scmp.ne.s32.totalorder %s45, %s46
    %p58 = scmp.eq.s32.totalorder %s15, 1
    %p59 = por %p57, %p58
    %p61 = scmp.ne.s32.totalorder %s46, %s60
    %p62 = scmp.eq.s32.totalorder %s15, 0
    %p63 = por %p61, %p62
    %s65 = sadd.s32 %s64, 1
    %p68 = scmp.eq.s32.totalorder %s9, 1
    %p69 = scmp.ne.s32.totalorder %s64, %s66
    %p70 = scmp.eq.s32.totalorder %s9, 0
    %p71 = por %p69, %p70
    %p72 = scmp.ne.s32.totalorder %s64, %s66
    %p73 = scmp.eq.s32.totalorder %s14, 1
    %p74 = por %p72, %p73
    %p75 = scmp.ne.s32.totalorder %s66, %s67
    %p76 = scmp.eq.s32.totalorder %s14, 0
    %p77 = por %p75, %p76
    %p78 = scmp.ne.s32.totalorder %s66, %s67
    %p79 = scmp.eq.s32.totalorder %s15, 1
    %p80 = por %p78, %p79
    %p82 = scmp.ne.s32.totalorder %s67, %s81
    %p83 = scmp.eq.s32.totalorder %s15, 0
    %p84 = por %p82, %p83
    %s85 = ssub.s32 %s9, %s16
    %p86 = scmp.eq.s32.totalorder %s85, 0
    %s88 = sadd.s32 %s87, 1
    %s89 = scalar_select %p86, %s87, %s88
    %p92 = pneg %p86
    %p93 = scmp.eq.s32.totalorder %s9, 1
    %p94 = por %p92, %p93
    %p95 = scmp.ne.s32.totalorder %s87, %s90
    %p96 = scmp.eq.s32.totalorder %s9, 0
    %p97 = por %p95, %p96
    %p98 = scmp.ne.s32.totalorder %s87, %s90
    %p99 = scmp.eq.s32.totalorder %s14, 1
    %p100 = por %p98, %p99
    %p101 = scmp.ne.s32.totalorder %s90, %s91
    %p102 = scmp.eq.s32.totalorder %s14, 0
    %p103 = por %p101, %p102
    %p104 = scmp.ne.s32.totalorder %s90, %s91
    %p105 = scmp.eq.s32.totalorder %s15, 1
    %p106 = por %p104, %p105
    %p108 = scmp.ne.s32.totalorder %s91, %s107
    %p109 = scmp.eq.s32.totalorder %s15, 0
    %p110 = por %p108, %p109
    %p111 = scmp.le.s32.totalorder 1, %s9
    %p112 = scmp.lt.s32.totalorder %s9, 3
    %p113 = pnand %p111, %p112
    %p114 = pneg %p113
    // Predicated region
    $region9: #{_forward_impl.4} parent=5 // pred_check
      _
    $region10: #{_forward_impl.4} parent=5 // pred_check_branch
      %116 = sbr.rel (%p113) target = $region12
    $region11: #{_forward_impl.4} parent=5 // pred_region
      %s117 = ssub.s32 %s9, 1
      // Predicated region
      $region13: #{_forward_impl.4} parent=11 // pred_check
        %p118 = pneg %p56
      $region14: #{_forward_impl.4} parent=11 // pred_check_branch
        %120 = sbr.rel (%p118) target = $region16
      $region15: #{_forward_impl.4} parent=11 // pred_region
        _
      $region16: #{_forward_impl.4} parent=11 // pred_fallthru
        _
      // Predicated region
      $region17: #{_forward_impl.4} parent=11 // pred_check
        %p121 = pneg %p77
      $region18: #{_forward_impl.4} parent=11 // pred_check_branch
        %123 = sbr.rel (%p121) target = $region20
      $region19: #{_forward_impl.4} parent=11 // pred_region
        _
      $region20: #{_forward_impl.4} parent=11 // pred_fallthru
        _
    $region12: #{_forward_impl.4} parent=5 // pred_fallthru
      _
    %p124 = scmp.lt.s32.totalorder %s9, 2
    // Predicated region
    $region21: #{_forward_impl.4} parent=5 // pred_check
      %p125 = pneg %p124
    $region22: #{_forward_impl.4} parent=5 // pred_check_branch
      %127 = sbr.rel (%p125) target = $region24
    $region23: #{_forward_impl.4} parent=5 // pred_region
      // Predicated region
      $region25: #{_forward_impl.4} parent=23 // pred_check
        %p128 = pneg %p29
      $region26: #{_forward_impl.4} parent=23 // pred_check_branch
        %130 = sbr.rel (%p128) target = $region28
      $region27: #{_forward_impl.4} parent=23 // pred_region
        %p131 = scmp.lt.s32.totalorder %s9, 1
        %s132 = scalar_select %p131, %s9, 1
        %s133 = smul.addr %s132, 13
        %s134 = smul.addr %s133, 4
        %s135 = scalar_lea.vmem %s0, %s134
      $region28: #{_forward_impl.4} parent=23 // pred_fallthru
        _
    $region24: #{_forward_impl.4} parent=5 // pred_fallthru
      _
    %p136 = scmp.le.s32.totalorder 1, %s9
    %p137 = scmp.lt.s32.totalorder %s9, 3
    %p138 = pnand %p136, %p137
    %p139 = pneg %p138
    // Predicated region
    $region29: #{_forward_impl.4} parent=5 // pred_check
      _
    $region30: #{_forward_impl.4} parent=5 // pred_check_branch
      %141 = sbr.rel (%p138) target = $region32
    $region31: #{_forward_impl.4} parent=5 // pred_region
      %s142 = ssub.s32 %s9, 1
      %p143 = scmp.lt.s32.totalorder %s14, 1
      %s144 = scalar_select %p143, %s14, 1
      %s145 = smul.addr %s144, 13
      %s146 = smul.addr %s145, 4
      %s147 = scalar_lea.vmem %s0, %s146
      %p148 = pneg %p35
      %p149 = pneg %p32
      %p150 = pneg %p56
      %p151 = pneg %p53
      %p152 = pneg %p77
      %p153 = pneg %p74
      %p154 = pneg %p103
      %p155 = pneg %p100
      %p156 = scmp.lt.s32.totalorder %s14, 1
      %s157 = scalar_select %p156, %s14, 1
      %s158 = smul.addr %s157, 10
      %s159 = smul.addr %s158, 4
      %s160 = scalar_lea.vmem %s3, %s159
      %p161 = scmp.lt.s32.totalorder %s14, 1
      %s162 = scalar_select %p161, %s14, 1
      %s163 = smul.addr %s162, 13
      %s164 = smul.addr %s163, 4
      %s165 = scalar_lea.vmem %s0, %s164
      %p166 = scmp.lt.s32.totalorder %s14, 1
      %s167 = scalar_select %p166, %s14, 1
      %s168 = smul.addr %s167, 10
      %s169 = smul.addr %s168, 4
      %s170 = scalar_lea.vmem %s3, %s169
      %v172 = vld [vmem:[%s165] sm:$0xf]
      %v173 = vld [vmem:[%s165 + $0x4] sm:$0xf]
      %v174 = vld [vmem:[%s165 + $0x8] sm:$0xf]
      %v175 = vld [vmem:[%s165 + $0xc] sm:$0xf]
      %v176 = vld [vmem:[%s165 + $0x10] sm:$0xf]
      %v177 = vld [vmem:[%s165 + $0x14] sm:$0xf]
      %v178 = vld [vmem:[%s165 + $0x18] sm:$0xf]
      %v179 = vld [vmem:[%s165 + $0x1c] sm:$0xf]
      %v180 = vld [vmem:[%s165 + $0x20] sm:$0xf]
      %v181 = vld [vmem:[%s165 + $0x24] sm:$0xf]
      %v182 = vld [vmem:[%s1] sm:$0xf]
      %v183 = vld [vmem:[%s1 + $0x4] sm:$0xf]
      %v184 = vld [vmem:[%s1 + $0x8] sm:$0xf]
      %v185 = vld [vmem:[%s1 + $0xc] sm:$0xf]
      %v186 = vld [vmem:[%s1 + $0x10] sm:$0xf]
      %v187 = vld [vmem:[%s1 + $0x14] sm:$0xf]
      %v188 = vld [vmem:[%s1 + $0x18] sm:$0xf]
      %v189 = vld [vmem:[%s1 + $0x1c] sm:$0xf]
      %v190 = vld [vmem:[%s1 + $0x20] sm:$0xf]
      %v191 = vld [vmem:[%s1 + $0x24] sm:$0xf]
      %v192 = vld [vmem:[%s1 + $0x28] sm:$0xf]
      %v193 = vld [vmem:[%s1 + $0x2c] sm:$0xf]
      %v194 = vld [vmem:[%s1 + $0x30] sm:$0xf]
      %v195 = vld [vmem:[%s1 + $0x34] sm:$0xf]
      %v196 = vld [vmem:[%s1 + $0x38] sm:$0xf]
      %v197 = vld [vmem:[%s1 + $0x3c] sm:$0xf]
      %v198 = vld [vmem:[%s165 + $0x28] sm:$0x1]
      %v199 = vld [vmem:[%s1 + $0x40] sm:$0xf]
      %v200 = vld [vmem:[%s1 + $0x44] sm:$0xf]
      %v201 = vld [vmem:[%s1 + $0x48] sm:$0xf]
      %v202 = vld [vmem:[%s1 + $0x4c] sm:$0xf]
      %v203 = vld [vmem:[%s1 + $0x50] sm:$0xf]
      %v204 = vld [vmem:[%s1 + $0x54] sm:$0xf]
      %v205 = vld [vmem:[%s1 + $0x58] sm:$0xf]
      %v206 = vld [vmem:[%s1 + $0x5c] sm:$0xf]
      %v207 = vld [vmem:[%s1 + $0x60] sm:$0xf]
      %v208 = vld [vmem:[%s1 + $0x64] sm:$0xf]
      %v209 = vld [vmem:[%s1 + $0x68] sm:$0xf]
      %v210 = vld [vmem:[%s1 + $0x6c] sm:$0xf]
      %v211 = vld [vmem:[%s1 + $0x70] sm:$0xf]
      %v212 = vld [vmem:[%s1 + $0x74] sm:$0xf]
      %v213 = vld [vmem:[%s1 + $0x78] sm:$0xf]
      %v214 = vld [vmem:[%s1 + $0x7c] sm:$0xf]
      %v226 = vunpack.c.l.b16 %v172
      %v227 = vunpack.c.l.b16 %v173
      %v228 = vunpack.c.l.b16 %v174
      %v229 = vunpack.c.l.b16 %v175
      %v230 = vunpack.c.l.b16 %v176
      %v231 = vunpack.c.l.b16 %v177
      %v232 = vunpack.c.l.b16 %v178
      %v233 = vunpack.c.l.b16 %v179
      %v234 = vunpack.c.l.b16 %v180
      %v235 = vunpack.c.l.b16 %v181
      %v236 = vunpack.c.l.b16 %v198
      %v237 = vpack.c.b16 %v227, %v226
      %v238 = vpack.c.b16 %v229, %v228
      %v239 = vpack.c.b16 %v231, %v230
      %v240 = vpack.c.b16 %v233, %v232
      %v241 = vpack.c.b16 %v235, %v234
      %v242 = vpack.c.b16 %v236, %v236
      %vm243 = vsmask.f32 7424
      %v245 = vshrl.u32 %v237, 16
      %v247 = vshll.u32 %v237, 16
      %v249 = vrot.slane %v247, 1
      %v250 = vor.u32 %v245, %v249
      %v252 = vshll.u32 %v238, 16
      %v254 = vrot.slane %v252, 1
      %v255 = vsel %vm243, %v250, %v254
      %v256 = vshrl.u32 %v238, 16
      %v258 = vor.u32 %v256, %v254
      %v260 = vshll.u32 %v239, 16
      %v262 = vrot.slane %v260, 1
      %v263 = vsel %vm243, %v258, %v262
      %v264 = vshrl.u32 %v239, 16
      %v266 = vor.u32 %v264, %v262
      %v268 = vshll.u32 %v240, 16
      %v270 = vrot.slane %v268, 1
      %v271 = vsel %vm243, %v266, %v270
      %v272 = vshrl.u32 %v240, 16
      %v274 = vor.u32 %v272, %v270
      %v276 = vshll.u32 %v241, 16
      %v278 = vrot.slane %v276, 1
      %v279 = vsel %vm243, %v274, %v278
      %v280 = vshrl.u32 %v241, 16
      %v282 = vor.u32 %v280, %v278
      %v284 = vshll.u32 %v242, 16
      %v286 = vrot.slane %v284, 1
      %v287 = vsel %vm243, %v282, %v286
      %v309 = vunpack.c.l.b16 %v199
      %v310 = vunpack.c.l.b16 %v200
      %v311 = vunpack.c.l.b16 %v201
      %v312 = vunpack.c.l.b16 %v202
      %v313 = vunpack.c.l.b16 %v203
      %v314 = vunpack.c.l.b16 %v204
      %v315 = vunpack.c.l.b16 %v205
      %v316 = vunpack.c.l.b16 %v206
      %v317 = vunpack.c.l.b16 %v207
      %v318 = vunpack.c.l.b16 %v208
      %v319 = vunpack.c.l.b16 %v209
      %v320 = vunpack.c.l.b16 %v210
      %v321 = vunpack.c.l.b16 %v211
      %v322 = vunpack.c.l.b16 %v212
      %v323 = vunpack.c.l.b16 %v213
      %v324 = vunpack.c.l.b16 %v214
      %v325 = vpack.c.b16 %v310, %v309
      %v326 = vpack.c.b16 %v312, %v311
      %v327 = vpack.c.b16 %v314, %v313
      %v328 = vpack.c.b16 %v316, %v315
      %v329 = vpack.c.b16 %v318, %v317
      %v330 = vpack.c.b16 %v320, %v319
      %v331 = vpack.c.b16 %v322, %v321
      %v332 = vpack.c.b16 %v324, %v323
      %341 = vmatprep.subr.bf16.mxu0 0
      %342 = vmatpush1.bf16.msra.mxu0 %v325
      %343 = vmatprep.subr.bf16.mxu0 0
      %344 = vmatpush1.bf16.msra.mxu0 %v326
      %345 = vmatprep.subr.bf16.mxu0 0
      %346 = vmatpush1.bf16.msra.mxu0 %v327
      %347 = vmatprep.subr.bf16.mxu0 0
      %348 = vmatpush1.bf16.msra.mxu0 %v328
      %349 = vmatprep.subr.bf16.mxu0 0
      %350 = vmatpush1.bf16.msra.mxu0 %v329
      %351 = vmatprep.subr.bf16.mxu0 0
      %352 = vmatpush1.bf16.msra.mxu0 %v330
      %353 = vmatprep.subr.bf16.mxu0 0
      %354 = vmatpush1.bf16.msra.mxu0 %v331
      %355 = vmatprep.subr.bf16.mxu0 0
      %356 = vmatpush1.bf16.msra.mxu0 %v332
      %357 = vmatprep.subr.bf16.mxu0 0
      %358 = vmatpush1.bf16.msra.mxu0 0
      %359 = vmatprep.subr.bf16.mxu0 0
      %360 = vmatpush1.bf16.msra.mxu0 0
      %361 = vmatprep.subr.bf16.mxu0 0
      %362 = vmatpush1.bf16.msra.mxu0 0
      %363 = vmatprep.subr.bf16.mxu0 0
      %364 = vmatpush1.bf16.msra.mxu0 0
      %365 = vmatprep.subr.bf16.mxu0 0
      %366 = vmatpush1.bf16.msra.mxu0 0
      %367 = vmatprep.subr.bf16.mxu0 0
      %368 = vmatpush1.bf16.msra.mxu0 0
      %369 = vmatprep.subr.bf16.mxu0 0
      %370 = vmatpush1.bf16.msra.mxu0 0
      %371 = vmatprep.subr.bf16.mxu0 0
      %372 = vmatpush1.bf16.msra.mxu0 0
      %373 = vmatprep.mubr.bf16.mxu0 0
      %374 = vmatmul.mubr.bf16.gmra.mrb[0].mxu0 %v255
      %v375 = vpop.f32.mrb[0].mxu0
      %v376 = vadd.f32 0.0, %v375
      %v377 = vpop.f32.mrb[0].mxu0
      %v378 = vpop.f32.mrb[0].mxu0
      %v379 = vadd.f32 0.0, %v378
      %v380 = vpop.f32.mrb[0].mxu0
      %381 = vmatprep.mubr.bf16.mxu0 0
      %382 = vmatmul.mubr.bf16.gmra.mrb[0].mxu0 %v263
      %v383 = vpop.f32.mrb[0].mxu0
      %v384 = vadd.f32 0.0, %v383
      %v385 = vpop.f32.mrb[0].mxu0
      %v386 = vpop.f32.mrb[0].mxu0
      %v387 = vadd.f32 0.0, %v386
      %v388 = vpop.f32.mrb[0].mxu0
      %389 = vmatprep.mubr.bf16.mxu0 0
      %390 = vmatmul.mubr.bf16.gmra.mrb[0].mxu0 %v271
      %v391 = vpop.f32.mrb[0].mxu0
      %v392 = vadd.f32 0.0, %v391
      %v393 = vpop.f32.mrb[0].mxu0
      %v394 = vpop.f32.mrb[0].mxu0
      %v395 = vadd.f32 0.0, %v394
      %v396 = vpop.f32.mrb[0].mxu0
      %397 = vmatprep.mubr.bf16.mxu0 0
      %398 = vmatmul.mubr.bf16.gmra.mrb[0].mxu0 %v279
      %v399 = vpop.f32.mrb[0].mxu0
      %v400 = vadd.f32 0.0, %v399
      %v401 = vpop.f32.mrb[0].mxu0
      %v402 = vpop.f32.mrb[0].mxu0
      %v403 = vadd.f32 0.0, %v402
      %v404 = vpop.f32.mrb[0].mxu0
      %405 = vmatprep.mubr.bf16.mxu0 0
      %406 = vmatmul.mubr.bf16.gmra.mrb[0].mxu0 %v287
      %v407 = vpop.f32.mrb[0].mxu0
      %v408 = vadd.f32 0.0, %v407
      %v409 = vpop.f32.mrb[0].mxu0
      %v410 = vpop.f32.mrb[0].mxu0
      %v411 = vadd.f32 0.0, %v410
      %v412 = vpop.f32.mrb[0].mxu0
      %413 = vdwg.mxu0
      %v435 = vunpack.c.l.b16 %v182
      %v436 = vunpack.c.l.b16 %v183
      %v437 = vunpack.c.l.b16 %v184
      %v438 = vunpack.c.l.b16 %v185
      %v439 = vunpack.c.l.b16 %v186
      %v440 = vunpack.c.l.b16 %v187
      %v441 = vunpack.c.l.b16 %v188
      %v442 = vunpack.c.l.b16 %v189
      %v443 = vunpack.c.l.b16 %v190
      %v444 = vunpack.c.l.b16 %v191
      %v445 = vunpack.c.l.b16 %v192
      %v446 = vunpack.c.l.b16 %v193
      %v447 = vunpack.c.l.b16 %v194
      %v448 = vunpack.c.l.b16 %v195
      %v449 = vunpack.c.l.b16 %v196
      %v450 = vunpack.c.l.b16 %v197
      %v451 = vpack.c.b16 %v436, %v435
      %v452 = vpack.c.b16 %v438, %v437
      %v453 = vpack.c.b16 %v440, %v439
      %v454 = vpack.c.b16 %v442, %v441
      %v455 = vpack.c.b16 %v444, %v443
      %v456 = vpack.c.b16 %v446, %v445
      %v457 = vpack.c.b16 %v448, %v447
      %v458 = vpack.c.b16 %v450, %v449
      %467 = vmatprep.subr.bf16.mxu0 0
      %468 = vmatpush1.bf16.msra.mxu0 %v451
      %469 = vmatprep.subr.bf16.mxu0 0
      %470 = vmatpush1.bf16.msra.mxu0 %v452
      %471 = vmatprep.subr.bf16.mxu0 0
      %472 = vmatpush1.bf16.msra.mxu0 %v453
      %473 = vmatprep.subr.bf16.mxu0 0
      %474 = vmatpush1.bf16.msra.mxu0 %v454
      %475 = vmatprep.subr.bf16.mxu0 0
      %476 = vmatpush1.bf16.msra.mxu0 %v455
      %477 = vmatprep.subr.bf16.mxu0 0
      %478 = vmatpush1.bf16.msra.mxu0 %v456
      %479 = vmatprep.subr.bf16.mxu0 0
      %480 = vmatpush1.bf16.msra.mxu0 %v457
      %481 = vmatprep.subr.bf16.mxu0 0
      %482 = vmatpush1.bf16.msra.mxu0 %v458
      %483 = vmatprep.subr.bf16.mxu0 0
      %484 = vmatpush1.bf16.msra.mxu0 0
      %485 = vmatprep.subr.bf16.mxu0 0
      %486 = vmatpush1.bf16.msra.mxu0 0
      %487 = vmatprep.subr.bf16.mxu0 0
      %488 = vmatpush1.bf16.msra.mxu0 0
      %489 = vmatprep.subr.bf16.mxu0 0
      %490 = vmatpush1.bf16.msra.mxu0 0
      %491 = vmatprep.subr.bf16.mxu0 0
      %492 = vmatpush1.bf16.msra.mxu0 0
      %493 = vmatprep.subr.bf16.mxu0 0
      %494 = vmatpush1.bf16.msra.mxu0 0
      %495 = vmatprep.subr.bf16.mxu0 0
      %496 = vmatpush1.bf16.msra.mxu0 0
      %497 = vmatprep.subr.bf16.mxu0 0
      %498 = vmatpush1.bf16.msra.mxu0 0
      %499 = vmatprep.mubr.bf16.mxu0 0
      %500 = vmatmul.mubr.bf16.gmra.mrb[0].mxu0 %v237
      %v501 = vpop.f32.mrb[0].mxu0
      %v502 = vadd.f32 %v376, %v501
      %v503 = vpop.f32.mrb[0].mxu0
      %v504 = vpop.f32.mrb[0].mxu0
      %v505 = vadd.f32 %v379, %v504
      %v506 = vpop.f32.mrb[0].mxu0
      %507 = vmatprep.mubr.bf16.mxu0 0
      %508 = vmatmul.mubr.bf16.gmra.mrb[0].mxu0 %v238
      %v509 = vpop.f32.mrb[0].mxu0
      %v510 = vadd.f32 %v384, %v509
      %v511 = vpop.f32.mrb[0].mxu0
      %v512 = vpop.f32.mrb[0].mxu0
      %v513 = vadd.f32 %v387, %v512
      %v514 = vpop.f32.mrb[0].mxu0
      %515 = vmatprep.mubr.bf16.mxu0 0
      %516 = vmatmul.mubr.bf16.gmra.mrb[0].mxu0 %v239
      %v517 = vpop.f32.mrb[0].mxu0
      %v518 = vadd.f32 %v392, %v517
      %v519 = vpop.f32.mrb[0].mxu0
      %v520 = vpop.f32.mrb[0].mxu0
      %v521 = vadd.f32 %v395, %v520
      %v522 = vpop.f32.mrb[0].mxu0
      %523 = vmatprep.mubr.bf16.mxu0 0
      %524 = vmatmul.mubr.bf16.gmra.mrb[0].mxu0 %v240
      %v525 = vpop.f32.mrb[0].mxu0
      %v526 = vadd.f32 %v400, %v525
      %v527 = vpop.f32.mrb[0].mxu0
      %v528 = vpop.f32.mrb[0].mxu0
      %v529 = vadd.f32 %v403, %v528
      %v530 = vpop.f32.mrb[0].mxu0
      %531 = vmatprep.mubr.bf16.mxu0 0
      %532 = vmatmul.mubr.bf16.gmra.mrb[0].mxu0 %v241
      %v533 = vpop.f32.mrb[0].mxu0
      %v534 = vadd.f32 %v408, %v533
      %v535 = vpop.f32.mrb[0].mxu0
      %v536 = vpop.f32.mrb[0].mxu0
      %v537 = vadd.f32 %v411, %v536
      %v538 = vpop.f32.mrb[0].mxu0
      %539 = vdwg.mxu0
      %v540 = vld [vmem:[%s165] sm:$0xe]
      %v541 = vld [vmem:[%s1 + $0x80] sm:$0xf]
      %v542 = vld [vmem:[%s1 + $0x84] sm:$0xf]
      %v543 = vld [vmem:[%s1 + $0x88] sm:$0xf]
      %v544 = vld [vmem:[%s1 + $0x8c] sm:$0xf]
      %v545 = vld [vmem:[%s1 + $0x90] sm:$0xf]
      %v546 = vld [vmem:[%s1 + $0x94] sm:$0xf]
      %v547 = vld [vmem:[%s1 + $0x98] sm:$0xf]
      %v548 = vld [vmem:[%s1 + $0x9c] sm:$0xf]
      %v549 = vld [vmem:[%s1 + $0xa0] sm:$0xf]
      %v550 = vld [vmem:[%s1 + $0xa4] sm:$0xf]
      %v551 = vld [vmem:[%s1 + $0xa8] sm:$0xf]
      %v552 = vld [vmem:[%s1 + $0xac] sm:$0xf]
      %v553 = vld [vmem:[%s1 + $0xb0] sm:$0xf]
      %v554 = vld [vmem:[%s1 + $0xb4] sm:$0xf]
      %v555 = vld [vmem:[%s1 + $0xb8] sm:$0xf]
      %v556 = vld [vmem:[%s1 + $0xbc] sm:$0xf]
      %v558 = vunpack.c.l.b16 %v540
      %v559 = vpack.c.b16 %v227, %v558
      %vm560 = vcmask 1046528
      %v561 = vrot.slane %v559, 1
      %v562 = vrot.slane %v238, 1
      %v563 = vsel %vm560, %v561, %v562
      %v564 = vrot.slane %v239, 1
      %v565 = vsel %vm560, %v562, %v564
      %v566 = vrot.slane %v240, 1
      %v567 = vsel %vm560, %v564, %v566
      %v568 = vrot.slane %v241, 1
      %v569 = vsel %vm560, %v566, %v568
      %v570 = vrot.slane %v242, 1
      %v571 = vsel %vm560, %v568, %v570
      %v593 = vunpack.c.l.b16 %v541
      %v594 = vunpack.c.l.b16 %v542
      %v595 = vunpack.c.l.b16 %v543
      %v596 = vunpack.c.l.b16 %v544
      %v597 = vunpack.c.l.b16 %v545
      %v598 = vunpack.c.l.b16 %v546
      %v599 = vunpack.c.l.b16 %v547
      %v600 = vunpack.c.l.b16 %v548
      %v601 = vunpack.c.l.b16 %v549
      %v602 = vunpack.c.l.b16 %v550
      %v603 = vunpack.c.l.b16 %v551
      %v604 = vunpack.c.l.b16 %v552
      %v605 = vunpack.c.l.b16 %v553
      %v606 = vunpack.c.l.b16 %v554
      %v607 = vunpack.c.l.b16 %v555
      %v608 = vunpack.c.l.b16 %v556
      %v609 = vpack.c.b16 %v594, %v593
      %v610 = vpack.c.b16 %v596, %v595
      %v611 = vpack.c.b16 %v598, %v597
      %v612 = vpack.c.b16 %v600, %v599
      %v613 = vpack.c.b16 %v602, %v601
      %v614 = vpack.c.b16 %v604, %v603
      %v615 = vpack.c.b16 %v606, %v605
      %v616 = vpack.c.b16 %v608, %v607
      %625 = vmatprep.subr.bf16.mxu0 0
      %626 = vmatpush1.bf16.msra.mxu0 %v609
      %627 = vmatprep.subr.bf16.mxu0 0
      %628 = vmatpush1.bf16.msra.mxu0 %v610
      %629 = vmatprep.subr.bf16.mxu0 0
      %630 = vmatpush1.bf16.msra.mxu0 %v611
      %631 = vmatprep.subr.bf16.mxu0 0
      %632 = vmatpush1.bf16.msra.mxu0 %v612
      %633 = vmatprep.subr.bf16.mxu0 0
      %634 = vmatpush1.bf16.msra.mxu0 %v613
      %635 = vmatprep.subr.bf16.mxu0 0
      %636 = vmatpush1.bf16.msra.mxu0 %v614
      %637 = vmatprep.subr.bf16.mxu0 0
      %638 = vmatpush1.bf16.msra.mxu0 %v615
      %639 = vmatprep.subr.bf16.mxu0 0
      %640 = vmatpush1.bf16.msra.mxu0 %v616
      %641 = vmatprep.subr.bf16.mxu0 0
      %642 = vmatpush1.bf16.msra.mxu0 0
      %643 = vmatprep.subr.bf16.mxu0 0
      %644 = vmatpush1.bf16.msra.mxu0 0
      %645 = vmatprep.subr.bf16.mxu0 0
      %646 = vmatpush1.bf16.msra.mxu0 0
      %647 = vmatprep.subr.bf16.mxu0 0
      %648 = vmatpush1.bf16.msra.mxu0 0
      %649 = vmatprep.subr.bf16.mxu0 0
      %650 = vmatpush1.bf16.msra.mxu0 0
      %651 = vmatprep.subr.bf16.mxu0 0
      %652 = vmatpush1.bf16.msra.mxu0 0
      %653 = vmatprep.subr.bf16.mxu0 0
      %654 = vmatpush1.bf16.msra.mxu0 0
      %655 = vmatprep.subr.bf16.mxu0 0
      %656 = vmatpush1.bf16.msra.mxu0 0
      %657 = vmatprep.mubr.bf16.mxu0 0
      %658 = vmatmul.mubr.bf16.gmra.mrb[0].mxu0 %v563
      %v659 = vpop.f32.mrb[0].mxu0
      %v660 = vadd.f32 0.0, %v659
      %v661 = vpop.f32.mrb[0].mxu0
      %v662 = vpop.f32.mrb[0].mxu0
      %v663 = vadd.f32 0.0, %v662
      %v664 = vpop.f32.mrb[0].mxu0
      %665 = vmatprep.mubr.bf16.mxu0 0
      %666 = vmatmul.mubr.bf16.gmra.mrb[0].mxu0 %v565
      %v667 = vpop.f32.mrb[0].mxu0
      %v668 = vadd.f32 0.0, %v667
      %v669 = vpop.f32.mrb[0].mxu0
      %v670 = vpop.f32.mrb[0].mxu0
      %v671 = vadd.f32 0.0, %v670
      %v672 = vpop.f32.mrb[0].mxu0
      %673 = vmatprep.mubr.bf16.mxu0 0
      %674 = vmatmul.mubr.bf16.gmra.mrb[0].mxu0 %v567
      %v675 = vpop.f32.mrb[0].mxu0
      %v676 = vadd.f32 0.0, %v675
      %v677 = vpop.f32.mrb[0].mxu0
      %v678 = vpop.f32.mrb[0].mxu0
      %v679 = vadd.f32 0.0, %v678
      %v680 = vpop.f32.mrb[0].mxu0
      %681 = vmatprep.mubr.bf16.mxu0 0
      %682 = vmatmul.mubr.bf16.gmra.mrb[0].mxu0 %v569
      %v683 = vpop.f32.mrb[0].mxu0
      %v684 = vadd.f32 0.0, %v683
      %v685 = vpop.f32.mrb[0].mxu0
      %v686 = vpop.f32.mrb[0].mxu0
      %v687 = vadd.f32 0.0, %v686
      %v688 = vpop.f32.mrb[0].mxu0
      %689 = vmatprep.mubr.bf16.mxu0 0
      %690 = vmatmul.mubr.bf16.gmra.mrb[0].mxu0 %v571
      %v691 = vpop.f32.mrb[0].mxu0
      %v692 = vadd.f32 0.0, %v691
      %v693 = vpop.f32.mrb[0].mxu0
      %v694 = vpop.f32.mrb[0].mxu0
      %v695 = vadd.f32 0.0, %v694
      %v696 = vpop.f32.mrb[0].mxu0
      %697 = vdwg.mxu0
      %v698 = vadd.f32 %v502, %v660
      %v699 = vadd.f32 %v505, %v663
      %v700 = vadd.f32 %v510, %v668
      %v701 = vadd.f32 %v513, %v671
      %v702 = vadd.f32 %v518, %v676
      %v703 = vadd.f32 %v521, %v679
      %v704 = vadd.f32 %v526, %v684
      %v705 = vadd.f32 %v529, %v687
      %v706 = vadd.f32 %v534, %v692
      %v707 = vadd.f32 %v537, %v695
      %v708 = vld [vmem:[%s165 + $0x4] sm:$0xe]
      %v709 = vld [vmem:[%s165 + $0x8] sm:$0xf]
      %v710 = vld [vmem:[%s165 + $0xc] sm:$0xf]
      %v711 = vld [vmem:[%s165 + $0x10] sm:$0xf]
      %v712 = vld [vmem:[%s165 + $0x14] sm:$0xf]
      %v713 = vld [vmem:[%s165 + $0x18] sm:$0xf]
      %v714 = vld [vmem:[%s165 + $0x1c] sm:$0xf]
      %v715 = vld [vmem:[%s165 + $0x20] sm:$0xf]
      %v716 = vld [vmem:[%s165 + $0x24] sm:$0xf]
      %v717 = vld [vmem:[%s165 + $0x28] sm:$0xf]
      %v718 = vld [vmem:[%s165 + $0x2c] sm:$0x1]
      %v719 = vld [vmem:[%s1 + $0xc0] sm:$0xf]
      %v720 = vld [vmem:[%s1 + $0xc4] sm:$0xf]
      %v721 = vld [vmem:[%s1 + $0xc8] sm:$0xf]
      %v722 = vld [vmem:[%s1 + $0xcc] sm:$0xf]
      %v723 = vld [vmem:[%s1 + $0xd0] sm:$0xf]
      %v724 = vld [vmem:[%s1 + $0xd4] sm:$0xf]
      %v725 = vld [vmem:[%s1 + $0xd8] sm:$0xf]
      %v726 = vld [vmem:[%s1 + $0xdc] sm:$0xf]
      %v727 = vld [vmem:[%s1 + $0xe0] sm:$0xf]
      %v728 = vld [vmem:[%s1 + $0xe4] sm:$0xf]
      %v729 = vld [vmem:[%s1 + $0xe8] sm:$0xf]
      %v730 = vld [vmem:[%s1 + $0xec] sm:$0xf]
      %v731 = vld [vmem:[%s1 + $0xf0] sm:$0xf]
      %v732 = vld [vmem:[%s1 + $0xf4] sm:$0xf]
      %v733 = vld [vmem:[%s1 + $0xf8] sm:$0xf]
      %v734 = vld [vmem:[%s1 + $0xfc] sm:$0xf]
      %v746 = vunpack.c.l.b16 %v708
      %v747 = vunpack.c.l.b16 %v709
      %v748 = vunpack.c.l.b16 %v710
      %v749 = vunpack.c.l.b16 %v711
      %v750 = vunpack.c.l.b16 %v712
      %v751 = vunpack.c.l.b16 %v713
      %v752 = vunpack.c.l.b16 %v714
      %v753 = vunpack.c.l.b16 %v715
      %v754 = vunpack.c.l.b16 %v716
      %v755 = vunpack.c.l.b16 %v717
      %v756 = vunpack.c.l.b16 %v718
      %v757 = vpack.c.b16 %v747, %v746
      %v758 = vpack.c.b16 %v749, %v748
      %v759 = vpack.c.b16 %v751, %v750
      %v760 = vpack.c.b16 %v753, %v752
      %v761 = vpack.c.b16 %v755, %v754
      %v762 = vpack.c.b16 %v756, %v756
      %v763 = vrot.slane %v757, 1
      %v764 = vrot.slane %v758, 1
      %v765 = vsel %vm560, %v763, %v764
      %v766 = vrot.slane %v759, 1
      %v767 = vsel %vm560, %v764, %v766
      %v768 = vrot.slane %v760, 1
      %v769 = vsel %vm560, %v766, %v768
      %v770 = vrot.slane %v761, 1
      %v771 = vsel %vm560, %v768, %v770
      %v772 = vrot.slane %v762, 1
      %v773 = vsel %vm560, %v770, %v772
      %v795 = vunpack.c.l.b16 %v719
      %v796 = vunpack.c.l.b16 %v720
      %v797 = vunpack.c.l.b16 %v721
      %v798 = vunpack.c.l.b16 %v722
      %v799 = vunpack.c.l.b16 %v723
      %v800 = vunpack.c.l.b16 %v724
      %v801 = vunpack.c.l.b16 %v725
      %v802 = vunpack.c.l.b16 %v726
      %v803 = vunpack.c.l.b16 %v727
      %v804 = vunpack.c.l.b16 %v728
      %v805 = vunpack.c.l.b16 %v729
      %v806 = vunpack.c.l.b16 %v730
      %v807 = vunpack.c.l.b16 %v731
      %v808 = vunpack.c.l.b16 %v732
      %v809 = vunpack.c.l.b16 %v733
      %v810 = vunpack.c.l.b16 %v734
      %v811 = vpack.c.b16 %v796, %v795
      %v812 = vpack.c.b16 %v798, %v797
      %v813 = vpack.c.b16 %v800, %v799
      %v814 = vpack.c.b16 %v802, %v801
      %v815 = vpack.c.b16 %v804, %v803
      %v816 = vpack.c.b16 %v806, %v805
      %v817 = vpack.c.b16 %v808, %v807
      %v818 = vpack.c.b16 %v810, %v809
      %827 = vmatprep.subr.bf16.mxu0 0
      %828 = vmatpush1.bf16.msra.mxu0 %v811
      %829 = vmatprep.subr.bf16.mxu0 0
      %830 = vmatpush1.bf16.msra.mxu0 %v812
      %831 = vmatprep.subr.bf16.mxu0 0
      %832 = vmatpush1.bf16.msra.mxu0 %v813
      %833 = vmatprep.subr.bf16.mxu0 0
      %834 = vmatpush1.bf16.msra.mxu0 %v814
      %835 = vmatprep.subr.bf16.mxu0 0
      %836 = vmatpush1.bf16.msra.mxu0 %v815
      %837 = vmatprep.subr.bf16.mxu0 0
      %838 = vmatpush1.bf16.msra.mxu0 %v816
      %839 = vmatprep.subr.bf16.mxu0 0
      %840 = vmatpush1.bf16.msra.mxu0 %v817
      %841 = vmatprep.subr.bf16.mxu0 0
      %842 = vmatpush1.bf16.msra.mxu0 %v818
      %843 = vmatprep.subr.bf16.mxu0 0
      %844 = vmatpush1.bf16.msra.mxu0 0
      %845 = vmatprep.subr.bf16.mxu0 0
      %846 = vmatpush1.bf16.msra.mxu0 0
      %847 = vmatprep.subr.bf16.mxu0 0
      %848 = vmatpush1.bf16.msra.mxu0 0
      %849 = vmatprep.subr.bf16.mxu0 0
      %850 = vmatpush1.bf16.msra.mxu0 0
      %851 = vmatprep.subr.bf16.mxu0 0
      %852 = vmatpush1.bf16.msra.mxu0 0
      %853 = vmatprep.subr.bf16.mxu0 0
      %854 = vmatpush1.bf16.msra.mxu0 0
      %855 = vmatprep.subr.bf16.mxu0 0
      %856 = vmatpush1.bf16.msra.mxu0 0
      %857 = vmatprep.subr.bf16.mxu0 0
      %858 = vmatpush1.bf16.msra.mxu0 0
      %859 = vmatprep.mubr.bf16.mxu0 0
      %860 = vmatmul.mubr.bf16.gmra.mrb[0].mxu0 %v765
      %v861 = vpop.f32.mrb[0].mxu0
      %v862 = vadd.f32 0.0, %v861
      %v863 = vpop.f32.mrb[0].mxu0
      %v864 = vpop.f32.mrb[0].mxu0
      %v865 = vadd.f32 0.0, %v864
      %v866 = vpop.f32.mrb[0].mxu0
      %867 = vmatprep.mubr.bf16.mxu0 0
      %868 = vmatmul.mubr.bf16.gmra.mrb[0].mxu0 %v767
      %v869 = vpop.f32.mrb[0].mxu0
      %v870 = vadd.f32 0.0, %v869
      %v871 = vpop.f32.mrb[0].mxu0
      %v872 = vpop.f32.mrb[0].mxu0
      %v873 = vadd.f32 0.0, %v872
      %v874 = vpop.f32.mrb[0].mxu0
      %875 = vmatprep.mubr.bf16.mxu0 0
      %876 = vmatmul.mubr.bf16.gmra.mrb[0].mxu0 %v769
      %v877 = vpop.f32.mrb[0].mxu0
      %v878 = vadd.f32 0.0, %v877
      %v879 = vpop.f32.mrb[0].mxu0
      %v880 = vpop.f32.mrb[0].mxu0
      %v881 = vadd.f32 0.0, %v880
      %v882 = vpop.f32.mrb[0].mxu0
      %883 = vmatprep.mubr.bf16.mxu0 0
      %884 = vmatmul.mubr.bf16.gmra.mrb[0].mxu0 %v771
      %v885 = vpop.f32.mrb[0].mxu0
      %v886 = vadd.f32 0.0, %v885
      %v887 = vpop.f32.mrb[0].mxu0
      %v888 = vpop.f32.mrb[0].mxu0
      %v889 = vadd.f32 0.0, %v888
      %v890 = vpop.f32.mrb[0].mxu0
      %891 = vmatprep.mubr.bf16.mxu0 0
      %892 = vmatmul.mubr.bf16.gmra.mrb[0].mxu0 %v773
      %v893 = vpop.f32.mrb[0].mxu0
      %v894 = vadd.f32 0.0, %v893
      %v895 = vpop.f32.mrb[0].mxu0
      %v896 = vpop.f32.mrb[0].mxu0
      %v897 = vadd.f32 0.0, %v896
      %v898 = vpop.f32.mrb[0].mxu0
      %899 = vdwg.mxu0
      %v900 = vadd.f32 %v698, %v862
      %v901 = vadd.f32 %v699, %v865
      %v902 = vadd.f32 %v700, %v870
      %v903 = vadd.f32 %v701, %v873
      %v904 = vadd.f32 %v702, %v878
      %v905 = vadd.f32 %v703, %v881
      %v906 = vadd.f32 %v704, %v886
      %v907 = vadd.f32 %v705, %v889
      %v908 = vadd.f32 %v706, %v894
      %v909 = vadd.f32 %v707, %v897
      %v910 = vld [vmem:[%s165 + $0x2c] sm:$0x3]
      %v911 = vld [vmem:[%s1 + $0x100] sm:$0xf]
      %v912 = vld [vmem:[%s1 + $0x104] sm:$0xf]
      %v913 = vld [vmem:[%s1 + $0x108] sm:$0xf]
      %v914 = vld [vmem:[%s1 + $0x10c] sm:$0xf]
      %v915 = vld [vmem:[%s1 + $0x110] sm:$0xf]
      %v916 = vld [vmem:[%s1 + $0x114] sm:$0xf]
      %v917 = vld [vmem:[%s1 + $0x118] sm:$0xf]
      %v918 = vld [vmem:[%s1 + $0x11c] sm:$0xf]
      %v919 = vld [vmem:[%s1 + $0x120] sm:$0xf]
      %v920 = vld [vmem:[%s1 + $0x124] sm:$0xf]
      %v921 = vld [vmem:[%s1 + $0x128] sm:$0xf]
      %v922 = vld [vmem:[%s1 + $0x12c] sm:$0xf]
      %v923 = vld [vmem:[%s1 + $0x130] sm:$0xf]
      %v924 = vld [vmem:[%s1 + $0x134] sm:$0xf]
      %v925 = vld [vmem:[%s1 + $0x138] sm:$0xf]
      %v926 = vld [vmem:[%s1 + $0x13c] sm:$0xf]
      %v928 = vunpack.c.l.b16 %v910
      %v929 = vpack.c.b16 %v928, %v928
      %vm930 = vsmask.f32 6400
      %v932 = vshrl.u32 %v757, 16
      %v934 = vrot.slane %v932, 1
      %v935 = vshll.u32 %v757, 16
      %v937 = vrot.slane %v935, 2
      %v938 = vor.u32 %v934, %v937
      %v940 = vshrl.u32 %v758, 16
      %v942 = vrot.slane %v940, 1
      %v943 = vshll.u32 %v758, 16
      %v945 = vrot.slane %v943, 2
      %v946 = vor.u32 %v942, %v945
      %v947 = vsel %vm930, %v938, %v946
      %v949 = vshrl.u32 %v759, 16
      %v951 = vrot.slane %v949, 1
      %v952 = vshll.u32 %v759, 16
      %v954 = vrot.slane %v952, 2
      %v955 = vor.u32 %v951, %v954
      %v956 = vsel %vm930, %v946, %v955
      %v958 = vshrl.u32 %v760, 16
      %v960 = vrot.slane %v958, 1
      %v961 = vshll.u32 %v760, 16
      %v963 = vrot.slane %v961, 2
      %v964 = vor.u32 %v960, %v963
      %v965 = vsel %vm930, %v955, %v964
      %v967 = vshrl.u32 %v761, 16
      %v969 = vrot.slane %v967, 1
      %v970 = vshll.u32 %v761, 16
      %v972 = vrot.slane %v970, 2
      %v973 = vor.u32 %v969, %v972
      %v974 = vsel %vm930, %v964, %v973
      %v976 = vshrl.u32 %v929, 16
      %v978 = vrot.slane %v976, 1
      %v979 = vshll.u32 %v929, 16
      %v981 = vrot.slane %v979, 2
      %v982 = vor.u32 %v978, %v981
      %v983 = vsel %vm930, %v973, %v982
      %v1005 = vunpack.c.l.b16 %v911
      %v1006 = vunpack.c.l.b16 %v912
      %v1007 = vunpack.c.l.b16 %v913
      %v1008 = vunpack.c.l.b16 %v914
      %v1009 = vunpack.c.l.b16 %v915
      %v1010 = vunpack.c.l.b16 %v916
      %v1011 = vunpack.c.l.b16 %v917
      %v1012 = vunpack.c.l.b16 %v918
      %v1013 = vunpack.c.l.b16 %v919
      %v1014 = vunpack.c.l.b16 %v920
      %v1015 = vunpack.c.l.b16 %v921
      %v1016 = vunpack.c.l.b16 %v922
      %v1017 = vunpack.c.l.b16 %v923
      %v1018 = vunpack.c.l.b16 %v924
      %v1019 = vunpack.c.l.b16 %v925
      %v1020 = vunpack.c.l.b16 %v926
      %v1021 = vpack.c.b16 %v1006, %v1005
      %v1022 = vpack.c.b16 %v1008, %v1007
      %v1023 = vpack.c.b16 %v1010, %v1009
      %v1024 = vpack.c.b16 %v1012, %v1011
      %v1025 = vpack.c.b16 %v1014, %v1013
      %v1026 = vpack.c.b16 %v1016, %v1015
      %v1027 = vpack.c.b16 %v1018, %v1017
      %v1028 = vpack.c.b16 %v1020, %v1019
      %1037 = vmatprep.subr.bf16.mxu0 0
      %1038 = vmatpush1.bf16.msra.mxu0 %v1021
      %1039 = vmatprep.subr.bf16.mxu0 0
      %1040 = vmatpush1.bf16.msra.mxu0 %v1022
      %1041 = vmatprep.subr.bf16.mxu0 0
      %1042 = vmatpush1.bf16.msra.mxu0 %v1023
      %1043 = vmatprep.subr.bf16.mxu0 0
      %1044 = vmatpush1.bf16.msra.mxu0 %v1024
      %1045 = vmatprep.subr.bf16.mxu0 0
      %1046 = vmatpush1.bf16.msra.mxu0 %v1025
      %1047 = vmatprep.subr.bf16.mxu0 0
      %1048 = vmatpush1.bf16.msra.mxu0 %v1026
      %1049 = vmatprep.subr.bf16.mxu0 0
      %1050 = vmatpush1.bf16.msra.mxu0 %v1027
      %1051 = vmatprep.subr.bf16.mxu0 0
      %1052 = vmatpush1.bf16.msra.mxu0 %v1028
      %1053 = vmatprep.subr.bf16.mxu0 0
      %1054 = vmatpush1.bf16.msra.mxu0 0
      %1055 = vmatprep.subr.bf16.mxu0 0
      %1056 = vmatpush1.bf16.msra.mxu0 0
      %1057 = vmatprep.subr.bf16.mxu0 0
      %1058 = vmatpush1.bf16.msra.mxu0 0
      %1059 = vmatprep.subr.bf16.mxu0 0
      %1060 = vmatpush1.bf16.msra.mxu0 0
      %1061 = vmatprep.subr.bf16.mxu0 0
      %1062 = vmatpush1.bf16.msra.mxu0 0
      %1063 = vmatprep.subr.bf16.mxu0 0
      %1064 = vmatpush1.bf16.msra.mxu0 0
      %1065 = vmatprep.subr.bf16.mxu0 0
      %1066 = vmatpush1.bf16.msra.mxu0 0
      %1067 = vmatprep.subr.bf16.mxu0 0
      %1068 = vmatpush1.bf16.msra.mxu0 0
      %1069 = vmatprep.mubr.bf16.mxu0 0
      %1070 = vmatmul.mubr.bf16.gmra.mrb[0].mxu0 %v947
      %v1071 = vpop.f32.mrb[0].mxu0
      %v1072 = vadd.f32 0.0, %v1071
      %v1073 = vpop.f32.mrb[0].mxu0
      %v1074 = vpop.f32.mrb[0].mxu0
      %v1075 = vadd.f32 0.0, %v1074
      %v1076 = vpop.f32.mrb[0].mxu0
      %1077 = vmatprep.mubr.bf16.mxu0 0
      %1078 = vmatmul.mubr.bf16.gmra.mrb[0].mxu0 %v956
      %v1079 = vpop.f32.mrb[0].mxu0
      %v1080 = vadd.f32 0.0, %v1079
      %v1081 = vpop.f32.mrb[0].mxu0
      %v1082 = vpop.f32.mrb[0].mxu0
      %v1083 = vadd.f32 0.0, %v1082
      %v1084 = vpop.f32.mrb[0].mxu0
      %1085 = vmatprep.mubr.bf16.mxu0 0
      %1086 = vmatmul.mubr.bf16.gmra.mrb[0].mxu0 %v965
      %v1087 = vpop.f32.mrb[0].mxu0
      %v1088 = vadd.f32 0.0, %v1087
      %v1089 = vpop.f32.mrb[0].mxu0
      %v1090 = vpop.f32.mrb[0].mxu0
      %v1091 = vadd.f32 0.0, %v1090
      %v1092 = vpop.f32.mrb[0].mxu0
      %1093 = vmatprep.mubr.bf16.mxu0 0
      %1094 = vmatmul.mubr.bf16.gmra.mrb[0].mxu0 %v974
      %v1095 = vpop.f32.mrb[0].mxu0
      %v1096 = vadd.f32 0.0, %v1095
      %v1097 = vpop.f32.mrb[0].mxu0
      %v1098 = vpop.f32.mrb[0].mxu0
      %v1099 = vadd.f32 0.0, %v1098
      %v1100 = vpop.f32.mrb[0].mxu0
      %1101 = vmatprep.mubr.bf16.mxu0 0
      %1102 = vmatmul.mubr.bf16.gmra.mrb[0].mxu0 %v983
      %v1103 = vpop.f32.mrb[0].mxu0
      %v1104 = vadd.f32 0.0, %v1103
      %v1105 = vpop.f32.mrb[0].mxu0
      %v1106 = vpop.f32.mrb[0].mxu0
      %v1107 = vadd.f32 0.0, %v1106
      %v1108 = vpop.f32.mrb[0].mxu0
      %1109 = vdwg.mxu0
      %v1110 = vadd.f32 %v900, %v1072
      %v1111 = vadd.f32 %v901, %v1075
      %v1112 = vadd.f32 %v902, %v1080
      %v1113 = vadd.f32 %v903, %v1083
      %v1114 = vadd.f32 %v904, %v1088
      %v1115 = vadd.f32 %v905, %v1091
      %v1116 = vadd.f32 %v906, %v1096
      %v1117 = vadd.f32 %v907, %v1099
      %v1118 = vadd.f32 %v908, %v1104
      %v1119 = vadd.f32 %v909, %v1107
      %v1120 = vld [vmem:[%s165 + $0x4] sm:$0xc]
      %v1121 = vld [vmem:[%s1 + $0x140] sm:$0xf]
      %v1122 = vld [vmem:[%s1 + $0x144] sm:$0xf]
      %v1123 = vld [vmem:[%s1 + $0x148] sm:$0xf]
      %v1124 = vld [vmem:[%s1 + $0x14c] sm:$0xf]
      %v1125 = vld [vmem:[%s1 + $0x150] sm:$0xf]
      %v1126 = vld [vmem:[%s1 + $0x154] sm:$0xf]
      %v1127 = vld [vmem:[%s1 + $0x158] sm:$0xf]
      %v1128 = vld [vmem:[%s1 + $0x15c] sm:$0xf]
      %v1129 = vld [vmem:[%s1 + $0x160] sm:$0xf]
      %v1130 = vld [vmem:[%s1 + $0x164] sm:$0xf]
      %v1131 = vld [vmem:[%s1 + $0x168] sm:$0xf]
      %v1132 = vld [vmem:[%s1 + $0x16c] sm:$0xf]
      %v1133 = vld [vmem:[%s1 + $0x170] sm:$0xf]
      %v1134 = vld [vmem:[%s1 + $0x174] sm:$0xf]
      %v1135 = vld [vmem:[%s1 + $0x178] sm:$0xf]
      %v1136 = vld [vmem:[%s1 + $0x17c] sm:$0xf]
      %v1138 = vunpack.c.l.b16 %v1120
      %v1139 = vpack.c.b16 %v747, %v1138
      %vm1140 = vcmask 1045504
      %v1141 = vrot.slane %v1139, 2
      %v1142 = vrot.slane %v758, 2
      %v1143 = vsel %vm1140, %v1141, %v1142
      %v1144 = vrot.slane %v759, 2
      %v1145 = vsel %vm1140, %v1142, %v1144
      %v1146 = vrot.slane %v760, 2
      %v1147 = vsel %vm1140, %v1144, %v1146
      %v1148 = vrot.slane %v761, 2
      %v1149 = vsel %vm1140, %v1146, %v1148
      %v1150 = vrot.slane %v929, 2
      %v1151 = vsel %vm1140, %v1148, %v1150
      %v1173 = vunpack.c.l.b16 %v1121
      %v1174 = vunpack.c.l.b16 %v1122
      %v1175 = vunpack.c.l.b16 %v1123
      %v1176 = vunpack.c.l.b16 %v1124
      %v1177 = vunpack.c.l.b16 %v1125
      %v1178 = vunpack.c.l.b16 %v1126
      %v1179 = vunpack.c.l.b16 %v1127
      %v1180 = vunpack.c.l.b16 %v1128
      %v1181 = vunpack.c.l.b16 %v1129
      %v1182 = vunpack.c.l.b16 %v1130
      %v1183 = vunpack.c.l.b16 %v1131
      %v1184 = vunpack.c.l.b16 %v1132
      %v1185 = vunpack.c.l.b16 %v1133
      %v1186 = vunpack.c.l.b16 %v1134
      %v1187 = vunpack.c.l.b16 %v1135
      %v1188 = vunpack.c.l.b16 %v1136
      %v1189 = vpack.c.b16 %v1174, %v1173
      %v1190 = vpack.c.b16 %v1176, %v1175
      %v1191 = vpack.c.b16 %v1178, %v1177
      %v1192 = vpack.c.b16 %v1180, %v1179
      %v1193 = vpack.c.b16 %v1182, %v1181
      %v1194 = vpack.c.b16 %v1184, %v1183
      %v1195 = vpack.c.b16 %v1186, %v1185
      %v1196 = vpack.c.b16 %v1188, %v1187
      %1205 = vmatprep.subr.bf16.mxu0 0
      %1206 = vmatpush1.bf16.msra.mxu0 %v1189
      %1207 = vmatprep.subr.bf16.mxu0 0
      %1208 = vmatpush1.bf16.msra.mxu0 %v1190
      %1209 = vmatprep.subr.bf16.mxu0 0
      %1210 = vmatpush1.bf16.msra.mxu0 %v1191
      %1211 = vmatprep.subr.bf16.mxu0 0
      %1212 = vmatpush1.bf16.msra.mxu0 %v1192
      %1213 = vmatprep.subr.bf16.mxu0 0
      %1214 = vmatpush1.bf16.msra.mxu0 %v1193
      %1215 = vmatprep.subr.bf16.mxu0 0
      %1216 = vmatpush1.bf16.msra.mxu0 %v1194
      %1217 = vmatprep.subr.bf16.mxu0 0
      %1218 = vmatpush1.bf16.msra.mxu0 %v1195
      %1219 = vmatprep.subr.bf16.mxu0 0
      %1220 = vmatpush1.bf16.msra.mxu0 %v1196
      %1221 = vmatprep.subr.bf16.mxu0 0
      %1222 = vmatpush1.bf16.msra.mxu0 0
      %1223 = vmatprep.subr.bf16.mxu0 0
      %1224 = vmatpush1.bf16.msra.mxu0 0
      %1225 = vmatprep.subr.bf16.mxu0 0
      %1226 = vmatpush1.bf16.msra.mxu0 0
      %1227 = vmatprep.subr.bf16.mxu0 0
      %1228 = vmatpush1.bf16.msra.mxu0 0
      %1229 = vmatprep.subr.bf16.mxu0 0
      %1230 = vmatpush1.bf16.msra.mxu0 0
      %1231 = vmatprep.subr.bf16.mxu0 0
      %1232 = vmatpush1.bf16.msra.mxu0 0
      %1233 = vmatprep.subr.bf16.mxu0 0
      %1234 = vmatpush1.bf16.msra.mxu0 0
      %1235 = vmatprep.subr.bf16.mxu0 0
      %1236 = vmatpush1.bf16.msra.mxu0 0
      %1237 = vmatprep.mubr.bf16.mxu0 0
      %1238 = vmatmul.mubr.bf16.gmra.mrb[0].mxu0 %v1143
      %v1239 = vpop.f32.mrb[0].mxu0
      %v1240 = vadd.f32 0.0, %v1239
      %v1241 = vpop.f32.mrb[0].mxu0
      %v1242 = vpop.f32.mrb[0].mxu0
      %v1243 = vadd.f32 0.0, %v1242
      %v1244 = vpop.f32.mrb[0].mxu0
      %1245 = vmatprep.mubr.bf16.mxu0 0
      %1246 = vmatmul.mubr.bf16.gmra.mrb[0].mxu0 %v1145
      %v1247 = vpop.f32.mrb[0].mxu0
      %v1248 = vadd.f32 0.0, %v1247
      %v1249 = vpop.f32.mrb[0].mxu0
      %v1250 = vpop.f32.mrb[0].mxu0
      %v1251 = vadd.f32 0.0, %v1250
      %v1252 = vpop.f32.mrb[0].mxu0
      %1253 = vmatprep.mubr.bf16.mxu0 0
      %1254 = vmatmul.mubr.bf16.gmra.mrb[0].mxu0 %v1147
      %v1255 = vpop.f32.mrb[0].mxu0
      %v1256 = vadd.f32 0.0, %v1255
      %v1257 = vpop.f32.mrb[0].mxu0
      %v1258 = vpop.f32.mrb[0].mxu0
      %v1259 = vadd.f32 0.0, %v1258
      %v1260 = vpop.f32.mrb[0].mxu0
      %1261 = vmatprep.mubr.bf16.mxu0 0
      %1262 = vmatmul.mubr.bf16.gmra.mrb[0].mxu0 %v1149
      %v1263 = vpop.f32.mrb[0].mxu0
      %v1264 = vadd.f32 0.0, %v1263
      %v1265 = vpop.f32.mrb[0].mxu0
      %v1266 = vpop.f32.mrb[0].mxu0
      %v1267 = vadd.f32 0.0, %v1266
      %v1268 = vpop.f32.mrb[0].mxu0
      %1269 = vmatprep.mubr.bf16.mxu0 0
      %1270 = vmatmul.mubr.bf16.gmra.mrb[0].mxu0 %v1151
      %v1271 = vpop.f32.mrb[0].mxu0
      %v1272 = vadd.f32 0.0, %v1271
      %v1273 = vpop.f32.mrb[0].mxu0
      %v1274 = vpop.f32.mrb[0].mxu0
      %v1275 = vadd.f32 0.0, %v1274
      %v1276 = vpop.f32.mrb[0].mxu0
      %1277 = vdwg.mxu0
      %v1278 = vadd.f32 %v1110, %v1240
      %v1279 = vadd.f32 %v1111, %v1243
      %v1280 = vadd.f32 %v1112, %v1248
      %v1281 = vadd.f32 %v1113, %v1251
      %v1282 = vadd.f32 %v1114, %v1256
      %v1283 = vadd.f32 %v1115, %v1259
      %v1284 = vadd.f32 %v1116, %v1264
      %v1285 = vadd.f32 %v1117, %v1267
      %v1286 = vadd.f32 %v1118, %v1272
      %v1287 = vadd.f32 %v1119, %v1275
      %v1288 = vld [vmem:[%s165 + $0x8] sm:$0xc]
      %v1289 = vld [vmem:[%s165 + $0xc] sm:$0xf]
      %v1290 = vld [vmem:[%s165 + $0x10] sm:$0xf]
      %v1291 = vld [vmem:[%s165 + $0x14] sm:$0xf]
      %v1292 = vld [vmem:[%s165 + $0x18] sm:$0xf]
      %v1293 = vld [vmem:[%s165 + $0x1c] sm:$0xf]
      %v1294 = vld [vmem:[%s165 + $0x20] sm:$0xf]
      %v1295 = vld [vmem:[%s165 + $0x24] sm:$0xf]
      %v1296 = vld [vmem:[%s165 + $0x28] sm:$0xf]
      %v1297 = vld [vmem:[%s165 + $0x2c] sm:$0xf]
      %v1298 = vld [vmem:[%s165 + $0x30] sm:$0x3]
      %v1299 = vld [vmem:[%s1 + $0x180] sm:$0xf]
      %v1300 = vld [vmem:[%s1 + $0x184] sm:$0xf]
      %v1301 = vld [vmem:[%s1 + $0x188] sm:$0xf]
      %v1302 = vld [vmem:[%s1 + $0x18c] sm:$0xf]
      %v1303 = vld [vmem:[%s1 + $0x190] sm:$0xf]
      %v1304 = vld [vmem:[%s1 + $0x194] sm:$0xf]
      %v1305 = vld [vmem:[%s1 + $0x198] sm:$0xf]
      %v1306 = vld [vmem:[%s1 + $0x19c] sm:$0xf]
      %v1307 = vld [vmem:[%s1 + $0x1a0] sm:$0xf]
      %v1308 = vld [vmem:[%s1 + $0x1a4] sm:$0xf]
      %v1309 = vld [vmem:[%s1 + $0x1a8] sm:$0xf]
      %v1310 = vld [vmem:[%s1 + $0x1ac] sm:$0xf]
      %v1311 = vld [vmem:[%s1 + $0x1b0] sm:$0xf]
      %v1312 = vld [vmem:[%s1 + $0x1b4] sm:$0xf]
      %v1313 = vld [vmem:[%s1 + $0x1b8] sm:$0xf]
      %v1314 = vld [vmem:[%s1 + $0x1bc] sm:$0xf]
      %v1326 = vunpack.c.l.b16 %v1288
      %v1327 = vunpack.c.l.b16 %v1289
      %v1328 = vunpack.c.l.b16 %v1290
      %v1329 = vunpack.c.l.b16 %v1291
      %v1330 = vunpack.c.l.b16 %v1292
      %v1331 = vunpack.c.l.b16 %v1293
      %v1332 = vunpack.c.l.b16 %v1294
      %v1333 = vunpack.c.l.b16 %v1295
      %v1334 = vunpack.c.l.b16 %v1296
      %v1335 = vunpack.c.l.b16 %v1297
      %v1336 = vunpack.c.l.b16 %v1298
      %v1337 = vpack.c.b16 %v1327, %v1326
      %v1338 = vpack.c.b16 %v1329, %v1328
      %v1339 = vpack.c.b16 %v1331, %v1330
      %v1340 = vpack.c.b16 %v1333, %v1332
      %v1341 = vpack.c.b16 %v1335, %v1334
      %v1342 = vpack.c.b16 %v1336, %v1336
      %v1343 = vrot.slane %v1337, 2
      %v1344 = vrot.slane %v1338, 2
      %v1345 = vsel %vm1140, %v1343, %v1344
      %v1346 = vrot.slane %v1339, 2
      %v1347 = vsel %vm1140, %v1344, %v1346
      %v1348 = vrot.slane %v1340, 2
      %v1349 = vsel %vm1140, %v1346, %v1348
      %v1350 = vrot.slane %v1341, 2
      %v1351 = vsel %vm1140, %v1348, %v1350
      %v1352 = vrot.slane %v1342, 2
      %v1353 = vsel %vm1140, %v1350, %v1352
      %v1375 = vunpack.c.l.b16 %v1299
      %v1376 = vunpack.c.l.b16 %v1300
      %v1377 = vunpack.c.l.b16 %v1301
      %v1378 = vunpack.c.l.b16 %v1302
      %v1379 = vunpack.c.l.b16 %v1303
      %v1380 = vunpack.c.l.b16 %v1304
      %v1381 = vunpack.c.l.b16 %v1305
      %v1382 = vunpack.c.l.b16 %v1306
      %v1383 = vunpack.c.l.b16 %v1307
      %v1384 = vunpack.c.l.b16 %v1308
      %v1385 = vunpack.c.l.b16 %v1309
      %v1386 = vunpack.c.l.b16 %v1310
      %v1387 = vunpack.c.l.b16 %v1311
      %v1388 = vunpack.c.l.b16 %v1312
      %v1389 = vunpack.c.l.b16 %v1313
      %v1390 = vunpack.c.l.b16 %v1314
      %v1391 = vpack.c.b16 %v1376, %v1375
      %v1392 = vpack.c.b16 %v1378, %v1377
      %v1393 = vpack.c.b16 %v1380, %v1379
      %v1394 = vpack.c.b16 %v1382, %v1381
      %v1395 = vpack.c.b16 %v1384, %v1383
      %v1396 = vpack.c.b16 %v1386, %v1385
      %v1397 = vpack.c.b16 %v1388, %v1387
      %v1398 = vpack.c.b16 %v1390, %v1389
      %1407 = vmatprep.subr.bf16.mxu0 0
      %1408 = vmatpush1.bf16.msra.mxu0 %v1391
      %1409 = vmatprep.subr.bf16.mxu0 0
      %1410 = vmatpush1.bf16.msra.mxu0 %v1392
      %1411 = vmatprep.subr.bf16.mxu0 0
      %1412 = vmatpush1.bf16.msra.mxu0 %v1393
      %1413 = vmatprep.subr.bf16.mxu0 0
      %1414 = vmatpush1.bf16.msra.mxu0 %v1394
      %1415 = vmatprep.subr.bf16.mxu0 0
      %1416 = vmatpush1.bf16.msra.mxu0 %v1395
      %1417 = vmatprep.subr.bf16.mxu0 0
      %1418 = vmatpush1.bf16.msra.mxu0 %v1396
      %1419 = vmatprep.subr.bf16.mxu0 0
      %1420 = vmatpush1.bf16.msra.mxu0 %v1397
      %1421 = vmatprep.subr.bf16.mxu0 0
      %1422 = vmatpush1.bf16.msra.mxu0 %v1398
      %1423 = vmatprep.subr.bf16.mxu0 0
      %1424 = vmatpush1.bf16.msra.mxu0 0
      %1425 = vmatprep.subr.bf16.mxu0 0
      %1426 = vmatpush1.bf16.msra.mxu0 0
      %1427 = vmatprep.subr.bf16.mxu0 0
      %1428 = vmatpush1.bf16.msra.mxu0 0
      %1429 = vmatprep.subr.bf16.mxu0 0
      %1430 = vmatpush1.bf16.msra.mxu0 0
      %1431 = vmatprep.subr.bf16.mxu0 0
      %1432 = vmatpush1.bf16.msra.mxu0 0
      %1433 = vmatprep.subr.bf16.mxu0 0
      %1434 = vmatpush1.bf16.msra.mxu0 0
      %1435 = vmatprep.subr.bf16.mxu0 0
      %1436 = vmatpush1.bf16.msra.mxu0 0
      %1437 = vmatprep.subr.bf16.mxu0 0
      %1438 = vmatpush1.bf16.msra.mxu0 0
      %1439 = vmatprep.mubr.bf16.mxu0 0
      %1440 = vmatmul.mubr.bf16.gmra.mrb[0].mxu0 %v1345
      %v1441 = vpop.f32.mrb[0].mxu0
      %v1442 = vadd.f32 0.0, %v1441
      %v1443 = vpop.f32.mrb[0].mxu0
      %v1444 = vpop.f32.mrb[0].mxu0
      %v1445 = vadd.f32 0.0, %v1444
      %v1446 = vpop.f32.mrb[0].mxu0
      %1447 = vmatprep.mubr.bf16.mxu0 0
      %1448 = vmatmul.mubr.bf16.gmra.mrb[0].mxu0 %v1347
      %v1449 = vpop.f32.mrb[0].mxu0
      %v1450 = vadd.f32 0.0, %v1449
      %v1451 = vpop.f32.mrb[0].mxu0
      %v1452 = vpop.f32.mrb[0].mxu0
      %v1453 = vadd.f32 0.0, %v1452
      %v1454 = vpop.f32.mrb[0].mxu0
      %1455 = vmatprep.mubr.bf16.mxu0 0
      %1456 = vmatmul.mubr.bf16.gmra.mrb[0].mxu0 %v1349
      %v1457 = vpop.f32.mrb[0].mxu0
      %v1458 = vadd.f32 0.0, %v1457
      %v1459 = vpop.f32.mrb[0].mxu0
      %v1460 = vpop.f32.mrb[0].mxu0
      %v1461 = vadd.f32 0.0, %v1460
      %v1462 = vpop.f32.mrb[0].mxu0
      %1463 = vmatprep.mubr.bf16.mxu0 0
      %1464 = vmatmul.mubr.bf16.gmra.mrb[0].mxu0 %v1351
      %v1465 = vpop.f32.mrb[0].mxu0
      %v1466 = vadd.f32 0.0, %v1465
      %v1467 = vpop.f32.mrb[0].mxu0
      %v1468 = vpop.f32.mrb[0].mxu0
      %v1469 = vadd.f32 0.0, %v1468
      %v1470 = vpop.f32.mrb[0].mxu0
      %1471 = vmatprep.mubr.bf16.mxu0 0
      %1472 = vmatmul.mubr.bf16.gmra.mrb[0].mxu0 %v1353
      %v1473 = vpop.f32.mrb[0].mxu0
      %v1474 = vadd.f32 0.0, %v1473
      %v1475 = vpop.f32.mrb[0].mxu0
      %v1476 = vpop.f32.mrb[0].mxu0
      %v1477 = vadd.f32 0.0, %v1476
      %v1478 = vpop.f32.mrb[0].mxu0
      %1479 = vdwg.mxu0
      %v1480 = vadd.f32 %v1278, %v1442
      %v1481 = vadd.f32 %v1279, %v1445
      %v1482 = vadd.f32 %v1280, %v1450
      %v1483 = vadd.f32 %v1281, %v1453
      %v1484 = vadd.f32 %v1282, %v1458
      %v1485 = vadd.f32 %v1283, %v1461
      %v1486 = vadd.f32 %v1284, %v1466
      %v1487 = vadd.f32 %v1285, %v1469
      %v1488 = vadd.f32 %v1286, %v1474
      %v1489 = vadd.f32 %v1287, %v1477
      %v1490 = vld [vmem:[%s165 + $0x30] sm:$0x7]
      %v1491 = vld [vmem:[%s1 + $0x1c0] sm:$0xf]
      %v1492 = vld [vmem:[%s1 + $0x1c4] sm:$0xf]
      %v1493 = vld [vmem:[%s1 + $0x1c8] sm:$0xf]
      %v1494 = vld [vmem:[%s1 + $0x1cc] sm:$0xf]
      %v1495 = vld [vmem:[%s1 + $0x1d0] sm:$0xf]
      %v1496 = vld [vmem:[%s1 + $0x1d4] sm:$0xf]
      %v1497 = vld [vmem:[%s1 + $0x1d8] sm:$0xf]
      %v1498 = vld [vmem:[%s1 + $0x1dc] sm:$0xf]
      %v1499 = vld [vmem:[%s1 + $0x1e0] sm:$0xf]
      %v1500 = vld [vmem:[%s1 + $0x1e4] sm:$0xf]
      %v1501 = vld [vmem:[%s1 + $0x1e8] sm:$0xf]
      %v1502 = vld [vmem:[%s1 + $0x1ec] sm:$0xf]
      %v1503 = vld [vmem:[%s1 + $0x1f0] sm:$0xf]
      %v1504 = vld [vmem:[%s1 + $0x1f4] sm:$0xf]
      %v1505 = vld [vmem:[%s1 + $0x1f8] sm:$0xf]
      %v1506 = vld [vmem:[%s1 + $0x1fc] sm:$0xf]
      %v1508 = vunpack.c.l.b16 %v1490
      %v1509 = vpack.c.b16 %v1508, %v1508
      %vm1510 = vsmask.f32 5376
      %v1512 = vshrl.u32 %v1337, 16
      %v1514 = vrot.slane %v1512, 2
      %v1515 = vshll.u32 %v1337, 16
      %v1517 = vrot.slane %v1515, 3
      %v1518 = vor.u32 %v1514, %v1517
      %v1520 = vshrl.u32 %v1338, 16
      %v1522 = vrot.slane %v1520, 2
      %v1523 = vshll.u32 %v1338, 16
      %v1525 = vrot.slane %v1523, 3
      %v1526 = vor.u32 %v1522, %v1525
      %v1527 = vsel %vm1510, %v1518, %v1526
      %v1529 = vshrl.u32 %v1339, 16
      %v1531 = vrot.slane %v1529, 2
      %v1532 = vshll.u32 %v1339, 16
      %v1534 = vrot.slane %v1532, 3
      %v1535 = vor.u32 %v1531, %v1534
      %v1536 = vsel %vm1510, %v1526, %v1535
      %v1538 = vshrl.u32 %v1340, 16
      %v1540 = vrot.slane %v1538, 2
      %v1541 = vshll.u32 %v1340, 16
      %v1543 = vrot.slane %v1541, 3
      %v1544 = vor.u32 %v1540, %v1543
      %v1545 = vsel %vm1510, %v1535, %v1544
      %v1547 = vshrl.u32 %v1341, 16
      %v1549 = vrot.slane %v1547, 2
      %v1550 = vshll.u32 %v1341, 16
      %v1552 = vrot.slane %v1550, 3
      %v1553 = vor.u32 %v1549, %v1552
      %v1554 = vsel %vm1510, %v1544, %v1553
      %v1556 = vshrl.u32 %v1509, 16
      %v1558 = vrot.slane %v1556, 2
      %v1559 = vshll.u32 %v1509, 16
      %v1561 = vrot.slane %v1559, 3
      %v1562 = vor.u32 %v1558, %v1561
      %v1563 = vsel %vm1510, %v1553, %v1562
      %v1585 = vunpack.c.l.b16 %v1491
      %v1586 = vunpack.c.l.b16 %v1492
      %v1587 = vunpack.c.l.b16 %v1493
      %v1588 = vunpack.c.l.b16 %v1494
      %v1589 = vunpack.c.l.b16 %v1495
      %v1590 = vunpack.c.l.b16 %v1496
      %v1591 = vunpack.c.l.b16 %v1497
      %v1592 = vunpack.c.l.b16 %v1498
      %v1593 = vunpack.c.l.b16 %v1499
      %v1594 = vunpack.c.l.b16 %v1500
      %v1595 = vunpack.c.l.b16 %v1501
      %v1596 = vunpack.c.l.b16 %v1502
      %v1597 = vunpack.c.l.b16 %v1503
      %v1598 = vunpack.c.l.b16 %v1504
      %v1599 = vunpack.c.l.b16 %v1505
      %v1600 = vunpack.c.l.b16 %v1506
      %v1601 = vpack.c.b16 %v1586, %v1585
      %v1602 = vpack.c.b16 %v1588, %v1587
      %v1603 = vpack.c.b16 %v1590, %v1589
      %v1604 = vpack.c.b16 %v1592, %v1591
      %v1605 = vpack.c.b16 %v1594, %v1593
      %v1606 = vpack.c.b16 %v1596, %v1595
      %v1607 = vpack.c.b16 %v1598, %v1597
      %v1608 = vpack.c.b16 %v1600, %v1599
      %1617 = vmatprep.subr.bf16.mxu0 0
      %1618 = vmatpush1.bf16.msra.mxu0 %v1601
      %1619 = vmatprep.subr.bf16.mxu0 0
      %1620 = vmatpush1.bf16.msra.mxu0 %v1602
      %1621 = vmatprep.subr.bf16.mxu0 0
      %1622 = vmatpush1.bf16.msra.mxu0 %v1603
      %1623 = vmatprep.subr.bf16.mxu0 0
      %1624 = vmatpush1.bf16.msra.mxu0 %v1604
      %1625 = vmatprep.subr.bf16.mxu0 0
      %1626 = vmatpush1.bf16.msra.mxu0 %v1605
      %1627 = vmatprep.subr.bf16.mxu0 0
      %1628 = vmatpush1.bf16.msra.mxu0 %v1606
      %1629 = vmatprep.subr.bf16.mxu0 0
      %1630 = vmatpush1.bf16.msra.mxu0 %v1607
      %1631 = vmatprep.subr.bf16.mxu0 0
      %1632 = vmatpush1.bf16.msra.mxu0 %v1608
      %1633 = vmatprep.subr.bf16.mxu0 0
      %1634 = vmatpush1.bf16.msra.mxu0 0
      %1635 = vmatprep.subr.bf16.mxu0 0
      %1636 = vmatpush1.bf16.msra.mxu0 0
      %1637 = vmatprep.subr.bf16.mxu0 0
      %1638 = vmatpush1.bf16.msra.mxu0 0
      %1639 = vmatprep.subr.bf16.mxu0 0
      %1640 = vmatpush1.bf16.msra.mxu0 0
      %1641 = vmatprep.subr.bf16.mxu0 0
      %1642 = vmatpush1.bf16.msra.mxu0 0
      %1643 = vmatprep.subr.bf16.mxu0 0
      %1644 = vmatpush1.bf16.msra.mxu0 0
      %1645 = vmatprep.subr.bf16.mxu0 0
      %1646 = vmatpush1.bf16.msra.mxu0 0
      %1647 = vmatprep.subr.bf16.mxu0 0
      %1648 = vmatpush1.bf16.msra.mxu0 0
      %1649 = vmatprep.mubr.bf16.mxu0 0
      %1650 = vmatmul.mubr.bf16.gmra.mrb[0].mxu0 %v1527
      %v1651 = vpop.f32.mrb[0].mxu0
      %v1652 = vadd.f32 0.0, %v1651
      %v1653 = vpop.f32.mrb[0].mxu0
      %v1654 = vpop.f32.mrb[0].mxu0
      %v1655 = vadd.f32 0.0, %v1654
      %v1656 = vpop.f32.mrb[0].mxu0
      %1657 = vmatprep.mubr.bf16.mxu0 0
      %1658 = vmatmul.mubr.bf16.gmra.mrb[0].mxu0 %v1536
      %v1659 = vpop.f32.mrb[0].mxu0
      %v1660 = vadd.f32 0.0, %v1659
      %v1661 = vpop.f32.mrb[0].mxu0
      %v1662 = vpop.f32.mrb[0].mxu0
      %v1663 = vadd.f32 0.0, %v1662
      %v1664 = vpop.f32.mrb[0].mxu0
      %1665 = vmatprep.mubr.bf16.mxu0 0
      %1666 = vmatmul.mubr.bf16.gmra.mrb[0].mxu0 %v1545
      %v1667 = vpop.f32.mrb[0].mxu0
      %v1668 = vadd.f32 0.0, %v1667
      %v1669 = vpop.f32.mrb[0].mxu0
      %v1670 = vpop.f32.mrb[0].mxu0
      %v1671 = vadd.f32 0.0, %v1670
      %v1672 = vpop.f32.mrb[0].mxu0
      %1673 = vmatprep.mubr.bf16.mxu0 0
      %1674 = vmatmul.mubr.bf16.gmra.mrb[0].mxu0 %v1554
      %v1675 = vpop.f32.mrb[0].mxu0
      %v1676 = vadd.f32 0.0, %v1675
      %v1677 = vpop.f32.mrb[0].mxu0
      %v1678 = vpop.f32.mrb[0].mxu0
      %v1679 = vadd.f32 0.0, %v1678
      %v1680 = vpop.f32.mrb[0].mxu0
      %1681 = vmatprep.mubr.bf16.mxu0 0
      %1682 = vmatmul.mubr.bf16.gmra.mrb[0].mxu0 %v1563
      %v1683 = vpop.f32.mrb[0].mxu0
      %v1684 = vadd.f32 0.0, %v1683
      %v1685 = vpop.f32.mrb[0].mxu0
      %v1686 = vpop.f32.mrb[0].mxu0
      %v1687 = vadd.f32 0.0, %v1686
      %v1688 = vpop.f32.mrb[0].mxu0
      %1689 = vdwg.mxu0
      %v1690 = vadd.f32 %v1480, %v1652
      %v1691 = vadd.f32 %v1481, %v1655
      %v1692 = vadd.f32 %v1482, %v1660
      %v1693 = vadd.f32 %v1483, %v1663
      %v1694 = vadd.f32 %v1484, %v1668
      %v1695 = vadd.f32 %v1485, %v1671
      %v1696 = vadd.f32 %v1486, %v1676
      %v1697 = vadd.f32 %v1487, %v1679
      %v1698 = vadd.f32 %v1488, %v1684
      %v1699 = vadd.f32 %v1489, %v1687
      %v1700 = vld [vmem:[%s165 + $0x8] sm:$0x8]
      %v1701 = vld [vmem:[%s1 + $0x200] sm:$0xf]
      %v1702 = vld [vmem:[%s1 + $0x204] sm:$0xf]
      %v1703 = vld [vmem:[%s1 + $0x208] sm:$0xf]
      %v1704 = vld [vmem:[%s1 + $0x20c] sm:$0xf]
      %v1705 = vld [vmem:[%s1 + $0x210] sm:$0xf]
      %v1706 = vld [vmem:[%s1 + $0x214] sm:$0xf]
      %v1707 = vld [vmem:[%s1 + $0x218] sm:$0xf]
      %v1708 = vld [vmem:[%s1 + $0x21c] sm:$0xf]
      %v1709 = vld [vmem:[%s1 + $0x220] sm:$0xf]
      %v1710 = vld [vmem:[%s1 + $0x224] sm:$0xf]
      %v1711 = vld [vmem:[%s1 + $0x228] sm:$0xf]
      %v1712 = vld [vmem:[%s1 + $0x22c] sm:$0xf]
      %v1713 = vld [vmem:[%s1 + $0x230] sm:$0xf]
      %v1714 = vld [vmem:[%s1 + $0x234] sm:$0xf]
      %v1715 = vld [vmem:[%s1 + $0x238] sm:$0xf]
      %v1716 = vld [vmem:[%s1 + $0x23c] sm:$0xf]
      %v1718 = vunpack.c.l.b16 %v1700
      %v1719 = vpack.c.b16 %v1327, %v1718
      %vm1720 = vcmask 1044480
      %v1721 = vrot.slane %v1719, 3
      %v1722 = vrot.slane %v1338, 3
      %v1723 = vsel %vm1720, %v1721, %v1722
      %v1724 = vrot.slane %v1339, 3
      %v1725 = vsel %vm1720, %v1722, %v1724
      %v1726 = vrot.slane %v1340, 3
      %v1727 = vsel %vm1720, %v1724, %v1726
      %v1728 = vrot.slane %v1341, 3
      %v1729 = vsel %vm1720, %v1726, %v1728
      %v1730 = vrot.slane %v1509, 3
      %v1731 = vsel %vm1720, %v1728, %v1730
      %v1753 = vunpack.c.l.b16 %v1701
      %v1754 = vunpack.c.l.b16 %v1702
      %v1755 = vunpack.c.l.b16 %v1703
      %v1756 = vunpack.c.l.b16 %v1704
      %v1757 = vunpack.c.l.b16 %v1705
      %v1758 = vunpack.c.l.b16 %v1706
      %v1759 = vunpack.c.l.b16 %v1707
      %v1760 = vunpack.c.l.b16 %v1708
      %v1761 = vunpack.c.l.b16 %v1709
      %v1762 = vunpack.c.l.b16 %v1710
      %v1763 = vunpack.c.l.b16 %v1711
      %v1764 = vunpack.c.l.b16 %v1712
      %v1765 = vunpack.c.l.b16 %v1713
      %v1766 = vunpack.c.l.b16 %v1714
      %v1767 = vunpack.c.l.b16 %v1715
      %v1768 = vunpack.c.l.b16 %v1716
      %v1769 = vpack.c.b16 %v1754, %v1753
      %v1770 = vpack.c.b16 %v1756, %v1755
      %v1771 = vpack.c.b16 %v1758, %v1757
      %v1772 = vpack.c.b16 %v1760, %v1759
      %v1773 = vpack.c.b16 %v1762, %v1761
      %v1774 = vpack.c.b16 %v1764, %v1763
      %v1775 = vpack.c.b16 %v1766, %v1765
      %v1776 = vpack.c.b16 %v1768, %v1767
      %1785 = vmatprep.subr.bf16.mxu0 0
      %1786 = vmatpush1.bf16.msra.mxu0 %v1769
      %1787 = vmatprep.subr.bf16.mxu0 0
      %1788 = vmatpush1.bf16.msra.mxu0 %v1770
      %1789 = vmatprep.subr.bf16.mxu0 0
      %1790 = vmatpush1.bf16.msra.mxu0 %v1771
      %1791 = vmatprep.subr.bf16.mxu0 0
      %1792 = vmatpush1.bf16.msra.mxu0 %v1772
      %1793 = vmatprep.subr.bf16.mxu0 0
      %1794 = vmatpush1.bf16.msra.mxu0 %v1773
      %1795 = vmatprep.subr.bf16.mxu0 0
      %1796 = vmatpush1.bf16.msra.mxu0 %v1774
      %1797 = vmatprep.subr.bf16.mxu0 0
      %1798 = vmatpush1.bf16.msra.mxu0 %v1775
      %1799 = vmatprep.subr.bf16.mxu0 0
      %1800 = vmatpush1.bf16.msra.mxu0 %v1776
      %1801 = vmatprep.subr.bf16.mxu0 0
      %1802 = vmatpush1.bf16.msra.mxu0 0
      %1803 = vmatprep.subr.bf16.mxu0 0
      %1804 = vmatpush1.bf16.msra.mxu0 0
      %1805 = vmatprep.subr.bf16.mxu0 0
      %1806 = vmatpush1.bf16.msra.mxu0 0
      %1807 = vmatprep.subr.bf16.mxu0 0
      %1808 = vmatpush1.bf16.msra.mxu0 0
      %1809 = vmatprep.subr.bf16.mxu0 0
      %1810 = vmatpush1.bf16.msra.mxu0 0
      %1811 = vmatprep.subr.bf16.mxu0 0
      %1812 = vmatpush1.bf16.msra.mxu0 0
      %1813 = vmatprep.subr.bf16.mxu0 0
      %1814 = vmatpush1.bf16.msra.mxu0 0
      %1815 = vmatprep.subr.bf16.mxu0 0
      %1816 = vmatpush1.bf16.msra.mxu0 0
      %1817 = vmatprep.mubr.bf16.mxu0 0
      %1818 = vmatmul.mubr.bf16.gmra.mrb[0].mxu0 %v1723
      %v1819 = vpop.f32.mrb[0].mxu0
      %v1820 = vadd.f32 0.0, %v1819
      %v1821 = vpop.f32.mrb[0].mxu0
      %v1822 = vpop.f32.mrb[0].mxu0
      %v1823 = vadd.f32 0.0, %v1822
      %v1824 = vpop.f32.mrb[0].mxu0
      %1825 = vmatprep.mubr.bf16.mxu0 0
      %1826 = vmatmul.mubr.bf16.gmra.mrb[0].mxu0 %v1725
      %v1827 = vpop.f32.mrb[0].mxu0
      %v1828 = vadd.f32 0.0, %v1827
      %v1829 = vpop.f32.mrb[0].mxu0
      %v1830 = vpop.f32.mrb[0].mxu0
      %v1831 = vadd.f32 0.0, %v1830
      %v1832 = vpop.f32.mrb[0].mxu0
      %1833 = vmatprep.mubr.bf16.mxu0 0
      %1834 = vmatmul.mubr.bf16.gmra.mrb[0].mxu0 %v1727
      %v1835 = vpop.f32.mrb[0].mxu0
      %v1836 = vadd.f32 0.0, %v1835
      %v1837 = vpop.f32.mrb[0].mxu0
      %v1838 = vpop.f32.mrb[0].mxu0
      %v1839 = vadd.f32 0.0, %v1838
      %v1840 = vpop.f32.mrb[0].mxu0
      %1841 = vmatprep.mubr.bf16.mxu0 0
      %1842 = vmatmul.mubr.bf16.gmra.mrb[0].mxu0 %v1729
      %v1843 = vpop.f32.mrb[0].mxu0
      %v1844 = vadd.f32 0.0, %v1843
      %v1845 = vpop.f32.mrb[0].mxu0
      %v1846 = vpop.f32.mrb[0].mxu0
      %v1847 = vadd.f32 0.0, %v1846
      %v1848 = vpop.f32.mrb[0].mxu0
      %1849 = vmatprep.mubr.bf16.mxu0 0
      %1850 = vmatmul.mubr.bf16.gmra.mrb[0].mxu0 %v1731
      %v1851 = vpop.f32.mrb[0].mxu0
      %v1852 = vadd.f32 0.0, %v1851
      %v1853 = vpop.f32.mrb[0].mxu0
      %v1854 = vpop.f32.mrb[0].mxu0
      %v1855 = vadd.f32 0.0, %v1854
      %v1856 = vpop.f32.mrb[0].mxu0
      %1857 = vdwg.mxu0
      %v1858 = vadd.f32 %v1690, %v1820
      %v1859 = vadd.f32 %v1691, %v1823
      %v1860 = vadd.f32 %v1692, %v1828
      %v1861 = vadd.f32 %v1693, %v1831
      %v1862 = vadd.f32 %v1694, %v1836
      %v1863 = vadd.f32 %v1695, %v1839
      %v1864 = vadd.f32 %v1696, %v1844
      %v1865 = vadd.f32 %v1697, %v1847
      %v1866 = vadd.f32 %v1698, %v1852
      %v1867 = vadd.f32 %v1699, %v1855
      %v1868 = vld [vmem:[%s2] sm:$0x1]
      %v1870 = vlaneseq
      %v1871 = vshrl.u32 %v1870, 7
      %v1872 = vsub.s32 0, %v1871
      %v1873 = vrot.slane %v1868, %v1872
      %v1875 = vadd.f32 %v1858, %v1873
      %v1876 = vadd.f32 %v1859, %v1873
      %v1877 = vadd.f32 %v1860, %v1873
      %v1878 = vadd.f32 %v1861, %v1873
      %v1879 = vadd.f32 %v1862, %v1873
      %v1880 = vadd.f32 %v1863, %v1873
      %v1881 = vadd.f32 %v1864, %v1873
      %v1882 = vadd.f32 %v1865, %v1873
      %v1883 = vadd.f32 %v1866, %v1873
      %v1884 = vadd.f32 %v1867, %v1873
      %v1885 = vmul.f32 %v1875, %v1875
      %v1886 = vmul.f32 %v1876, %v1876
      %v1887 = vmul.f32 %v1877, %v1877
      %v1888 = vmul.f32 %v1878, %v1878
      %v1889 = vmul.f32 %v1879, %v1879
      %v1890 = vmul.f32 %v1880, %v1880
      %v1891 = vmul.f32 %v1881, %v1881
      %v1892 = vmul.f32 %v1882, %v1882
      %v1893 = vmul.f32 %v1883, %v1883
      %v1894 = vmul.f32 %v1884, %v1884
      %v1895 = vmul.f32 %v1875, %v1885
      %v1896 = vmul.f32 %v1876, %v1886
      %v1897 = vmul.f32 %v1877, %v1887
      %v1898 = vmul.f32 %v1878, %v1888
      %v1899 = vmul.f32 %v1879, %v1889
      %v1900 = vmul.f32 %v1880, %v1890
      %v1901 = vmul.f32 %v1881, %v1891
      %v1902 = vmul.f32 %v1882, %v1892
      %v1903 = vmul.f32 %v1883, %v1893
      %v1904 = vmul.f32 %v1884, %v1894
      %v1905 = vmul.f32 %v1895, 0.044715
      %v1906 = vmul.f32 %v1896, 0.044715
      %v1907 = vmul.f32 %v1897, 0.044715
      %v1908 = vmul.f32 %v1898, 0.044715
      %v1909 = vmul.f32 %v1899, 0.044715
      %v1910 = vmul.f32 %v1900, 0.044715
      %v1911 = vmul.f32 %v1901, 0.044715
      %v1912 = vmul.f32 %v1902, 0.044715
      %v1913 = vmul.f32 %v1903, 0.044715
      %v1914 = vmul.f32 %v1904, 0.044715
      %v1915 = vadd.f32 %v1875, %v1905
      %v1916 = vadd.f32 %v1876, %v1906
      %v1917 = vadd.f32 %v1877, %v1907
      %v1918 = vadd.f32 %v1878, %v1908
      %v1919 = vadd.f32 %v1879, %v1909
      %v1920 = vadd.f32 %v1880, %v1910
      %v1921 = vadd.f32 %v1881, %v1911
      %v1922 = vadd.f32 %v1882, %v1912
      %v1923 = vadd.f32 %v1883, %v1913
      %v1924 = vadd.f32 %v1884, %v1914
      %v1925 = vmul.f32 %v1915, 0.7978846
      %v1926 = vmul.f32 %v1916, 0.7978846
      %v1927 = vmul.f32 %v1917, 0.7978846
      %v1928 = vmul.f32 %v1918, 0.7978846
      %v1929 = vmul.f32 %v1919, 0.7978846
      %v1930 = vmul.f32 %v1920, 0.7978846
      %v1931 = vmul.f32 %v1921, 0.7978846
      %v1932 = vmul.f32 %v1922, 0.7978846
      %v1933 = vmul.f32 %v1923, 0.7978846
      %v1934 = vmul.f32 %v1924, 0.7978846
      %v1935 = vtanh.pop %v1925
      %v1936 = vtanh.pop %v1926
      %v1937 = vtanh.pop %v1927
      %v1938 = vtanh.pop %v1928
      %v1939 = vtanh.pop %v1929
      %v1940 = vtanh.pop %v1930
      %v1941 = vtanh.pop %v1931
      %v1942 = vtanh.pop %v1932
      %v1943 = vtanh.pop %v1933
      %v1944 = vtanh.pop %v1934
      %v1945 = vadd.f32 %v1935, 1.0
      %v1946 = vadd.f32 %v1936, 1.0
      %v1947 = vadd.f32 %v1937, 1.0
      %v1948 = vadd.f32 %v1938, 1.0
      %v1949 = vadd.f32 %v1939, 1.0
      %v1950 = vadd.f32 %v1940, 1.0
      %v1951 = vadd.f32 %v1941, 1.0
      %v1952 = vadd.f32 %v1942, 1.0
      %v1953 = vadd.f32 %v1943, 1.0
      %v1954 = vadd.f32 %v1944, 1.0
      %v1955 = vmul.f32 %v1945, 0.5
      %v1956 = vmul.f32 %v1946, 0.5
      %v1957 = vmul.f32 %v1947, 0.5
      %v1958 = vmul.f32 %v1948, 0.5
      %v1959 = vmul.f32 %v1949, 0.5
      %v1960 = vmul.f32 %v1950, 0.5
      %v1961 = vmul.f32 %v1951, 0.5
      %v1962 = vmul.f32 %v1952, 0.5
      %v1963 = vmul.f32 %v1953, 0.5
      %v1964 = vmul.f32 %v1954, 0.5
      %v1965 = vmul.f32 %v1875, %v1955
      %v1966 = vmul.f32 %v1876, %v1956
      %v1967 = vmul.f32 %v1877, %v1957
      %v1968 = vmul.f32 %v1878, %v1958
      %v1969 = vmul.f32 %v1879, %v1959
      %v1970 = vmul.f32 %v1880, %v1960
      %v1971 = vmul.f32 %v1881, %v1961
      %v1972 = vmul.f32 %v1882, %v1962
      %v1973 = vmul.f32 %v1883, %v1963
      %v1974 = vmul.f32 %v1884, %v1964
      %v1975 = vmul.f32 %v1965, 1.7015043
      %v1976 = vmul.f32 %v1966, 1.7015043
      %v1977 = vmul.f32 %v1967, 1.7015043
      %v1978 = vmul.f32 %v1968, 1.7015043
      %v1979 = vmul.f32 %v1969, 1.7015043
      %v1980 = vmul.f32 %v1970, 1.7015043
      %v1981 = vmul.f32 %v1971, 1.7015043
      %v1982 = vmul.f32 %v1972, 1.7015043
      %v1983 = vmul.f32 %v1973, 1.7015043
      %v1984 = vmul.f32 %v1974, 1.7015043
      %v1985 = vpack.c.bf16 %v1976, %v1975
      %v1986 = vpack.c.bf16 %v1978, %v1977
      %v1987 = vpack.c.bf16 %v1980, %v1979
      %v1988 = vpack.c.bf16 %v1982, %v1981
      %v1989 = vpack.c.bf16 %v1984, %v1983
      %v1995 = vunpack.c.l.b16 %v1985
      %v1996 = vunpack.c.h.b16 %v1985
      %v1997 = vunpack.c.l.b16 %v1986
      %v1998 = vunpack.c.h.b16 %v1986
      %v1999 = vunpack.c.l.b16 %v1987
      %v2000 = vunpack.c.h.b16 %v1987
      %v2001 = vunpack.c.l.b16 %v1988
      %v2002 = vunpack.c.h.b16 %v1988
      %v2003 = vunpack.c.l.b16 %v1989
      %v2004 = vunpack.c.h.b16 %v1989
      %v2005 = vpack.c.b16 %v1995, %v1995
      %v2006 = vpack.c.b16 %v1996, %v1996
      %v2007 = vpack.c.b16 %v1997, %v1997
      %v2008 = vpack.c.b16 %v1998, %v1998
      %v2009 = vpack.c.b16 %v1999, %v1999
      %v2010 = vpack.c.b16 %v2000, %v2000
      %v2011 = vpack.c.b16 %v2001, %v2001
      %v2012 = vpack.c.b16 %v2002, %v2002
      %v2013 = vpack.c.b16 %v2003, %v2003
      %v2014 = vpack.c.b16 %v2004, %v2004
      %2025 = vst [vmem:[%s170] sm:$0xf] %v2005
      %2026 = vst [vmem:[%s170 + $0x4] sm:$0xf] %v2006
      %2027 = vst [vmem:[%s170 + $0x8] sm:$0xf] %v2007
      %2028 = vst [vmem:[%s170 + $0xc] sm:$0xf] %v2008
      %2029 = vst [vmem:[%s170 + $0x10] sm:$0xf] %v2009
      %2030 = vst [vmem:[%s170 + $0x14] sm:$0xf] %v2010
      %2031 = vst [vmem:[%s170 + $0x18] sm:$0xf] %v2011
      %2032 = vst [vmem:[%s170 + $0x1c] sm:$0xf] %v2012
      %2033 = vst [vmem:[%s170 + $0x20] sm:$0xf] %v2013
      %2034 = vst [vmem:[%s170 + $0x24] sm:$0xf] %v2014
      %p2035 = scmp.lt.s32.totalorder %s14, 1
      %s2036 = scalar_select %p2035, %s14, 1
      %s2037 = smul.addr %s2036, 10
      %s2038 = smul.addr %s2037, 4
      %s2039 = scalar_lea.vmem %s3, %s2038
      // Predicated region
      $region33: #{_forward_impl.4} parent=31 // pred_check
        %p2040 = pneg %p100
      $region34: #{_forward_impl.4} parent=31 // pred_check_branch
        %2042 = sbr.rel (%p2040) target = $region36
      $region35: #{_forward_impl.4} parent=31 // pred_region
        _
      $region36: #{_forward_impl.4} parent=31 // pred_fallthru
        _
    $region32: #{_forward_impl.4} parent=5 // pred_fallthru
      _
    %p2043 = scmp.le.s32.totalorder 2, %s9
    // Predicated region
    $region37: #{_forward_impl.4} parent=5 // pred_check
      %p2044 = pneg %p2043
    $region38: #{_forward_impl.4} parent=5 // pred_check_branch
      %2046 = sbr.rel (%p2044) target = $region40
    $region39: #{_forward_impl.4} parent=5 // pred_region
      %s2047 = ssub.s32 %s9, 2
      // Predicated region
      $region41: #{_forward_impl.4} parent=39 // pred_check
        %p2048 = pneg %p106
      $region42: #{_forward_impl.4} parent=39 // pred_check_branch
        %2050 = sbr.rel (%p2048) target = $region44
      $region43: #{_forward_impl.4} parent=39 // pred_region
        %p2051 = scmp.lt.s32.totalorder %s15, 1
        %s2052 = scalar_select %p2051, %s15, 1
        %s2053 = smul.addr %s2052, 10
        %s2054 = smul.addr %s2053, 4
        %s2055 = scalar_lea.vmem %s3, %s2054
      $region44: #{_forward_impl.4} parent=39 // pred_fallthru
        _
    $region40: #{_forward_impl.4} parent=5 // pred_fallthru
      _
  $region6: #{_forward_impl.4} parent=0 // loop_footer
    %s13 = sadd.s32 1, %s9
  $region7: #{_forward_impl.4} parent=0 // loop_footer_branch
    %8 = sbr.rel target = $region3
  $region8: #{_forward_impl.4} parent=0 // loop_exit
    _

// kernel: _forward_impl.5
$region0: #{_forward_impl.5}
  #allocation0 [shape = 'u32[]', space=smem, size = 0x4, offset = 0x4, fixed_abs, tag = 'smem constant byte address 0x4 - core index']
  #allocation1 [shape = 'u32[144,128]{1,0:T(1,128)}', space=vmem, size = 0x12000, scoped, tag = 'internal scratch']
  %s0 = inlined_call_operand.vmem [shape: bf16[2,104,128], index: 0, kind: input, shape index: {}]
  %s1 = inlined_call_operand.vmem [shape: bf16[1152,128], index: 1, kind: input, shape index: {}]
  %s2 = inlined_call_operand.vmem [shape: f32[1,128], index: 2, kind: input, shape index: {}]
  %s3 = inlined_call_operand.vmem [shape: f32[2,20,128], index: 3, kind: output, shape index: {}]
  %s4 = sld [smem:[#allocation0]]
  $region45: #{_forward_impl.5} parent=0
    _
  %s6 = ssub.s32 1, %s4
  %s7 = scalar_select 0, %s6, %s4
  loop: start=0, step=1, limit=4
  $region2: #{_forward_impl.5} parent=0 // loop_pre_header
    _
  $region3: #{_forward_impl.5} parent=0 // loop_header
    %s9 = sphi 0, %s13
    %p10 = scmp.ge.s32.totalorder %s9, 4
    %s19 = sphi 0, %s21
    %s22 = sphi 0, %s19
    %s23 = sphi 0, %s22
    %s39 = sphi 0, %s23
    %s43 = sphi 0, %s43
    %s45 = sphi 0, %s43
    %s46 = sphi 0, %s45
    %s60 = sphi 0, %s46
    %s64 = sphi 0, %s64
    %s66 = sphi 0, %s64
    %s67 = sphi 0, %s66
    %s81 = sphi 0, %s67
    %s87 = sphi 0, %s89
    %s90 = sphi 0, %s87
    %s91 = sphi 0, %s90
    %s107 = sphi 0, %s91
  $region4: #{_forward_impl.5} parent=0 // loop_header_branch
    %12 = sbr.rel (%p10) target = $region8
  $region5: #{_forward_impl.5} parent=0 // loop_body
    %s14 = ssub.s32 %s9, 1
    %s15 = ssub.s32 %s9, 2
    %s16 = sadd.s32 %s9, 1
    %s17 = ssub.s32 %s9, %s16
    %p18 = scmp.eq.s32.totalorder %s17, 0
    %s20 = sadd.s32 %s19, 1
    %s21 = scalar_select %p18, %s19, %s20
    %p24 = pneg %p18
    %p25 = scmp.eq.s32.totalorder %s9, 1
    %p26 = por %p24, %p25
    %p27 = scmp.ne.s32.totalorder %s19, %s22
    %p28 = scmp.eq.s32.totalorder %s9, 0
    %p29 = por %p27, %p28
    %p30 = scmp.ne.s32.totalorder %s19, %s22
    %p31 = scmp.eq.s32.totalorder %s14, 1
    %p32 = por %p30, %p31
    %p33 = scmp.ne.s32.totalorder %s22, %s23
    %p34 = scmp.eq.s32.totalorder %s14, 0
    %p35 = por %p33, %p34
    %p36 = scmp.ne.s32.totalorder %s22, %s23
    %p37 = scmp.eq.s32.totalorder %s15, 1
    %p38 = por %p36, %p37
    %p40 = scmp.ne.s32.totalorder %s23, %s39
    %p41 = scmp.eq.s32.totalorder %s15, 0
    %p42 = por %p40, %p41
    %s44 = sadd.s32 %s43, 1
    %p47 = scmp.eq.s32.totalorder %s9, 1
    %p48 = scmp.ne.s32.totalorder %s43, %s45
    %p49 = scmp.eq.s32.totalorder %s9, 0
    %p50 = por %p48, %p49
    %p51 = scmp.ne.s32.totalorder %s43, %s45
    %p52 = scmp.eq.s32.totalorder %s14, 1
    %p53 = por %p51, %p52
    %p54 = scmp.ne.s32.totalorder %s45, %s46
    %p55 = scmp.eq.s32.totalorder %s14, 0
    %p56 = por %p54, %p55
    %p57 = scmp.ne.s32.totalorder %s45, %s46
    %p58 = scmp.eq.s32.totalorder %s15, 1
    %p59 = por %p57, %p58
    %p61 = scmp.ne.s32.totalorder %s46, %s60
    %p62 = scmp.eq.s32.totalorder %s15, 0
    %p63 = por %p61, %p62
    %s65 = sadd.s32 %s64, 1
    %p68 = scmp.eq.s32.totalorder %s9, 1
    %p69 = scmp.ne.s32.totalorder %s64, %s66
    %p70 = scmp.eq.s32.totalorder %s9, 0
    %p71 = por %p69, %p70
    %p72 = scmp.ne.s32.totalorder %s64, %s66
    %p73 = scmp.eq.s32.totalorder %s14, 1
    %p74 = por %p72, %p73
    %p75 = scmp.ne.s32.totalorder %s66, %s67
    %p76 = scmp.eq.s32.totalorder %s14, 0
    %p77 = por %p75, %p76
    %p78 = scmp.ne.s32.totalorder %s66, %s67
    %p79 = scmp.eq.s32.totalorder %s15, 1
    %p80 = por %p78, %p79
    %p82 = scmp.ne.s32.totalorder %s67, %s81
    %p83 = scmp.eq.s32.totalorder %s15, 0
    %p84 = por %p82, %p83
    %s85 = ssub.s32 %s9, %s16
    %p86 = scmp.eq.s32.totalorder %s85, 0
    %s88 = sadd.s32 %s87, 1
    %s89 = scalar_select %p86, %s87, %s88
    %p92 = pneg %p86
    %p93 = scmp.eq.s32.totalorder %s9, 1
    %p94 = por %p92, %p93
    %p95 = scmp.ne.s32.totalorder %s87, %s90
    %p96 = scmp.eq.s32.totalorder %s9, 0
    %p97 = por %p95, %p96
    %p98 = scmp.ne.s32.totalorder %s87, %s90
    %p99 = scmp.eq.s32.totalorder %s14, 1
    %p100 = por %p98, %p99
    %p101 = scmp.ne.s32.totalorder %s90, %s91
    %p102 = scmp.eq.s32.totalorder %s14, 0
    %p103 = por %p101, %p102
    %p104 = scmp.ne.s32.totalorder %s90, %s91
    %p105 = scmp.eq.s32.totalorder %s15, 1
    %p106 = por %p104, %p105
    %p108 = scmp.ne.s32.totalorder %s91, %s107
    %p109 = scmp.eq.s32.totalorder %s15, 0
    %p110 = por %p108, %p109
    %p111 = scmp.le.s32.totalorder 1, %s9
    %p112 = scmp.lt.s32.totalorder %s9, 3
    %p113 = pnand %p111, %p112
    %p114 = pneg %p113
    // Predicated region
    $region9: #{_forward_impl.5} parent=5 // pred_check
      _
    $region10: #{_forward_impl.5} parent=5 // pred_check_branch
      %116 = sbr.rel (%p113) target = $region12
    $region11: #{_forward_impl.5} parent=5 // pred_region
      %s117 = ssub.s32 %s9, 1
      // Predicated region
      $region13: #{_forward_impl.5} parent=11 // pred_check
        %p118 = pneg %p56
      $region14: #{_forward_impl.5} parent=11 // pred_check_branch
        %120 = sbr.rel (%p118) target = $region16
      $region15: #{_forward_impl.5} parent=11 // pred_region
        _
      $region16: #{_forward_impl.5} parent=11 // pred_fallthru
        _
      // Predicated region
      $region17: #{_forward_impl.5} parent=11 // pred_check
        %p121 = pneg %p77
      $region18: #{_forward_impl.5} parent=11 // pred_check_branch
        %123 = sbr.rel (%p121) target = $region20
      $region19: #{_forward_impl.5} parent=11 // pred_region
        _
      $region20: #{_forward_impl.5} parent=11 // pred_fallthru
        _
    $region12: #{_forward_impl.5} parent=5 // pred_fallthru
      _
    %p124 = scmp.lt.s32.totalorder %s9, 2
    // Predicated region
    $region21: #{_forward_impl.5} parent=5 // pred_check
      %p125 = pneg %p124
    $region22: #{_forward_impl.5} parent=5 // pred_check_branch
      %127 = sbr.rel (%p125) target = $region24
    $region23: #{_forward_impl.5} parent=5 // pred_region
      // Predicated region
      $region25: #{_forward_impl.5} parent=23 // pred_check
        %p128 = pneg %p29
      $region26: #{_forward_impl.5} parent=23 // pred_check_branch
        %130 = sbr.rel (%p128) target = $region28
      $region27: #{_forward_impl.5} parent=23 // pred_region
        %p131 = scmp.lt.s32.totalorder %s9, 1
        %s132 = scalar_select %p131, %s9, 1
        %s133 = smul.addr %s132, 13
        %s134 = smul.addr %s133, 4
        %s135 = scalar_lea.vmem %s0, %s134
      $region28: #{_forward_impl.5} parent=23 // pred_fallthru
        _
    $region24: #{_forward_impl.5} parent=5 // pred_fallthru
      _
    %p136 = scmp.le.s32.totalorder 1, %s9
    %p137 = scmp.lt.s32.totalorder %s9, 3
    %p138 = pnand %p136, %p137
    %p139 = pneg %p138
    // Predicated region
    $region29: #{_forward_impl.5} parent=5 // pred_check
      _
    $region30: #{_forward_impl.5} parent=5 // pred_check_branch
      %141 = sbr.rel (%p138) target = $region32
    $region31: #{_forward_impl.5} parent=5 // pred_region
      %s142 = ssub.s32 %s9, 1
      %p143 = scmp.lt.s32.totalorder %s14, 1
      %s144 = scalar_select %p143, %s14, 1
      %s145 = smul.addr %s144, 13
      %s146 = smul.addr %s145, 4
      %s147 = scalar_lea.vmem %s0, %s146
      %p148 = pneg %p35
      %p149 = pneg %p32
      %p150 = pneg %p56
      %p151 = pneg %p53
      %p152 = pneg %p77
      %p153 = pneg %p74
      %p154 = pneg %p103
      %p155 = pneg %p100
      %p156 = scmp.lt.s32.totalorder %s14, 1
      %s157 = scalar_select %p156, %s14, 1
      %s158 = smul.addr %s157, 3
      %s159 = smul.addr %s158, 8
      %s160 = scalar_lea.vmem %s3, %s159
      %p161 = scmp.lt.s32.totalorder %s14, 1
      %s162 = scalar_select %p161, %s14, 1
      %s163 = smul.addr %s162, 13
      %s164 = smul.addr %s163, 4
      %s165 = scalar_lea.vmem %s0, %s164
      %p166 = scmp.lt.s32.totalorder %s14, 1
      %s167 = scalar_select %p166, %s14, 1
      %s168 = smul.addr %s167, 3
      %s169 = smul.addr %s168, 8
      %s170 = scalar_lea.vmem %s3, %s169
      %v172 = vld [vmem:[%s165] sm:$0xf]
      %v173 = vld [vmem:[%s165 + $0x4] sm:$0xf]
      %v174 = vld [vmem:[%s165 + $0x8] sm:$0x3]
      %v175 = vld [vmem:[%s1] sm:$0xf]
      %v176 = vld [vmem:[%s1 + $0x4] sm:$0xf]
      %v177 = vld [vmem:[%s1 + $0x8] sm:$0xf]
      %v178 = vld [vmem:[%s1 + $0xc] sm:$0xf]
      %v179 = vld [vmem:[%s1 + $0x10] sm:$0xf]
      %v180 = vld [vmem:[%s1 + $0x14] sm:$0xf]
      %v181 = vld [vmem:[%s1 + $0x18] sm:$0xf]
      %v182 = vld [vmem:[%s1 + $0x1c] sm:$0xf]
      %v183 = vld [vmem:[%s1 + $0x20] sm:$0xf]
      %v184 = vld [vmem:[%s1 + $0x24] sm:$0xf]
      %v185 = vld [vmem:[%s1 + $0x28] sm:$0xf]
      %v186 = vld [vmem:[%s1 + $0x2c] sm:$0xf]
      %v187 = vld [vmem:[%s1 + $0x30] sm:$0xf]
      %v188 = vld [vmem:[%s1 + $0x34] sm:$0xf]
      %v189 = vld [vmem:[%s1 + $0x38] sm:$0xf]
      %v190 = vld [vmem:[%s1 + $0x3c] sm:$0xf]
      %v191 = vld [vmem:[%s165 + $0xc] sm:$0xf]
      %v192 = vld [vmem:[%s165 + $0x10] sm:$0xf]
      %v193 = vld [vmem:[%s165 + $0x14] sm:$0x7]
      %v194 = vld [vmem:[%s1 + $0x40] sm:$0xf]
      %v195 = vld [vmem:[%s1 + $0x44] sm:$0xf]
      %v196 = vld [vmem:[%s1 + $0x48] sm:$0xf]
      %v197 = vld [vmem:[%s1 + $0x4c] sm:$0xf]
      %v198 = vld [vmem:[%s1 + $0x50] sm:$0xf]
      %v199 = vld [vmem:[%s1 + $0x54] sm:$0xf]
      %v200 = vld [vmem:[%s1 + $0x58] sm:$0xf]
      %v201 = vld [vmem:[%s1 + $0x5c] sm:$0xf]
      %v202 = vld [vmem:[%s1 + $0x60] sm:$0xf]
      %v203 = vld [vmem:[%s1 + $0x64] sm:$0xf]
      %v204 = vld [vmem:[%s1 + $0x68] sm:$0xf]
      %v205 = vld [vmem:[%s1 + $0x6c] sm:$0xf]
      %v206 = vld [vmem:[%s1 + $0x70] sm:$0xf]
      %v207 = vld [vmem:[%s1 + $0x74] sm:$0xf]
      %v208 = vld [vmem:[%s1 + $0x78] sm:$0xf]
      %v209 = vld [vmem:[%s1 + $0x7c] sm:$0xf]
      %v213 = vunpack.c.l.b16 %v191
      %v214 = vunpack.c.l.b16 %v192
      %v215 = vunpack.c.l.b16 %v193
      %v216 = vpack.c.b16 %v214, %v213
      %v217 = vpack.c.b16 %v215, %v215
      %vm218 = vsmask.f32 7424
      %v220 = vshrl.u32 %v216, 16
      %v222 = vshll.u32 %v216, 16
      %v224 = vrot.slane %v222, 1
      %v225 = vor.u32 %v220, %v224
      %v227 = vshll.u32 %v217, 16
      %v229 = vrot.slane %v227, 1
      %v230 = vsel %vm218, %v225, %v229
      %v231 = vshrl.u32 %v217, 16
      %v233 = vor.u32 %v231, %v229
      %v252 = vunpack.c.l.b16 %v194
      %v253 = vunpack.c.l.b16 %v195
      %v254 = vunpack.c.l.b16 %v196
      %v255 = vunpack.c.l.b16 %v197
      %v256 = vunpack.c.l.b16 %v198
      %v257 = vunpack.c.l.b16 %v199
      %v258 = vunpack.c.l.b16 %v200
      %v259 = vunpack.c.l.b16 %v201
      %v260 = vunpack.c.l.b16 %v202
      %v261 = vunpack.c.l.b16 %v203
      %v262 = vunpack.c.l.b16 %v204
      %v263 = vunpack.c.l.b16 %v205
      %v264 = vunpack.c.l.b16 %v206
      %v265 = vunpack.c.l.b16 %v207
      %v266 = vunpack.c.l.b16 %v208
      %v267 = vunpack.c.l.b16 %v209
      %v268 = vpack.c.b16 %v253, %v252
      %v269 = vpack.c.b16 %v255, %v254
      %v270 = vpack.c.b16 %v257, %v256
      %v271 = vpack.c.b16 %v259, %v258
      %v272 = vpack.c.b16 %v261, %v260
      %v273 = vpack.c.b16 %v263, %v262
      %v274 = vpack.c.b16 %v265, %v264
      %v275 = vpack.c.b16 %v267, %v266
      %284 = vmatprep.subr.bf16.mxu0 0
      %285 = vmatpush1.bf16.msra.mxu0 %v268
      %286 = vmatprep.subr.bf16.mxu0 0
      %287 = vmatpush1.bf16.msra.mxu0 %v269
      %288 = vmatprep.subr.bf16.mxu0 0
      %289 = vmatpush1.bf16.msra.mxu0 %v270
      %290 = vmatprep.subr.bf16.mxu0 0
      %291 = vmatpush1.bf16.msra.mxu0 %v271
      %292 = vmatprep.subr.bf16.mxu0 0
      %293 = vmatpush1.bf16.msra.mxu0 %v272
      %294 = vmatprep.subr.bf16.mxu0 0
      %295 = vmatpush1.bf16.msra.mxu0 %v273
      %296 = vmatprep.subr.bf16.mxu0 0
      %297 = vmatpush1.bf16.msra.mxu0 %v274
      %298 = vmatprep.subr.bf16.mxu0 0
      %299 = vmatpush1.bf16.msra.mxu0 %v275
      %300 = vmatprep.subr.bf16.mxu0 0
      %301 = vmatpush1.bf16.msra.mxu0 0
      %302 = vmatprep.subr.bf16.mxu0 0
      %303 = vmatpush1.bf16.msra.mxu0 0
      %304 = vmatprep.subr.bf16.mxu0 0
      %305 = vmatpush1.bf16.msra.mxu0 0
      %306 = vmatprep.subr.bf16.mxu0 0
      %307 = vmatpush1.bf16.msra.mxu0 0
      %308 = vmatprep.subr.bf16.mxu0 0
      %309 = vmatpush1.bf16.msra.mxu0 0
      %310 = vmatprep.subr.bf16.mxu0 0
      %311 = vmatpush1.bf16.msra.mxu0 0
      %312 = vmatprep.subr.bf16.mxu0 0
      %313 = vmatpush1.bf16.msra.mxu0 0
      %314 = vmatprep.subr.bf16.mxu0 0
      %315 = vmatpush1.bf16.msra.mxu0 0
      %316 = vmatprep.mubr.bf16.mxu0 0
      %317 = vmatmul.mubr.bf16.gmra.mrb[0].mxu0 %v230
      %v318 = vpop.f32.mrb[0].mxu0
      %v319 = vadd.f32 0.0, %v318
      %v320 = vpop.f32.mrb[0].mxu0
      %v321 = vpop.f32.mrb[0].mxu0
      %v322 = vadd.f32 0.0, %v321
      %v323 = vpop.f32.mrb[0].mxu0
      %324 = vmatprep.mubr.bf16.mxu0 0
      %325 = vmatmul.mubr.bf16.gmra.mrb[0].mxu0 %v233
      %v326 = vpop.f32.mrb[0].mxu0
      %v327 = vadd.f32 0.0, %v326
      %v328 = vpop.f32.mrb[0].mxu0
      %v329 = vpop.f32.mrb[0].mxu0
      %v330 = vpop.f32.mrb[0].mxu0
      %331 = vdwg.mxu0
      %v335 = vunpack.c.l.b16 %v172
      %v336 = vunpack.c.l.b16 %v173
      %v337 = vunpack.c.l.b16 %v174
      %v338 = vpack.c.b16 %v336, %v335
      %v339 = vpack.c.b16 %v337, %v337
      %v358 = vunpack.c.l.b16 %v175
      %v359 = vunpack.c.l.b16 %v176
      %v360 = vunpack.c.l.b16 %v177
      %v361 = vunpack.c.l.b16 %v178
      %v362 = vunpack.c.l.b16 %v179
      %v363 = vunpack.c.l.b16 %v180
      %v364 = vunpack.c.l.b16 %v181
      %v365 = vunpack.c.l.b16 %v182
      %v366 = vunpack.c.l.b16 %v183
      %v367 = vunpack.c.l.b16 %v184
      %v368 = vunpack.c.l.b16 %v185
      %v369 = vunpack.c.l.b16 %v186
      %v370 = vunpack.c.l.b16 %v187
      %v371 = vunpack.c.l.b16 %v188
      %v372 = vunpack.c.l.b16 %v189
      %v373 = vunpack.c.l.b16 %v190
      %v374 = vpack.c.b16 %v359, %v358
      %v375 = vpack.c.b16 %v361, %v360
      %v376 = vpack.c.b16 %v363, %v362
      %v377 = vpack.c.b16 %v365, %v364
      %v378 = vpack.c.b16 %v367, %v366
      %v379 = vpack.c.b16 %v369, %v368
      %v380 = vpack.c.b16 %v371, %v370
      %v381 = vpack.c.b16 %v373, %v372
      %390 = vmatprep.subr.bf16.mxu0 0
      %391 = vmatpush1.bf16.msra.mxu0 %v374
      %392 = vmatprep.subr.bf16.mxu0 0
      %393 = vmatpush1.bf16.msra.mxu0 %v375
      %394 = vmatprep.subr.bf16.mxu0 0
      %395 = vmatpush1.bf16.msra.mxu0 %v376
      %396 = vmatprep.subr.bf16.mxu0 0
      %397 = vmatpush1.bf16.msra.mxu0 %v377
      %398 = vmatprep.subr.bf16.mxu0 0
      %399 = vmatpush1.bf16.msra.mxu0 %v378
      %400 = vmatprep.subr.bf16.mxu0 0
      %401 = vmatpush1.bf16.msra.mxu0 %v379
      %402 = vmatprep.subr.bf16.mxu0 0
      %403 = vmatpush1.bf16.msra.mxu0 %v380
      %404 = vmatprep.subr.bf16.mxu0 0
      %405 = vmatpush1.bf16.msra.mxu0 %v381
      %406 = vmatprep.subr.bf16.mxu0 0
      %407 = vmatpush1.bf16.msra.mxu0 0
      %408 = vmatprep.subr.bf16.mxu0 0
      %409 = vmatpush1.bf16.msra.mxu0 0
      %410 = vmatprep.subr.bf16.mxu0 0
      %411 = vmatpush1.bf16.msra.mxu0 0
      %412 = vmatprep.subr.bf16.mxu0 0
      %413 = vmatpush1.bf16.msra.mxu0 0
      %414 = vmatprep.subr.bf16.mxu0 0
      %415 = vmatpush1.bf16.msra.mxu0 0
      %416 = vmatprep.subr.bf16.mxu0 0
      %417 = vmatpush1.bf16.msra.mxu0 0
      %418 = vmatprep.subr.bf16.mxu0 0
      %419 = vmatpush1.bf16.msra.mxu0 0
      %420 = vmatprep.subr.bf16.mxu0 0
      %421 = vmatpush1.bf16.msra.mxu0 0
      %422 = vmatprep.mubr.bf16.mxu0 0
      %423 = vmatmul.mubr.bf16.gmra.mrb[0].mxu0 %v338
      %v424 = vpop.f32.mrb[0].mxu0
      %v425 = vadd.f32 %v319, %v424
      %v426 = vpop.f32.mrb[0].mxu0
      %v427 = vpop.f32.mrb[0].mxu0
      %v428 = vadd.f32 %v322, %v427
      %v429 = vpop.f32.mrb[0].mxu0
      %430 = vmatprep.mubr.bf16.mxu0 0
      %431 = vmatmul.mubr.bf16.gmra.mrb[0].mxu0 %v339
      %v432 = vpop.f32.mrb[0].mxu0
      %v433 = vadd.f32 %v327, %v432
      %v434 = vpop.f32.mrb[0].mxu0
      %v435 = vpop.f32.mrb[0].mxu0
      %v436 = vpop.f32.mrb[0].mxu0
      %437 = vdwg.mxu0
      %v438 = vld [vmem:[%s165 + $0x8] sm:$0x7]
      %v439 = vld [vmem:[%s1 + $0x80] sm:$0xf]
      %v440 = vld [vmem:[%s1 + $0x84] sm:$0xf]
      %v441 = vld [vmem:[%s1 + $0x88] sm:$0xf]
      %v442 = vld [vmem:[%s1 + $0x8c] sm:$0xf]
      %v443 = vld [vmem:[%s1 + $0x90] sm:$0xf]
      %v444 = vld [vmem:[%s1 + $0x94] sm:$0xf]
      %v445 = vld [vmem:[%s1 + $0x98] sm:$0xf]
      %v446 = vld [vmem:[%s1 + $0x9c] sm:$0xf]
      %v447 = vld [vmem:[%s1 + $0xa0] sm:$0xf]
      %v448 = vld [vmem:[%s1 + $0xa4] sm:$0xf]
      %v449 = vld [vmem:[%s1 + $0xa8] sm:$0xf]
      %v450 = vld [vmem:[%s1 + $0xac] sm:$0xf]
      %v451 = vld [vmem:[%s1 + $0xb0] sm:$0xf]
      %v452 = vld [vmem:[%s1 + $0xb4] sm:$0xf]
      %v453 = vld [vmem:[%s1 + $0xb8] sm:$0xf]
      %v454 = vld [vmem:[%s1 + $0xbc] sm:$0xf]
      %v456 = vunpack.c.l.b16 %v438
      %v457 = vpack.c.b16 %v456, %v456
      %v459 = vshrl.u32 %v338, 16
      %v461 = vshll.u32 %v338, 16
      %v463 = vrot.slane %v461, 1
      %v464 = vor.u32 %v459, %v463
      %v466 = vshll.u32 %v457, 16
      %v468 = vrot.slane %v466, 1
      %v469 = vsel %vm218, %v464, %v468
      %v470 = vshrl.u32 %v457, 16
      %v472 = vor.u32 %v470, %v468
      %v491 = vunpack.c.l.b16 %v439
      %v492 = vunpack.c.l.b16 %v440
      %v493 = vunpack.c.l.b16 %v441
      %v494 = vunpack.c.l.b16 %v442
      %v495 = vunpack.c.l.b16 %v443
      %v496 = vunpack.c.l.b16 %v444
      %v497 = vunpack.c.l.b16 %v445
      %v498 = vunpack.c.l.b16 %v446
      %v499 = vunpack.c.l.b16 %v447
      %v500 = vunpack.c.l.b16 %v448
      %v501 = vunpack.c.l.b16 %v449
      %v502 = vunpack.c.l.b16 %v450
      %v503 = vunpack.c.l.b16 %v451
      %v504 = vunpack.c.l.b16 %v452
      %v505 = vunpack.c.l.b16 %v453
      %v506 = vunpack.c.l.b16 %v454
      %v507 = vpack.c.b16 %v492, %v491
      %v508 = vpack.c.b16 %v494, %v493
      %v509 = vpack.c.b16 %v496, %v495
      %v510 = vpack.c.b16 %v498, %v497
      %v511 = vpack.c.b16 %v500, %v499
      %v512 = vpack.c.b16 %v502, %v501
      %v513 = vpack.c.b16 %v504, %v503
      %v514 = vpack.c.b16 %v506, %v505
      %523 = vmatprep.subr.bf16.mxu0 0
      %524 = vmatpush1.bf16.msra.mxu0 %v507
      %525 = vmatprep.subr.bf16.mxu0 0
      %526 = vmatpush1.bf16.msra.mxu0 %v508
      %527 = vmatprep.subr.bf16.mxu0 0
      %528 = vmatpush1.bf16.msra.mxu0 %v509
      %529 = vmatprep.subr.bf16.mxu0 0
      %530 = vmatpush1.bf16.msra.mxu0 %v510
      %531 = vmatprep.subr.bf16.mxu0 0
      %532 = vmatpush1.bf16.msra.mxu0 %v511
      %533 = vmatprep.subr.bf16.mxu0 0
      %534 = vmatpush1.bf16.msra.mxu0 %v512
      %535 = vmatprep.subr.bf16.mxu0 0
      %536 = vmatpush1.bf16.msra.mxu0 %v513
      %537 = vmatprep.subr.bf16.mxu0 0
      %538 = vmatpush1.bf16.msra.mxu0 %v514
      %539 = vmatprep.subr.bf16.mxu0 0
      %540 = vmatpush1.bf16.msra.mxu0 0
      %541 = vmatprep.subr.bf16.mxu0 0
      %542 = vmatpush1.bf16.msra.mxu0 0
      %543 = vmatprep.subr.bf16.mxu0 0
      %544 = vmatpush1.bf16.msra.mxu0 0
      %545 = vmatprep.subr.bf16.mxu0 0
      %546 = vmatpush1.bf16.msra.mxu0 0
      %547 = vmatprep.subr.bf16.mxu0 0
      %548 = vmatpush1.bf16.msra.mxu0 0
      %549 = vmatprep.subr.bf16.mxu0 0
      %550 = vmatpush1.bf16.msra.mxu0 0
      %551 = vmatprep.subr.bf16.mxu0 0
      %552 = vmatpush1.bf16.msra.mxu0 0
      %553 = vmatprep.subr.bf16.mxu0 0
      %554 = vmatpush1.bf16.msra.mxu0 0
      %555 = vmatprep.mubr.bf16.mxu0 0
      %556 = vmatmul.mubr.bf16.gmra.mrb[0].mxu0 %v469
      %v557 = vpop.f32.mrb[0].mxu0
      %v558 = vadd.f32 0.0, %v557
      %v559 = vpop.f32.mrb[0].mxu0
      %v560 = vpop.f32.mrb[0].mxu0
      %v561 = vadd.f32 0.0, %v560
      %v562 = vpop.f32.mrb[0].mxu0
      %563 = vmatprep.mubr.bf16.mxu0 0
      %564 = vmatmul.mubr.bf16.gmra.mrb[0].mxu0 %v472
      %v565 = vpop.f32.mrb[0].mxu0
      %v566 = vadd.f32 0.0, %v565
      %v567 = vpop.f32.mrb[0].mxu0
      %v568 = vpop.f32.mrb[0].mxu0
      %v569 = vpop.f32.mrb[0].mxu0
      %570 = vdwg.mxu0
      %v571 = vadd.f32 %v425, %v558
      %v572 = vadd.f32 %v428, %v561
      %v573 = vadd.f32 %v433, %v566
      %v574 = vld [vmem:[%s165 + $0x18] sm:$0xe]
      %v575 = vld [vmem:[%s165 + $0x1c] sm:$0xf]
      %v576 = vld [vmem:[%s165 + $0x20] sm:$0x7]
      %v577 = vld [vmem:[%s1 + $0xc0] sm:$0xf]
      %v578 = vld [vmem:[%s1 + $0xc4] sm:$0xf]
      %v579 = vld [vmem:[%s1 + $0xc8] sm:$0xf]
      %v580 = vld [vmem:[%s1 + $0xcc] sm:$0xf]
      %v581 = vld [vmem:[%s1 + $0xd0] sm:$0xf]
      %v582 = vld [vmem:[%s1 + $0xd4] sm:$0xf]
      %v583 = vld [vmem:[%s1 + $0xd8] sm:$0xf]
      %v584 = vld [vmem:[%s1 + $0xdc] sm:$0xf]
      %v585 = vld [vmem:[%s1 + $0xe0] sm:$0xf]
      %v586 = vld [vmem:[%s1 + $0xe4] sm:$0xf]
      %v587 = vld [vmem:[%s1 + $0xe8] sm:$0xf]
      %v588 = vld [vmem:[%s1 + $0xec] sm:$0xf]
      %v589 = vld [vmem:[%s1 + $0xf0] sm:$0xf]
      %v590 = vld [vmem:[%s1 + $0xf4] sm:$0xf]
      %v591 = vld [vmem:[%s1 + $0xf8] sm:$0xf]
      %v592 = vld [vmem:[%s1 + $0xfc] sm:$0xf]
      %v596 = vunpack.c.l.b16 %v574
      %v597 = vunpack.c.l.b16 %v575
      %v598 = vunpack.c.l.b16 %v576
      %v599 = vpack.c.b16 %v597, %v596
      %v600 = vpack.c.b16 %v598, %v598
      %vm601 = vcmask 1046528
      %v602 = vrot.slane %v599, 1
      %v603 = vrot.slane %v600, 1
      %v604 = vsel %vm601, %v602, %v603
      %v623 = vunpack.c.l.b16 %v577
      %v624 = vunpack.c.l.b16 %v578
      %v625 = vunpack.c.l.b16 %v579
      %v626 = vunpack.c.l.b16 %v580
      %v627 = vunpack.c.l.b16 %v581
      %v628 = vunpack.c.l.b16 %v582
      %v629 = vunpack.c.l.b16 %v583
      %v630 = vunpack.c.l.b16 %v584
      %v631 = vunpack.c.l.b16 %v585
      %v632 = vunpack.c.l.b16 %v586
      %v633 = vunpack.c.l.b16 %v587
      %v634 = vunpack.c.l.b16 %v588
      %v635 = vunpack.c.l.b16 %v589
      %v636 = vunpack.c.l.b16 %v590
      %v637 = vunpack.c.l.b16 %v591
      %v638 = vunpack.c.l.b16 %v592
      %v639 = vpack.c.b16 %v624, %v623
      %v640 = vpack.c.b16 %v626, %v625
      %v641 = vpack.c.b16 %v628, %v627
      %v642 = vpack.c.b16 %v630, %v629
      %v643 = vpack.c.b16 %v632, %v631
      %v644 = vpack.c.b16 %v634, %v633
      %v645 = vpack.c.b16 %v636, %v635
      %v646 = vpack.c.b16 %v638, %v637
      %655 = vmatprep.subr.bf16.mxu0 0
      %656 = vmatpush1.bf16.msra.mxu0 %v639
      %657 = vmatprep.subr.bf16.mxu0 0
      %658 = vmatpush1.bf16.msra.mxu0 %v640
      %659 = vmatprep.subr.bf16.mxu0 0
      %660 = vmatpush1.bf16.msra.mxu0 %v641
      %661 = vmatprep.subr.bf16.mxu0 0
      %662 = vmatpush1.bf16.msra.mxu0 %v642
      %663 = vmatprep.subr.bf16.mxu0 0
      %664 = vmatpush1.bf16.msra.mxu0 %v643
      %665 = vmatprep.subr.bf16.mxu0 0
      %666 = vmatpush1.bf16.msra.mxu0 %v644
      %667 = vmatprep.subr.bf16.mxu0 0
      %668 = vmatpush1.bf16.msra.mxu0 %v645
      %669 = vmatprep.subr.bf16.mxu0 0
      %670 = vmatpush1.bf16.msra.mxu0 %v646
      %671 = vmatprep.subr.bf16.mxu0 0
      %672 = vmatpush1.bf16.msra.mxu0 0
      %673 = vmatprep.subr.bf16.mxu0 0
      %674 = vmatpush1.bf16.msra.mxu0 0
      %675 = vmatprep.subr.bf16.mxu0 0
      %676 = vmatpush1.bf16.msra.mxu0 0
      %677 = vmatprep.subr.bf16.mxu0 0
      %678 = vmatpush1.bf16.msra.mxu0 0
      %679 = vmatprep.subr.bf16.mxu0 0
      %680 = vmatpush1.bf16.msra.mxu0 0
      %681 = vmatprep.subr.bf16.mxu0 0
      %682 = vmatpush1.bf16.msra.mxu0 0
      %683 = vmatprep.subr.bf16.mxu0 0
      %684 = vmatpush1.bf16.msra.mxu0 0
      %685 = vmatprep.subr.bf16.mxu0 0
      %686 = vmatpush1.bf16.msra.mxu0 0
      %687 = vmatprep.mubr.bf16.mxu0 0
      %688 = vmatmul.mubr.bf16.gmra.mrb[0].mxu0 %v604
      %v689 = vpop.f32.mrb[0].mxu0
      %v690 = vadd.f32 0.0, %v689
      %v691 = vpop.f32.mrb[0].mxu0
      %v692 = vpop.f32.mrb[0].mxu0
      %v693 = vadd.f32 0.0, %v692
      %v694 = vpop.f32.mrb[0].mxu0
      %695 = vmatprep.mubr.bf16.mxu0 0
      %696 = vmatmul.mubr.bf16.gmra.mrb[0].mxu0 %v603
      %v697 = vpop.f32.mrb[0].mxu0
      %v698 = vadd.f32 0.0, %v697
      %v699 = vpop.f32.mrb[0].mxu0
      %v700 = vpop.f32.mrb[0].mxu0
      %v701 = vpop.f32.mrb[0].mxu0
      %702 = vdwg.mxu0
      %v703 = vadd.f32 %v571, %v690
      %v704 = vadd.f32 %v572, %v693
      %v705 = vadd.f32 %v573, %v698
      %v706 = vld [vmem:[%s165 + $0x24] sm:$0xe]
      %v707 = vld [vmem:[%s165 + $0x28] sm:$0xf]
      %v708 = vld [vmem:[%s165 + $0x2c] sm:$0xf]
      %v709 = vld [vmem:[%s1 + $0x100] sm:$0xf]
      %v710 = vld [vmem:[%s1 + $0x104] sm:$0xf]
      %v711 = vld [vmem:[%s1 + $0x108] sm:$0xf]
      %v712 = vld [vmem:[%s1 + $0x10c] sm:$0xf]
      %v713 = vld [vmem:[%s1 + $0x110] sm:$0xf]
      %v714 = vld [vmem:[%s1 + $0x114] sm:$0xf]
      %v715 = vld [vmem:[%s1 + $0x118] sm:$0xf]
      %v716 = vld [vmem:[%s1 + $0x11c] sm:$0xf]
      %v717 = vld [vmem:[%s1 + $0x120] sm:$0xf]
      %v718 = vld [vmem:[%s1 + $0x124] sm:$0xf]
      %v719 = vld [vmem:[%s1 + $0x128] sm:$0xf]
      %v720 = vld [vmem:[%s1 + $0x12c] sm:$0xf]
      %v721 = vld [vmem:[%s1 + $0x130] sm:$0xf]
      %v722 = vld [vmem:[%s1 + $0x134] sm:$0xf]
      %v723 = vld [vmem:[%s1 + $0x138] sm:$0xf]
      %v724 = vld [vmem:[%s1 + $0x13c] sm:$0xf]
      %v728 = vunpack.c.l.b16 %v706
      %v729 = vunpack.c.l.b16 %v707
      %v730 = vunpack.c.l.b16 %v708
      %v731 = vpack.c.b16 %v729, %v728
      %v732 = vpack.c.b16 %v730, %v730
      %vm733 = vsmask.f32 6400
      %v735 = vshrl.u32 %v731, 16
      %v737 = vrot.slane %v735, 1
      %v738 = vshll.u32 %v731, 16
      %v740 = vrot.slane %v738, 2
      %v741 = vor.u32 %v737, %v740
      %v743 = vshrl.u32 %v732, 16
      %v745 = vrot.slane %v743, 1
      %v746 = vshll.u32 %v732, 16
      %v748 = vrot.slane %v746, 2
      %v749 = vor.u32 %v745, %v748
      %v750 = vsel %vm733, %v741, %v749
      %v769 = vunpack.c.l.b16 %v709
      %v770 = vunpack.c.l.b16 %v710
      %v771 = vunpack.c.l.b16 %v711
      %v772 = vunpack.c.l.b16 %v712
      %v773 = vunpack.c.l.b16 %v713
      %v774 = vunpack.c.l.b16 %v714
      %v775 = vunpack.c.l.b16 %v715
      %v776 = vunpack.c.l.b16 %v716
      %v777 = vunpack.c.l.b16 %v717
      %v778 = vunpack.c.l.b16 %v718
      %v779 = vunpack.c.l.b16 %v719
      %v780 = vunpack.c.l.b16 %v720
      %v781 = vunpack.c.l.b16 %v721
      %v782 = vunpack.c.l.b16 %v722
      %v783 = vunpack.c.l.b16 %v723
      %v784 = vunpack.c.l.b16 %v724
      %v785 = vpack.c.b16 %v770, %v769
      %v786 = vpack.c.b16 %v772, %v771
      %v787 = vpack.c.b16 %v774, %v773
      %v788 = vpack.c.b16 %v776, %v775
      %v789 = vpack.c.b16 %v778, %v777
      %v790 = vpack.c.b16 %v780, %v779
      %v791 = vpack.c.b16 %v782, %v781
      %v792 = vpack.c.b16 %v784, %v783
      %801 = vmatprep.subr.bf16.mxu0 0
      %802 = vmatpush1.bf16.msra.mxu0 %v785
      %803 = vmatprep.subr.bf16.mxu0 0
      %804 = vmatpush1.bf16.msra.mxu0 %v786
      %805 = vmatprep.subr.bf16.mxu0 0
      %806 = vmatpush1.bf16.msra.mxu0 %v787
      %807 = vmatprep.subr.bf16.mxu0 0
      %808 = vmatpush1.bf16.msra.mxu0 %v788
      %809 = vmatprep.subr.bf16.mxu0 0
      %810 = vmatpush1.bf16.msra.mxu0 %v789
      %811 = vmatprep.subr.bf16.mxu0 0
      %812 = vmatpush1.bf16.msra.mxu0 %v790
      %813 = vmatprep.subr.bf16.mxu0 0
      %814 = vmatpush1.bf16.msra.mxu0 %v791
      %815 = vmatprep.subr.bf16.mxu0 0
      %816 = vmatpush1.bf16.msra.mxu0 %v792
      %817 = vmatprep.subr.bf16.mxu0 0
      %818 = vmatpush1.bf16.msra.mxu0 0
      %819 = vmatprep.subr.bf16.mxu0 0
      %820 = vmatpush1.bf16.msra.mxu0 0
      %821 = vmatprep.subr.bf16.mxu0 0
      %822 = vmatpush1.bf16.msra.mxu0 0
      %823 = vmatprep.subr.bf16.mxu0 0
      %824 = vmatpush1.bf16.msra.mxu0 0
      %825 = vmatprep.subr.bf16.mxu0 0
      %826 = vmatpush1.bf16.msra.mxu0 0
      %827 = vmatprep.subr.bf16.mxu0 0
      %828 = vmatpush1.bf16.msra.mxu0 0
      %829 = vmatprep.subr.bf16.mxu0 0
      %830 = vmatpush1.bf16.msra.mxu0 0
      %831 = vmatprep.subr.bf16.mxu0 0
      %832 = vmatpush1.bf16.msra.mxu0 0
      %833 = vmatprep.mubr.bf16.mxu0 0
      %834 = vmatmul.mubr.bf16.gmra.mrb[0].mxu0 %v750
      %v835 = vpop.f32.mrb[0].mxu0
      %v836 = vadd.f32 0.0, %v835
      %v837 = vpop.f32.mrb[0].mxu0
      %v838 = vpop.f32.mrb[0].mxu0
      %v839 = vadd.f32 0.0, %v838
      %v840 = vpop.f32.mrb[0].mxu0
      %841 = vmatprep.mubr.bf16.mxu0 0
      %842 = vmatmul.mubr.bf16.gmra.mrb[0].mxu0 %v749
      %v843 = vpop.f32.mrb[0].mxu0
      %v844 = vadd.f32 0.0, %v843
      %v845 = vpop.f32.mrb[0].mxu0
      %v846 = vpop.f32.mrb[0].mxu0
      %v847 = vpop.f32.mrb[0].mxu0
      %848 = vdwg.mxu0
      %v849 = vadd.f32 %v703, %v836
      %v850 = vadd.f32 %v704, %v839
      %v851 = vadd.f32 %v705, %v844
      %v852 = vld [vmem:[%s165 + $0x20] sm:$0xf]
      %v853 = vld [vmem:[%s1 + $0x140] sm:$0xf]
      %v854 = vld [vmem:[%s1 + $0x144] sm:$0xf]
      %v855 = vld [vmem:[%s1 + $0x148] sm:$0xf]
      %v856 = vld [vmem:[%s1 + $0x14c] sm:$0xf]
      %v857 = vld [vmem:[%s1 + $0x150] sm:$0xf]
      %v858 = vld [vmem:[%s1 + $0x154] sm:$0xf]
      %v859 = vld [vmem:[%s1 + $0x158] sm:$0xf]
      %v860 = vld [vmem:[%s1 + $0x15c] sm:$0xf]
      %v861 = vld [vmem:[%s1 + $0x160] sm:$0xf]
      %v862 = vld [vmem:[%s1 + $0x164] sm:$0xf]
      %v863 = vld [vmem:[%s1 + $0x168] sm:$0xf]
      %v864 = vld [vmem:[%s1 + $0x16c] sm:$0xf]
      %v865 = vld [vmem:[%s1 + $0x170] sm:$0xf]
      %v866 = vld [vmem:[%s1 + $0x174] sm:$0xf]
      %v867 = vld [vmem:[%s1 + $0x178] sm:$0xf]
      %v868 = vld [vmem:[%s1 + $0x17c] sm:$0xf]
      %v870 = vunpack.c.l.b16 %v852
      %v871 = vpack.c.b16 %v870, %v870
      %v873 = vshrl.u32 %v599, 16
      %v875 = vrot.slane %v873, 1
      %v876 = vshll.u32 %v599, 16
      %v878 = vrot.slane %v876, 2
      %v879 = vor.u32 %v875, %v878
      %v881 = vshrl.u32 %v871, 16
      %v883 = vrot.slane %v881, 1
      %v884 = vshll.u32 %v871, 16
      %v886 = vrot.slane %v884, 2
      %v887 = vor.u32 %v883, %v886
      %v888 = vsel %vm733, %v879, %v887
      %v907 = vunpack.c.l.b16 %v853
      %v908 = vunpack.c.l.b16 %v854
      %v909 = vunpack.c.l.b16 %v855
      %v910 = vunpack.c.l.b16 %v856
      %v911 = vunpack.c.l.b16 %v857
      %v912 = vunpack.c.l.b16 %v858
      %v913 = vunpack.c.l.b16 %v859
      %v914 = vunpack.c.l.b16 %v860
      %v915 = vunpack.c.l.b16 %v861
      %v916 = vunpack.c.l.b16 %v862
      %v917 = vunpack.c.l.b16 %v863
      %v918 = vunpack.c.l.b16 %v864
      %v919 = vunpack.c.l.b16 %v865
      %v920 = vunpack.c.l.b16 %v866
      %v921 = vunpack.c.l.b16 %v867
      %v922 = vunpack.c.l.b16 %v868
      %v923 = vpack.c.b16 %v908, %v907
      %v924 = vpack.c.b16 %v910, %v909
      %v925 = vpack.c.b16 %v912, %v911
      %v926 = vpack.c.b16 %v914, %v913
      %v927 = vpack.c.b16 %v916, %v915
      %v928 = vpack.c.b16 %v918, %v917
      %v929 = vpack.c.b16 %v920, %v919
      %v930 = vpack.c.b16 %v922, %v921
      %939 = vmatprep.subr.bf16.mxu0 0
      %940 = vmatpush1.bf16.msra.mxu0 %v923
      %941 = vmatprep.subr.bf16.mxu0 0
      %942 = vmatpush1.bf16.msra.mxu0 %v924
      %943 = vmatprep.subr.bf16.mxu0 0
      %944 = vmatpush1.bf16.msra.mxu0 %v925
      %945 = vmatprep.subr.bf16.mxu0 0
      %946 = vmatpush1.bf16.msra.mxu0 %v926
      %947 = vmatprep.subr.bf16.mxu0 0
      %948 = vmatpush1.bf16.msra.mxu0 %v927
      %949 = vmatprep.subr.bf16.mxu0 0
      %950 = vmatpush1.bf16.msra.mxu0 %v928
      %951 = vmatprep.subr.bf16.mxu0 0
      %952 = vmatpush1.bf16.msra.mxu0 %v929
      %953 = vmatprep.subr.bf16.mxu0 0
      %954 = vmatpush1.bf16.msra.mxu0 %v930
      %955 = vmatprep.subr.bf16.mxu0 0
      %956 = vmatpush1.bf16.msra.mxu0 0
      %957 = vmatprep.subr.bf16.mxu0 0
      %958 = vmatpush1.bf16.msra.mxu0 0
      %959 = vmatprep.subr.bf16.mxu0 0
      %960 = vmatpush1.bf16.msra.mxu0 0
      %961 = vmatprep.subr.bf16.mxu0 0
      %962 = vmatpush1.bf16.msra.mxu0 0
      %963 = vmatprep.subr.bf16.mxu0 0
      %964 = vmatpush1.bf16.msra.mxu0 0
      %965 = vmatprep.subr.bf16.mxu0 0
      %966 = vmatpush1.bf16.msra.mxu0 0
      %967 = vmatprep.subr.bf16.mxu0 0
      %968 = vmatpush1.bf16.msra.mxu0 0
      %969 = vmatprep.subr.bf16.mxu0 0
      %970 = vmatpush1.bf16.msra.mxu0 0
      %971 = vmatprep.mubr.bf16.mxu0 0
      %972 = vmatmul.mubr.bf16.gmra.mrb[0].mxu0 %v888
      %v973 = vpop.f32.mrb[0].mxu0
      %v974 = vadd.f32 0.0, %v973
      %v975 = vpop.f32.mrb[0].mxu0
      %v976 = vpop.f32.mrb[0].mxu0
      %v977 = vadd.f32 0.0, %v976
      %v978 = vpop.f32.mrb[0].mxu0
      %979 = vmatprep.mubr.bf16.mxu0 0
      %980 = vmatmul.mubr.bf16.gmra.mrb[0].mxu0 %v887
      %v981 = vpop.f32.mrb[0].mxu0
      %v982 = vadd.f32 0.0, %v981
      %v983 = vpop.f32.mrb[0].mxu0
      %v984 = vpop.f32.mrb[0].mxu0
      %v985 = vpop.f32.mrb[0].mxu0
      %986 = vdwg.mxu0
      %v987 = vadd.f32 %v849, %v974
      %v988 = vadd.f32 %v850, %v977
      %v989 = vadd.f32 %v851, %v982
      %v990 = vld [vmem:[%s165] sm:$0xc]
      %v991 = vld [vmem:[%s165 + $0x4] sm:$0xf]
      %v992 = vld [vmem:[%s165 + $0x8] sm:$0xf]
      %v993 = vld [vmem:[%s165 + $0xc] sm:$0x1]
      %v994 = vld [vmem:[%s1 + $0x180] sm:$0xf]
      %v995 = vld [vmem:[%s1 + $0x184] sm:$0xf]
      %v996 = vld [vmem:[%s1 + $0x188] sm:$0xf]
      %v997 = vld [vmem:[%s1 + $0x18c] sm:$0xf]
      %v998 = vld [vmem:[%s1 + $0x190] sm:$0xf]
      %v999 = vld [vmem:[%s1 + $0x194] sm:$0xf]
      %v1000 = vld [vmem:[%s1 + $0x198] sm:$0xf]
      %v1001 = vld [vmem:[%s1 + $0x19c] sm:$0xf]
      %v1002 = vld [vmem:[%s1 + $0x1a0] sm:$0xf]
      %v1003 = vld [vmem:[%s1 + $0x1a4] sm:$0xf]
      %v1004 = vld [vmem:[%s1 + $0x1a8] sm:$0xf]
      %v1005 = vld [vmem:[%s1 + $0x1ac] sm:$0xf]
      %v1006 = vld [vmem:[%s1 + $0x1b0] sm:$0xf]
      %v1007 = vld [vmem:[%s1 + $0x1b4] sm:$0xf]
      %v1008 = vld [vmem:[%s1 + $0x1b8] sm:$0xf]
      %v1009 = vld [vmem:[%s1 + $0x1bc] sm:$0xf]
      %v1014 = vunpack.c.l.b16 %v990
      %v1015 = vunpack.c.l.b16 %v991
      %v1016 = vunpack.c.l.b16 %v992
      %v1017 = vunpack.c.l.b16 %v993
      %v1018 = vpack.c.b16 %v1015, %v1014
      %v1019 = vpack.c.b16 %v1017, %v1016
      %vm1020 = vsmask.f32 5376
      %v1022 = vshrl.u32 %v1018, 16
      %v1024 = vrot.slane %v1022, 2
      %v1025 = vshll.u32 %v1018, 16
      %v1027 = vrot.slane %v1025, 3
      %v1028 = vor.u32 %v1024, %v1027
      %v1030 = vshrl.u32 %v1019, 16
      %v1032 = vrot.slane %v1030, 2
      %v1033 = vshll.u32 %v1019, 16
      %v1035 = vrot.slane %v1033, 3
      %v1036 = vor.u32 %v1032, %v1035
      %v1037 = vsel %vm1020, %v1028, %v1036
      %v1056 = vunpack.c.l.b16 %v994
      %v1057 = vunpack.c.l.b16 %v995
      %v1058 = vunpack.c.l.b16 %v996
      %v1059 = vunpack.c.l.b16 %v997
      %v1060 = vunpack.c.l.b16 %v998
      %v1061 = vunpack.c.l.b16 %v999
      %v1062 = vunpack.c.l.b16 %v1000
      %v1063 = vunpack.c.l.b16 %v1001
      %v1064 = vunpack.c.l.b16 %v1002
      %v1065 = vunpack.c.l.b16 %v1003
      %v1066 = vunpack.c.l.b16 %v1004
      %v1067 = vunpack.c.l.b16 %v1005
      %v1068 = vunpack.c.l.b16 %v1006
      %v1069 = vunpack.c.l.b16 %v1007
      %v1070 = vunpack.c.l.b16 %v1008
      %v1071 = vunpack.c.l.b16 %v1009
      %v1072 = vpack.c.b16 %v1057, %v1056
      %v1073 = vpack.c.b16 %v1059, %v1058
      %v1074 = vpack.c.b16 %v1061, %v1060
      %v1075 = vpack.c.b16 %v1063, %v1062
      %v1076 = vpack.c.b16 %v1065, %v1064
      %v1077 = vpack.c.b16 %v1067, %v1066
      %v1078 = vpack.c.b16 %v1069, %v1068
      %v1079 = vpack.c.b16 %v1071, %v1070
      %1088 = vmatprep.subr.bf16.mxu0 0
      %1089 = vmatpush1.bf16.msra.mxu0 %v1072
      %1090 = vmatprep.subr.bf16.mxu0 0
      %1091 = vmatpush1.bf16.msra.mxu0 %v1073
      %1092 = vmatprep.subr.bf16.mxu0 0
      %1093 = vmatpush1.bf16.msra.mxu0 %v1074
      %1094 = vmatprep.subr.bf16.mxu0 0
      %1095 = vmatpush1.bf16.msra.mxu0 %v1075
      %1096 = vmatprep.subr.bf16.mxu0 0
      %1097 = vmatpush1.bf16.msra.mxu0 %v1076
      %1098 = vmatprep.subr.bf16.mxu0 0
      %1099 = vmatpush1.bf16.msra.mxu0 %v1077
      %1100 = vmatprep.subr.bf16.mxu0 0
      %1101 = vmatpush1.bf16.msra.mxu0 %v1078
      %1102 = vmatprep.subr.bf16.mxu0 0
      %1103 = vmatpush1.bf16.msra.mxu0 %v1079
      %1104 = vmatprep.subr.bf16.mxu0 0
      %1105 = vmatpush1.bf16.msra.mxu0 0
      %1106 = vmatprep.subr.bf16.mxu0 0
      %1107 = vmatpush1.bf16.msra.mxu0 0
      %1108 = vmatprep.subr.bf16.mxu0 0
      %1109 = vmatpush1.bf16.msra.mxu0 0
      %1110 = vmatprep.subr.bf16.mxu0 0
      %1111 = vmatpush1.bf16.msra.mxu0 0
      %1112 = vmatprep.subr.bf16.mxu0 0
      %1113 = vmatpush1.bf16.msra.mxu0 0
      %1114 = vmatprep.subr.bf16.mxu0 0
      %1115 = vmatpush1.bf16.msra.mxu0 0
      %1116 = vmatprep.subr.bf16.mxu0 0
      %1117 = vmatpush1.bf16.msra.mxu0 0
      %1118 = vmatprep.subr.bf16.mxu0 0
      %1119 = vmatpush1.bf16.msra.mxu0 0
      %1120 = vmatprep.mubr.bf16.mxu0 0
      %1121 = vmatmul.mubr.bf16.gmra.mrb[0].mxu0 %v1037
      %v1122 = vpop.f32.mrb[0].mxu0
      %v1123 = vadd.f32 0.0, %v1122
      %v1124 = vpop.f32.mrb[0].mxu0
      %v1125 = vpop.f32.mrb[0].mxu0
      %v1126 = vadd.f32 0.0, %v1125
      %v1127 = vpop.f32.mrb[0].mxu0
      %1128 = vmatprep.mubr.bf16.mxu0 0
      %1129 = vmatmul.mubr.bf16.gmra.mrb[0].mxu0 %v1036
      %v1130 = vpop.f32.mrb[0].mxu0
      %v1131 = vadd.f32 0.0, %v1130
      %v1132 = vpop.f32.mrb[0].mxu0
      %v1133 = vpop.f32.mrb[0].mxu0
      %v1134 = vpop.f32.mrb[0].mxu0
      %1135 = vdwg.mxu0
      %v1136 = vadd.f32 %v987, %v1123
      %v1137 = vadd.f32 %v988, %v1126
      %v1138 = vadd.f32 %v989, %v1131
      %v1139 = vld [vmem:[%s165 + $0xc] sm:$0x8]
      %v1140 = vld [vmem:[%s165 + $0x10] sm:$0xf]
      %v1141 = vld [vmem:[%s165 + $0x14] sm:$0xf]
      %v1142 = vld [vmem:[%s165 + $0x18] sm:$0x1]
      %v1143 = vld [vmem:[%s1 + $0x1c0] sm:$0xf]
      %v1144 = vld [vmem:[%s1 + $0x1c4] sm:$0xf]
      %v1145 = vld [vmem:[%s1 + $0x1c8] sm:$0xf]
      %v1146 = vld [vmem:[%s1 + $0x1cc] sm:$0xf]
      %v1147 = vld [vmem:[%s1 + $0x1d0] sm:$0xf]
      %v1148 = vld [vmem:[%s1 + $0x1d4] sm:$0xf]
      %v1149 = vld [vmem:[%s1 + $0x1d8] sm:$0xf]
      %v1150 = vld [vmem:[%s1 + $0x1dc] sm:$0xf]
      %v1151 = vld [vmem:[%s1 + $0x1e0] sm:$0xf]
      %v1152 = vld [vmem:[%s1 + $0x1e4] sm:$0xf]
      %v1153 = vld [vmem:[%s1 + $0x1e8] sm:$0xf]
      %v1154 = vld [vmem:[%s1 + $0x1ec] sm:$0xf]
      %v1155 = vld [vmem:[%s1 + $0x1f0] sm:$0xf]
      %v1156 = vld [vmem:[%s1 + $0x1f4] sm:$0xf]
      %v1157 = vld [vmem:[%s1 + $0x1f8] sm:$0xf]
      %v1158 = vld [vmem:[%s1 + $0x1fc] sm:$0xf]
      %v1163 = vunpack.c.l.b16 %v1139
      %v1164 = vunpack.c.l.b16 %v1140
      %v1165 = vunpack.c.l.b16 %v1141
      %v1166 = vunpack.c.l.b16 %v1142
      %v1167 = vpack.c.b16 %v1164, %v1163
      %v1168 = vpack.c.b16 %v1166, %v1165
      %vm1169 = vcmask 1044480
      %v1170 = vrot.slane %v1167, 3
      %v1171 = vrot.slane %v1168, 3
      %v1172 = vsel %vm1169, %v1170, %v1171
      %v1191 = vunpack.c.l.b16 %v1143
      %v1192 = vunpack.c.l.b16 %v1144
      %v1193 = vunpack.c.l.b16 %v1145
      %v1194 = vunpack.c.l.b16 %v1146
      %v1195 = vunpack.c.l.b16 %v1147
      %v1196 = vunpack.c.l.b16 %v1148
      %v1197 = vunpack.c.l.b16 %v1149
      %v1198 = vunpack.c.l.b16 %v1150
      %v1199 = vunpack.c.l.b16 %v1151
      %v1200 = vunpack.c.l.b16 %v1152
      %v1201 = vunpack.c.l.b16 %v1153
      %v1202 = vunpack.c.l.b16 %v1154
      %v1203 = vunpack.c.l.b16 %v1155
      %v1204 = vunpack.c.l.b16 %v1156
      %v1205 = vunpack.c.l.b16 %v1157
      %v1206 = vunpack.c.l.b16 %v1158
      %v1207 = vpack.c.b16 %v1192, %v1191
      %v1208 = vpack.c.b16 %v1194, %v1193
      %v1209 = vpack.c.b16 %v1196, %v1195
      %v1210 = vpack.c.b16 %v1198, %v1197
      %v1211 = vpack.c.b16 %v1200, %v1199
      %v1212 = vpack.c.b16 %v1202, %v1201
      %v1213 = vpack.c.b16 %v1204, %v1203
      %v1214 = vpack.c.b16 %v1206, %v1205
      %1223 = vmatprep.subr.bf16.mxu0 0
      %1224 = vmatpush1.bf16.msra.mxu0 %v1207
      %1225 = vmatprep.subr.bf16.mxu0 0
      %1226 = vmatpush1.bf16.msra.mxu0 %v1208
      %1227 = vmatprep.subr.bf16.mxu0 0
      %1228 = vmatpush1.bf16.msra.mxu0 %v1209
      %1229 = vmatprep.subr.bf16.mxu0 0
      %1230 = vmatpush1.bf16.msra.mxu0 %v1210
      %1231 = vmatprep.subr.bf16.mxu0 0
      %1232 = vmatpush1.bf16.msra.mxu0 %v1211
      %1233 = vmatprep.subr.bf16.mxu0 0
      %1234 = vmatpush1.bf16.msra.mxu0 %v1212
      %1235 = vmatprep.subr.bf16.mxu0 0
      %1236 = vmatpush1.bf16.msra.mxu0 %v1213
      %1237 = vmatprep.subr.bf16.mxu0 0
      %1238 = vmatpush1.bf16.msra.mxu0 %v1214
      %1239 = vmatprep.subr.bf16.mxu0 0
      %1240 = vmatpush1.bf16.msra.mxu0 0
      %1241 = vmatprep.subr.bf16.mxu0 0
      %1242 = vmatpush1.bf16.msra.mxu0 0
      %1243 = vmatprep.subr.bf16.mxu0 0
      %1244 = vmatpush1.bf16.msra.mxu0 0
      %1245 = vmatprep.subr.bf16.mxu0 0
      %1246 = vmatpush1.bf16.msra.mxu0 0
      %1247 = vmatprep.subr.bf16.mxu0 0
      %1248 = vmatpush1.bf16.msra.mxu0 0
      %1249 = vmatprep.subr.bf16.mxu0 0
      %1250 = vmatpush1.bf16.msra.mxu0 0
      %1251 = vmatprep.subr.bf16.mxu0 0
      %1252 = vmatpush1.bf16.msra.mxu0 0
      %1253 = vmatprep.subr.bf16.mxu0 0
      %1254 = vmatpush1.bf16.msra.mxu0 0
      %1255 = vmatprep.mubr.bf16.mxu0 0
      %1256 = vmatmul.mubr.bf16.gmra.mrb[0].mxu0 %v1172
      %v1257 = vpop.f32.mrb[0].mxu0
      %v1258 = vadd.f32 0.0, %v1257
      %v1259 = vpop.f32.mrb[0].mxu0
      %v1260 = vpop.f32.mrb[0].mxu0
      %v1261 = vadd.f32 0.0, %v1260
      %v1262 = vpop.f32.mrb[0].mxu0
      %1263 = vmatprep.mubr.bf16.mxu0 0
      %1264 = vmatmul.mubr.bf16.gmra.mrb[0].mxu0 %v1171
      %v1265 = vpop.f32.mrb[0].mxu0
      %v1266 = vadd.f32 0.0, %v1265
      %v1267 = vpop.f32.mrb[0].mxu0
      %v1268 = vpop.f32.mrb[0].mxu0
      %v1269 = vpop.f32.mrb[0].mxu0
      %1270 = vdwg.mxu0
      %v1271 = vadd.f32 %v1136, %v1258
      %v1272 = vadd.f32 %v1137, %v1261
      %v1273 = vadd.f32 %v1138, %v1266
      %v1274 = vld [vmem:[%s165] sm:$0x8]
      %v1275 = vld [vmem:[%s1 + $0x200] sm:$0xf]
      %v1276 = vld [vmem:[%s1 + $0x204] sm:$0xf]
      %v1277 = vld [vmem:[%s1 + $0x208] sm:$0xf]
      %v1278 = vld [vmem:[%s1 + $0x20c] sm:$0xf]
      %v1279 = vld [vmem:[%s1 + $0x210] sm:$0xf]
      %v1280 = vld [vmem:[%s1 + $0x214] sm:$0xf]
      %v1281 = vld [vmem:[%s1 + $0x218] sm:$0xf]
      %v1282 = vld [vmem:[%s1 + $0x21c] sm:$0xf]
      %v1283 = vld [vmem:[%s1 + $0x220] sm:$0xf]
      %v1284 = vld [vmem:[%s1 + $0x224] sm:$0xf]
      %v1285 = vld [vmem:[%s1 + $0x228] sm:$0xf]
      %v1286 = vld [vmem:[%s1 + $0x22c] sm:$0xf]
      %v1287 = vld [vmem:[%s1 + $0x230] sm:$0xf]
      %v1288 = vld [vmem:[%s1 + $0x234] sm:$0xf]
      %v1289 = vld [vmem:[%s1 + $0x238] sm:$0xf]
      %v1290 = vld [vmem:[%s1 + $0x23c] sm:$0xf]
      %v1292 = vunpack.c.l.b16 %v1274
      %v1293 = vpack.c.b16 %v1015, %v1292
      %v1294 = vrot.slane %v1293, 3
      %v1295 = vrot.slane %v1019, 3
      %v1296 = vsel %vm1169, %v1294, %v1295
      %v1315 = vunpack.c.l.b16 %v1275
      %v1316 = vunpack.c.l.b16 %v1276
      %v1317 = vunpack.c.l.b16 %v1277
      %v1318 = vunpack.c.l.b16 %v1278
      %v1319 = vunpack.c.l.b16 %v1279
      %v1320 = vunpack.c.l.b16 %v1280
      %v1321 = vunpack.c.l.b16 %v1281
      %v1322 = vunpack.c.l.b16 %v1282
      %v1323 = vunpack.c.l.b16 %v1283
      %v1324 = vunpack.c.l.b16 %v1284
      %v1325 = vunpack.c.l.b16 %v1285
      %v1326 = vunpack.c.l.b16 %v1286
      %v1327 = vunpack.c.l.b16 %v1287
      %v1328 = vunpack.c.l.b16 %v1288
      %v1329 = vunpack.c.l.b16 %v1289
      %v1330 = vunpack.c.l.b16 %v1290
      %v1331 = vpack.c.b16 %v1316, %v1315
      %v1332 = vpack.c.b16 %v1318, %v1317
      %v1333 = vpack.c.b16 %v1320, %v1319
      %v1334 = vpack.c.b16 %v1322, %v1321
      %v1335 = vpack.c.b16 %v1324, %v1323
      %v1336 = vpack.c.b16 %v1326, %v1325
      %v1337 = vpack.c.b16 %v1328, %v1327
      %v1338 = vpack.c.b16 %v1330, %v1329
      %1347 = vmatprep.subr.bf16.mxu0 0
      %1348 = vmatpush1.bf16.msra.mxu0 %v1331
      %1349 = vmatprep.subr.bf16.mxu0 0
      %1350 = vmatpush1.bf16.msra.mxu0 %v1332
      %1351 = vmatprep.subr.bf16.mxu0 0
      %1352 = vmatpush1.bf16.msra.mxu0 %v1333
      %1353 = vmatprep.subr.bf16.mxu0 0
      %1354 = vmatpush1.bf16.msra.mxu0 %v1334
      %1355 = vmatprep.subr.bf16.mxu0 0
      %1356 = vmatpush1.bf16.msra.mxu0 %v1335
      %1357 = vmatprep.subr.bf16.mxu0 0
      %1358 = vmatpush1.bf16.msra.mxu0 %v1336
      %1359 = vmatprep.subr.bf16.mxu0 0
      %1360 = vmatpush1.bf16.msra.mxu0 %v1337
      %1361 = vmatprep.subr.bf16.mxu0 0
      %1362 = vmatpush1.bf16.msra.mxu0 %v1338
      %1363 = vmatprep.subr.bf16.mxu0 0
      %1364 = vmatpush1.bf16.msra.mxu0 0
      %1365 = vmatprep.subr.bf16.mxu0 0
      %1366 = vmatpush1.bf16.msra.mxu0 0
      %1367 = vmatprep.subr.bf16.mxu0 0
      %1368 = vmatpush1.bf16.msra.mxu0 0
      %1369 = vmatprep.subr.bf16.mxu0 0
      %1370 = vmatpush1.bf16.msra.mxu0 0
      %1371 = vmatprep.subr.bf16.mxu0 0
      %1372 = vmatpush1.bf16.msra.mxu0 0
      %1373 = vmatprep.subr.bf16.mxu0 0
      %1374 = vmatpush1.bf16.msra.mxu0 0
      %1375 = vmatprep.subr.bf16.mxu0 0
      %1376 = vmatpush1.bf16.msra.mxu0 0
      %1377 = vmatprep.subr.bf16.mxu0 0
      %1378 = vmatpush1.bf16.msra.mxu0 0
      %1379 = vmatprep.mubr.bf16.mxu0 0
      %1380 = vmatmul.mubr.bf16.gmra.mrb[0].mxu0 %v1296
      %v1381 = vpop.f32.mrb[0].mxu0
      %v1382 = vadd.f32 0.0, %v1381
      %v1383 = vpop.f32.mrb[0].mxu0
      %v1384 = vpop.f32.mrb[0].mxu0
      %v1385 = vadd.f32 0.0, %v1384
      %v1386 = vpop.f32.mrb[0].mxu0
      %1387 = vmatprep.mubr.bf16.mxu0 0
      %1388 = vmatmul.mubr.bf16.gmra.mrb[0].mxu0 %v1295
      %v1389 = vpop.f32.mrb[0].mxu0
      %v1390 = vadd.f32 0.0, %v1389
      %v1391 = vpop.f32.mrb[0].mxu0
      %v1392 = vpop.f32.mrb[0].mxu0
      %v1393 = vpop.f32.mrb[0].mxu0
      %1394 = vdwg.mxu0
      %v1395 = vadd.f32 %v1271, %v1382
      %v1396 = vadd.f32 %v1272, %v1385
      %v1397 = vadd.f32 %v1273, %v1390
      %v1398 = vld [vmem:[%s2] sm:$0x1]
      %v1400 = vlaneseq
      %v1401 = vshrl.u32 %v1400, 7
      %v1402 = vsub.s32 0, %v1401
      %v1403 = vrot.slane %v1398, %v1402
      %v1405 = vadd.f32 %v1395, %v1403
      %v1406 = vadd.f32 %v1396, %v1403
      %v1407 = vadd.f32 %v1397, %v1403
      %v1408 = vmul.f32 %v1405, %v1405
      %v1409 = vmul.f32 %v1406, %v1406
      %v1410 = vmul.f32 %v1407, %v1407
      %v1411 = vmul.f32 %v1405, %v1408
      %v1412 = vmul.f32 %v1406, %v1409
      %v1413 = vmul.f32 %v1407, %v1410
      %v1414 = vmul.f32 %v1411, 0.044715
      %v1415 = vmul.f32 %v1412, 0.044715
      %v1416 = vmul.f32 %v1413, 0.044715
      %v1417 = vadd.f32 %v1405, %v1414
      %v1418 = vadd.f32 %v1406, %v1415
      %v1419 = vadd.f32 %v1407, %v1416
      %v1420 = vmul.f32 %v1417, 0.7978846
      %v1421 = vmul.f32 %v1418, 0.7978846
      %v1422 = vmul.f32 %v1419, 0.7978846
      %v1423 = vtanh.pop %v1420
      %v1424 = vtanh.pop %v1421
      %v1425 = vtanh.pop %v1422
      %v1426 = vadd.f32 %v1423, 1.0
      %v1427 = vadd.f32 %v1424, 1.0
      %v1428 = vadd.f32 %v1425, 1.0
      %v1429 = vmul.f32 %v1426, 0.5
      %v1430 = vmul.f32 %v1427, 0.5
      %v1431 = vmul.f32 %v1428, 0.5
      %v1432 = vmul.f32 %v1405, %v1429
      %v1433 = vmul.f32 %v1406, %v1430
      %v1434 = vmul.f32 %v1407, %v1431
      %v1435 = vmul.f32 %v1432, 1.7015043
      %v1436 = vmul.f32 %v1433, 1.7015043
      %v1437 = vmul.f32 %v1434, 1.7015043
      %1438 = vst [vmem:[%s170] sm:$0xff] %v1435
      %1439 = vst [vmem:[%s170 + $0x8] sm:$0xff] %v1436
      %1440 = vst [vmem:[%s170 + $0x10] sm:$0xf] %v1437
      %p1441 = scmp.lt.s32.totalorder %s14, 1
      %s1442 = scalar_select %p1441, %s14, 1
      %s1443 = smul.addr %s1442, 3
      %s1444 = smul.addr %s1443, 8
      %s1445 = scalar_lea.vmem %s3, %s1444
      // Predicated region
      $region33: #{_forward_impl.5} parent=31 // pred_check
        %p1446 = pneg %p100
      $region34: #{_forward_impl.5} parent=31 // pred_check_branch
        %1448 = sbr.rel (%p1446) target = $region36
      $region35: #{_forward_impl.5} parent=31 // pred_region
        _
      $region36: #{_forward_impl.5} parent=31 // pred_fallthru
        _
    $region32: #{_forward_impl.5} parent=5 // pred_fallthru
      _
    %p1449 = scmp.le.s32.totalorder 2, %s9
    // Predicated region
    $region37: #{_forward_impl.5} parent=5 // pred_check
      %p1450 = pneg %p1449
    $region38: #{_forward_impl.5} parent=5 // pred_check_branch
      %1452 = sbr.rel (%p1450) target = $region40
    $region39: #{_forward_impl.5} parent=5 // pred_region
      %s1453 = ssub.s32 %s9, 2
      // Predicated region
      $region41: #{_forward_impl.5} parent=39 // pred_check
        %p1454 = pneg %p106
      $region42: #{_forward_impl.5} parent=39 // pred_check_branch
        %1456 = sbr.rel (%p1454) target = $region44
      $region43: #{_forward_impl.5} parent=39 // pred_region
        %p1457 = scmp.lt.s32.totalorder %s15, 1
        %s1458 = scalar_select %p1457, %s15, 1
        %s1459 = smul.addr %s1458, 3
        %s1460 = smul.addr %s1459, 8
        %s1461 = scalar_lea.vmem %s3, %s1460
      $region44: #{_forward_impl.5} parent=39 // pred_fallthru
        _
    $region40: #{_forward_impl.5} parent=5 // pred_fallthru
      _
  $region6: #{_forward_impl.5} parent=0 // loop_footer
    %s13 = sadd.s32 1, %s9
  $region7: #{_forward_impl.5} parent=0 // loop_footer_branch
    %8 = sbr.rel target = $region3
  $region8: #{_forward_impl.5} parent=0 // loop_exit
    _

</llo_original>
